<compile_context>
chip_gen: v7x
topology: tpu7x:2x2x1
jax: 0.10.0
libtpu: 0.0.40
codegen_flags: <defaults>
</compile_context>

<pallas_src>
import functools
import math

import jax
import jax.numpy as jnp
from jax import lax
from jax.experimental import pallas as pl
from jax.experimental.pallas import tpu as pltpu


def _mingru_block_kernel(x_ref, nw_ref, cw_ref, cb_ref, whg_ref, bhg_ref, wout_ref,
                         tri_ref, o_ref, *, eps, chunk, mxu_dtype, approx_silu):
    Bt, L, H = x_ref.shape
    K = cw_ref.shape[0]
    HE = wout_ref.shape[0]
    C = chunk
    NC = L // C
    BC = Bt * C
    f32 = jnp.float32

    x = x_ref[...].astype(f32)                                   # (Bt, L, H); reused for residual

    # ---- RMSNorm ------------------------------------------------------------
    var = jnp.mean(x * x, axis=-1, keepdims=True)                # (Bt, L, 1)
    h = x * lax.rsqrt(var + eps) * nw_ref[...].reshape(1, 1, H)

    # ---- causal depthwise conv1d (XLU rolls, no scratch round-trip) ----------
    cw = cw_ref[...].astype(f32)                                 # (K, H)
    cb = cb_ref[...].reshape(1, 1, H)
    acc = h * cw[K - 1:K, :].reshape(1, 1, H) + cb               # tap with zero shift
    h2 = h.reshape(Bt * L, H)                                    # free reshape (L % 8 == 0)
    t_idx = lax.broadcasted_iota(jnp.int32, (1, L, 1), 1)
    for d in range(1, K):                                        # K is tiny (2-4)
        k = K - 1 - d
        rolled = pltpu.roll(h2, shift=d, axis=0).reshape(Bt, L, H)
        # rows t < d hold wrapped / previous-batch data -> mask to zero (causal pad)
        shifted = jnp.where(t_idx >= d, rolled, 0.0)
        acc = acc + shifted * cw[k:k + 1, :].reshape(1, 1, H)
    if approx_silu:
        # approx reciprocal keeps the divide on the cheap EUP estimate path
        hconv = acc * pl.reciprocal(1.0 + jnp.exp(-acc), approx=True)
    else:
        hconv = acc * (1.0 / (1.0 + jnp.exp(-acc)))

    # ---- to_hidden_and_gate projection (batch-folded M = Bt*L, bf16 MXU) -----
    hg = jnp.dot(hconv.reshape(Bt * L, H).astype(mxu_dtype), whg_ref[...],
                 preferred_element_type=f32)
    hg = (hg + bhg_ref[...]).reshape(Bt, L, 2 * HE)
    hid = hg[:, :, :HE]
    gate = hg[:, :, HE:]

    # ---- minGRU in log space (shared softplus term halves exp/log count) -----
    t_g = jnp.log(1.0 + jnp.exp(-jnp.abs(gate)))
    log_coeff = -(jnp.maximum(gate, 0.0) + t_g)                  # -softplus(gate)
    log_z = -(jnp.maximum(-gate, 0.0) + t_g)                     # -softplus(-gate)
    t_h = jnp.log(1.0 + jnp.exp(-jnp.abs(hid)))
    log_tilde = jnp.where(hid >= 0.0,
                          jnp.log(jnp.maximum(hid, 0.0) + 0.5),
                          hid - t_h)                             # == log_g(hid)
    log_values = log_z + log_tilde

    # ---- chunked heinsen scan + per-chunk W_out + residual + store -----------
    # tri is a (BC, BC) block-diagonal lower-triangular ones mask (one per-chunk MXU
    # issue covers all Bt batch rows).  Carries are per-batch (Bt, 1, HE).
    tri = tri_ref[...]
    wout = wout_ref[...]
    a_c = jnp.zeros((Bt, 1, HE), f32)                            # cumsum of log_coeff so far
    m_c = jnp.full((Bt, 1, HE), -1e30, f32)                      # running max of (lv - a*)
    s_c = jnp.zeros((Bt, 1, HE), f32)                            # running sum * exp(-m)
    for c in range(NC):                                          # NC small; results stream to o_ref
        sl = slice(c * C, (c + 1) * C)
        lc = log_coeff[:, sl, :].reshape(BC, HE)
        lv = log_values[:, sl, :]
        a_star = jnp.dot(tri, lc, preferred_element_type=f32).reshape(Bt, C, HE) + a_c
        v = lv - a_star
        m_new = jnp.maximum(m_c, jnp.max(v, axis=1, keepdims=True))
        p = jnp.exp(v - m_new).reshape(BC, HE)
        total = (s_c * jnp.exp(m_c - m_new)
                 + jnp.dot(tri, p, preferred_element_type=f32).reshape(Bt, C, HE))
        out_c = jnp.exp(a_star + m_new) * total                  # no extra log (perf review)
        a_c = a_star[:, C - 1:C, :]
        m_c = m_new
        s_c = total[:, C - 1:C, :]
        y = jnp.dot(out_c.reshape(BC, HE).astype(mxu_dtype), wout,
                    preferred_element_type=f32).reshape(Bt, C, H)
        o_ref[:, sl, :] = (y + x[:, sl, :]).astype(o_ref.dtype)


def mingru_block(x, norm_w, conv_w, conv_b, w_hg, b_hg, w_out, *,
                 eps=1e-6, block_batch=None, chunk=None, mxu_bf16=True,
                 approx_silu=True, vmem_limit_bytes=48 * 1024 * 1024):
    B, L, H = x.shape
    K = conv_w.shape[0]
    HE = w_out.shape[0]

    if block_batch is None:
        # v7x guidance: small Bt (64 MiB VMEM, 2 TCs) and grid extent >= 2 where possible.
        block_batch = 2 if (B % 2 == 0 and B >= 4) else 1
    assert B % block_batch == 0

    if chunk is None:
        chunk = 0
        for cand in range(min(L, 256), 7, -1):                   # largest mult-of-8 divisor <= 256
            if L % cand == 0 and cand % 8 == 0:
                chunk = cand
                break
        if chunk == 0:
            chunk = L                                            # tiny / odd L fallback
    assert L % chunk == 0

    mxu_dtype = jnp.bfloat16 if mxu_bf16 else jnp.float32
    BC = block_batch * chunk

    # Block-diagonal lower-triangular ones mask (built once outside the kernel).
    idx = jnp.arange(BC, dtype=jnp.int32)
    blk = idx // chunk
    tri = ((blk[:, None] == blk[None, :]) &
           (idx[None, :] <= idx[:, None])).astype(jnp.float32)

    # No-op if the caller already pre-cast the weights (recommended).
    w_hg_c = w_hg if w_hg.dtype == mxu_dtype else w_hg.astype(mxu_dtype)
    w_out_c = w_out if w_out.dtype == mxu_dtype else w_out.astype(mxu_dtype)

    kernel = functools.partial(_mingru_block_kernel, eps=eps, chunk=chunk,
                               mxu_dtype=mxu_dtype, approx_silu=approx_silu)
    return pl.pallas_call(
        kernel,
        out_shape=jax.ShapeDtypeStruct((B, L, H), x.dtype),
        grid=(B // block_batch,),
        in_specs=[
            pl.BlockSpec((block_batch, L, H), lambda i: (i, 0, 0)),   # x
            pl.BlockSpec((1, H), lambda i: (0, 0)),                   # RMSNorm weight
            pl.BlockSpec((K, H), lambda i: (0, 0)),                   # conv weight (K, H)
            pl.BlockSpec((1, H), lambda i: (0, 0)),                   # conv bias
            pl.BlockSpec((H, 2 * HE), lambda i: (0, 0)),              # W_hg^T (MXU dtype)
            pl.BlockSpec((1, 2 * HE), lambda i: (0, 0)),              # b_hg (f32)
            pl.BlockSpec((HE, H), lambda i: (0, 0)),                  # W_out^T (MXU dtype)
            pl.BlockSpec((BC, BC), lambda i: (0, 0)),                 # block-diag tri mask
        ],
        out_specs=pl.BlockSpec((block_batch, L, H), lambda i: (i, 0, 0)),
        compiler_params=pltpu.CompilerParams(
            dimension_semantics=("parallel",),
            vmem_limit_bytes=vmem_limit_bytes),
    )(x, norm_w, conv_w, conv_b, w_hg_c, b_hg, w_out_c, tri)


def mingru_block_ref(x, norm_w, conv_w, conv_b, w_hg, b_hg, w_out, eps=1e-6, mxu_bf16=True):
    """Pure-JAX reference mirroring the PyTorch forward (parallel path).

    Matmul operands are cast exactly like the kernel (bf16 inputs, f32 accumulation)
    so the comparison isolates the Pallas implementation; with mxu_bf16=False it is
    the bit-faithful f32 PyTorch semantics."""
    B, L, H = x.shape
    K = conv_w.shape[0]
    HE = w_out.shape[0]
    md = jnp.bfloat16 if mxu_bf16 else jnp.float32
    xf = x.astype(jnp.float32)
    var = jnp.mean(xf * xf, axis=-1, keepdims=True)
    h = xf * jax.lax.rsqrt(var + eps) * norm_w[0]
    hp = jnp.pad(h, ((0, 0), (K - 1, 0), (0, 0)))
    conv = sum(hp[:, k:k + L, :] * conv_w[k] for k in range(K)) + conv_b[0]
    hc = conv * jax.nn.sigmoid(conv)
    hg = jnp.dot(hc.reshape(B * L, H).astype(md), w_hg.astype(md),
                 preferred_element_type=jnp.float32).reshape(B, L, 2 * HE) + b_hg[0]
    hid, gate = hg[..., :HE], hg[..., HE:]
    log_coeff = -jax.nn.softplus(gate)
    log_z = -jax.nn.softplus(-gate)
    log_tilde = jnp.where(hid >= 0.0, jnp.log(jax.nn.relu(hid) + 0.5),
                          -jax.nn.softplus(-hid))
    log_values = log_z + log_tilde
    a_star = jnp.cumsum(log_coeff, axis=1)
    lcse = jax.lax.cumlogsumexp(log_values - a_star, axis=1)
    out = jnp.exp(a_star + lcse)
    y = jnp.dot(out.reshape(B * L, HE).astype(md), w_out.astype(md),
                preferred_element_type=jnp.float32).reshape(B, L, H)
    return y + xf


if __name__ == "__main__":
    # Config: hidden_size=128, gru_expansion_factor=2 (so to_out is a real Linear),
    #         conv_kernel_size=4, use_conv_bias=True, use_mingru_bias=True, act=SiLU.
    # B=4 / block_batch=2 -> grid of 2 (keeps both v7x TCs busy); chunk=64 exercises
    # the cross-chunk scan carry; H=128 keeps the output lane-dense.
    B, L, H, E, K = 4, 128, 128, 2, 4
    HE = H * E

    key = jax.random.PRNGKey(0)
    k_x, k_cw, k_cb, k_whg, k_bhg, k_wout = jax.random.split(key, 6)

    x = jax.random.normal(k_x, (B, L, H), jnp.float32)
    norm_w = jnp.ones((1, H), jnp.float32)                                    # RMSNorm weight (init = ones)
    conv_w = jax.random.normal(k_cw, (K, H), jnp.float32) * 0.2               # depthwise conv weight
    conv_b = jax.random.normal(k_cb, (1, H), jnp.float32) * 0.1               # conv bias
    w_hg = jax.random.normal(k_whg, (H, 2 * HE), jnp.float32) / math.sqrt(H)  # Linear(H, 2*HE) weight^T
    b_hg = jax.random.normal(k_bhg, (1, 2 * HE), jnp.float32) * 0.1           # Linear bias
    w_out = jax.random.normal(k_wout, (HE, H), jnp.float32) / math.sqrt(HE)   # Linear(HE, H) weight^T

    # Pre-cast the MXU operands once (perf review: avoid a per-call convert in the wrapper).
    w_hg_bf16 = w_hg.astype(jnp.bfloat16)
    w_out_bf16 = w_out.astype(jnp.bfloat16)

    out = mingru_block(x, norm_w, conv_w, conv_b, w_hg_bf16, b_hg, w_out_bf16, chunk=64)
    jax.block_until_ready(out)

    ref = mingru_block_ref(x, norm_w, conv_w, conv_b, w_hg_bf16, b_hg, w_out_bf16)
    assert out.shape == (B, L, H)
    # Tolerance covers bf16 MXU operands + approx-reciprocal SiLU (both applied
    # identically in kernel and reference, plus accumulation-order / EUP deltas).
    assert jnp.allclose(out, ref, atol=2e-2, rtol=2e-2), "mismatch vs. JAX reference"

    print("KERNEL_OK")
</pallas_src>

<mosaic_0001>
module attributes {stable_mosaic.version = 11 : i64} {
  func.func @_mingru_block_kernel(%arg0: i32, %arg1: memref<2x128x128xf32, #tpu.memory_space<vmem>>, %arg2: memref<1x128xf32, #tpu.memory_space<vmem>>, %arg3: memref<4x128xf32, #tpu.memory_space<vmem>>, %arg4: memref<1x128xf32, #tpu.memory_space<vmem>>, %arg5: memref<128x512xbf16, #tpu.memory_space<vmem>>, %arg6: memref<1x512xf32, #tpu.memory_space<vmem>>, %arg7: memref<256x128xbf16, #tpu.memory_space<vmem>>, %arg8: memref<128x128xf32, #tpu.memory_space<vmem>>, %arg9: memref<2x128x128xf32, #tpu.memory_space<vmem>>) attributes {dimension_semantics = [#tpu.dimension_semantics<parallel>], iteration_bounds = array<i64: 2>, scalar_prefetch = 0 : i64, scratch_operands = 0 : i64, tpu.core_type = #tpu.core_type<tc>, window_params = [{transform_indices = @transform_0, window_bounds = array<i64: 2, 128, 128>}, {pipeline_mode = #tpu.pipeline_mode<synchronous>, transform_indices = @transform_1, window_bounds = array<i64: 1, 128>}, {pipeline_mode = #tpu.pipeline_mode<synchronous>, transform_indices = @transform_2, window_bounds = array<i64: 4, 128>}, {pipeline_mode = #tpu.pipeline_mode<synchronous>, transform_indices = @transform_3, window_bounds = array<i64: 1, 128>}, {pipeline_mode = #tpu.pipeline_mode<synchronous>, transform_indices = @transform_4, window_bounds = array<i64: 128, 512>}, {pipeline_mode = #tpu.pipeline_mode<synchronous>, transform_indices = @transform_5, window_bounds = array<i64: 1, 512>}, {pipeline_mode = #tpu.pipeline_mode<synchronous>, transform_indices = @transform_6, window_bounds = array<i64: 256, 128>}, {pipeline_mode = #tpu.pipeline_mode<synchronous>, transform_indices = @transform_7, window_bounds = array<i64: 128, 128>}, {transform_indices = @transform_8, window_bounds = array<i64: 2, 128, 128>}]} {
    %c0 = arith.constant 0 : index
    %c0_0 = arith.constant 0 : index
    %c0_1 = arith.constant 0 : index
    %0 = vector.load %arg1[%c0, %c0_0, %c0_1] : memref<2x128x128xf32, #tpu.memory_space<vmem>>, vector<2x128x128xf32>
    %1 = arith.mulf %0, %0 : vector<2x128x128xf32>
    %cst = arith.constant dense<0.000000e+00> : vector<2x128xf32>
    %2 = vector.multi_reduction <add>, %1, %cst [2] : vector<2x128x128xf32> to vector<2x128xf32>
    %3 = vector.shape_cast %2 : vector<2x128xf32> to vector<2x128x1xf32>
    %cst_2 = arith.constant 1.280000e+02 : f32
    %4 = vector.broadcast %cst_2 : f32 to vector<2x128x1xf32>
    %5 = arith.divf %3, %4 : vector<2x128x1xf32>
    %cst_3 = arith.constant 9.99999997E-7 : f32
    %6 = vector.broadcast %cst_3 : f32 to vector<2x128x1xf32>
    %7 = arith.addf %5, %6 : vector<2x128x1xf32>
    %8 = math.rsqrt %7 : vector<2x128x1xf32>
    %9 = vector.broadcast %8 : vector<2x128x1xf32> to vector<2x128x128xf32>
    %10 = arith.mulf %0, %9 : vector<2x128x128xf32>
    %c0_4 = arith.constant 0 : index
    %c0_5 = arith.constant 0 : index
    %11 = vector.load %arg2[%c0_4, %c0_5] : memref<1x128xf32, #tpu.memory_space<vmem>>, vector<1x128xf32>
    %12 = vector.shape_cast %11 : vector<1x128xf32> to vector<1x1x128xf32>
    %13 = vector.broadcast %12 : vector<1x1x128xf32> to vector<2x128x128xf32>
    %14 = arith.mulf %10, %13 : vector<2x128x128xf32>
    %c0_6 = arith.constant 0 : index
    %c0_7 = arith.constant 0 : index
    %15 = vector.load %arg3[%c0_6, %c0_7] : memref<4x128xf32, #tpu.memory_space<vmem>>, vector<4x128xf32>
    %c0_8 = arith.constant 0 : index
    %c0_9 = arith.constant 0 : index
    %16 = vector.load %arg4[%c0_8, %c0_9] : memref<1x128xf32, #tpu.memory_space<vmem>>, vector<1x128xf32>
    %17 = vector.shape_cast %16 : vector<1x128xf32> to vector<1x1x128xf32>
    %18 = vector.extract_strided_slice %15 {offsets = [3, 0], sizes = [1, 128], strides = [1, 1]} : vector<4x128xf32> to vector<1x128xf32>
    %19 = vector.shape_cast %18 : vector<1x128xf32> to vector<1x1x128xf32>
    %20 = vector.broadcast %19 : vector<1x1x128xf32> to vector<2x128x128xf32>
    %21 = arith.mulf %14, %20 : vector<2x128x128xf32>
    %22 = vector.broadcast %17 : vector<1x1x128xf32> to vector<2x128x128xf32>
    %23 = arith.addf %21, %22 : vector<2x128x128xf32>
    %24 = vector.shape_cast %14 : vector<2x128x128xf32> to vector<256x128xf32>
    %25 = tpu.iota {dimensions = array<i32: 1>} : vector<1x128x1xi32>
    %c1_i32 = arith.constant 1 : i32
    %26 = tpu.dynamic_rotate %24 by %c1_i32 dim 0 : vector<256x128xf32>, i32 -> vector<256x128xf32>
    %27 = vector.shape_cast %26 : vector<256x128xf32> to vector<2x128x128xf32>
    %c1_i32_10 = arith.constant 1 : i32
    %28 = vector.broadcast %c1_i32_10 : i32 to vector<1x128x1xi32>
    %29 = arith.cmpi sge, %25, %28 : vector<1x128x1xi32>
    %cst_11 = arith.constant 0.000000e+00 : f32
    %30 = vector.shape_cast %29 : vector<1x128x1xi1> to vector<1x128x1xi1>
    %31 = vector.broadcast %30 : vector<1x128x1xi1> to vector<2x128x128xi1>
    %32 = vector.broadcast %cst_11 : f32 to vector<2x128x128xf32>
    %33 = arith.select %31, %27, %32 : vector<2x128x128xi1>, vector<2x128x128xf32>
    %34 = vector.extract_strided_slice %15 {offsets = [2, 0], sizes = [1, 128], strides = [1, 1]} : vector<4x128xf32> to vector<1x128xf32>
    %35 = vector.shape_cast %34 : vector<1x128xf32> to vector<1x1x128xf32>
    %36 = vector.broadcast %35 : vector<1x1x128xf32> to vector<2x128x128xf32>
    %37 = arith.mulf %33, %36 : vector<2x128x128xf32>
    %38 = arith.addf %23, %37 : vector<2x128x128xf32>
    %c2_i32 = arith.constant 2 : i32
    %39 = tpu.dynamic_rotate %24 by %c2_i32 dim 0 : vector<256x128xf32>, i32 -> vector<256x128xf32>
    %40 = vector.shape_cast %39 : vector<256x128xf32> to vector<2x128x128xf32>
    %c2_i32_12 = arith.constant 2 : i32
    %41 = vector.broadcast %c2_i32_12 : i32 to vector<1x128x1xi32>
    %42 = arith.cmpi sge, %25, %41 : vector<1x128x1xi32>
    %cst_13 = arith.constant 0.000000e+00 : f32
    %43 = vector.shape_cast %42 : vector<1x128x1xi1> to vector<1x128x1xi1>
    %44 = vector.broadcast %43 : vector<1x128x1xi1> to vector<2x128x128xi1>
    %45 = vector.broadcast %cst_13 : f32 to vector<2x128x128xf32>
    %46 = arith.select %44, %40, %45 : vector<2x128x128xi1>, vector<2x128x128xf32>
    %47 = vector.extract_strided_slice %15 {offsets = [1, 0], sizes = [1, 128], strides = [1, 1]} : vector<4x128xf32> to vector<1x128xf32>
    %48 = vector.shape_cast %47 : vector<1x128xf32> to vector<1x1x128xf32>
    %49 = vector.broadcast %48 : vector<1x1x128xf32> to vector<2x128x128xf32>
    %50 = arith.mulf %46, %49 : vector<2x128x128xf32>
    %51 = arith.addf %38, %50 : vector<2x128x128xf32>
    %c3_i32 = arith.constant 3 : i32
    %52 = tpu.dynamic_rotate %24 by %c3_i32 dim 0 : vector<256x128xf32>, i32 -> vector<256x128xf32>
    %53 = vector.shape_cast %52 : vector<256x128xf32> to vector<2x128x128xf32>
    %c3_i32_14 = arith.constant 3 : i32
    %54 = vector.broadcast %c3_i32_14 : i32 to vector<1x128x1xi32>
    %55 = arith.cmpi sge, %25, %54 : vector<1x128x1xi32>
    %cst_15 = arith.constant 0.000000e+00 : f32
    %56 = vector.shape_cast %55 : vector<1x128x1xi1> to vector<1x128x1xi1>
    %57 = vector.broadcast %56 : vector<1x128x1xi1> to vector<2x128x128xi1>
    %58 = vector.broadcast %cst_15 : f32 to vector<2x128x128xf32>
    %59 = arith.select %57, %53, %58 : vector<2x128x128xi1>, vector<2x128x128xf32>
    %60 = vector.extract_strided_slice %15 {offsets = [0, 0], sizes = [1, 128], strides = [1, 1]} : vector<4x128xf32> to vector<1x128xf32>
    %61 = vector.shape_cast %60 : vector<1x128xf32> to vector<1x1x128xf32>
    %62 = vector.broadcast %61 : vector<1x1x128xf32> to vector<2x128x128xf32>
    %63 = arith.mulf %59, %62 : vector<2x128x128xf32>
    %64 = arith.addf %51, %63 : vector<2x128x128xf32>
    %cst_16 = arith.constant 0.000000e+00 : f32
    %65 = vector.broadcast %cst_16 : f32 to vector<2x128x128xf32>
    %66 = arith.subf %65, %64 : vector<2x128x128xf32>
    %67 = math.exp %66 : vector<2x128x128xf32>
    %cst_17 = arith.constant 1.000000e+00 : f32
    %68 = vector.broadcast %cst_17 : f32 to vector<2x128x128xf32>
    %69 = arith.addf %68, %67 : vector<2x128x128xf32>
    %70 = tpu.reciprocal %69 {approx = true} : vector<2x128x128xf32> -> vector<2x128x128xf32>
    %71 = arith.mulf %64, %70 : vector<2x128x128xf32>
    %72 = vector.shape_cast %71 : vector<2x128x128xf32> to vector<256x128xf32>
    %73 = arith.truncf %72 : vector<256x128xf32> to vector<256x128xbf16>
    %c0_18 = arith.constant 0 : index
    %c0_19 = arith.constant 0 : index
    %74 = vector.load %arg5[%c0_18, %c0_19] : memref<128x512xbf16, #tpu.memory_space<vmem>>, vector<128x512xbf16>
    %cst_20 = arith.constant dense<0.000000e+00> : vector<256x512xf32>
    %75 = tpu.matmul %73, %74, %cst_20 {dimension_numbers = #tpu.dot_dimension_numbers<[1], [0], [0], [1], [0, 0, 1, 1], [], []>} : vector<256x128xbf16>, vector<128x512xbf16>, vector<256x512xf32> -> vector<256x512xf32>
    %c0_21 = arith.constant 0 : index
    %c0_22 = arith.constant 0 : index
    %76 = vector.load %arg6[%c0_21, %c0_22] : memref<1x512xf32, #tpu.memory_space<vmem>>, vector<1x512xf32>
    %77 = vector.broadcast %76 : vector<1x512xf32> to vector<256x512xf32>
    %78 = arith.addf %75, %77 : vector<256x512xf32>
    %79 = vector.shape_cast %78 : vector<256x512xf32> to vector<2x128x512xf32>
    %80 = vector.extract_strided_slice %79 {offsets = [0, 0, 0], sizes = [2, 128, 256], strides = [1, 1, 1]} : vector<2x128x512xf32> to vector<2x128x256xf32>
    %81 = vector.extract_strided_slice %79 {offsets = [0, 0, 256], sizes = [2, 128, 256], strides = [1, 1, 1]} : vector<2x128x512xf32> to vector<2x128x256xf32>
    %82 = math.absf %81 : vector<2x128x256xf32>
    %cst_23 = arith.constant 0.000000e+00 : f32
    %83 = vector.broadcast %cst_23 : f32 to vector<2x128x256xf32>
    %84 = arith.subf %83, %82 : vector<2x128x256xf32>
    %85 = math.exp %84 : vector<2x128x256xf32>
    %cst_24 = arith.constant 1.000000e+00 : f32
    %86 = vector.broadcast %cst_24 : f32 to vector<2x128x256xf32>
    %87 = arith.addf %86, %85 : vector<2x128x256xf32>
    %88 = math.log %87 : vector<2x128x256xf32>
    %cst_25 = arith.constant 0.000000e+00 : f32
    %89 = vector.broadcast %cst_25 : f32 to vector<2x128x256xf32>
    %90 = arith.maximumf %81, %89 : vector<2x128x256xf32>
    %91 = arith.addf %90, %88 : vector<2x128x256xf32>
    %cst_26 = arith.constant 0.000000e+00 : f32
    %92 = vector.broadcast %cst_26 : f32 to vector<2x128x256xf32>
    %93 = arith.subf %92, %91 : vector<2x128x256xf32>
    %cst_27 = arith.constant 0.000000e+00 : f32
    %94 = vector.broadcast %cst_27 : f32 to vector<2x128x256xf32>
    %95 = arith.subf %94, %81 : vector<2x128x256xf32>
    %cst_28 = arith.constant 0.000000e+00 : f32
    %96 = vector.broadcast %cst_28 : f32 to vector<2x128x256xf32>
    %97 = arith.maximumf %95, %96 : vector<2x128x256xf32>
    %98 = arith.addf %97, %88 : vector<2x128x256xf32>
    %cst_29 = arith.constant 0.000000e+00 : f32
    %99 = vector.broadcast %cst_29 : f32 to vector<2x128x256xf32>
    %100 = arith.subf %99, %98 : vector<2x128x256xf32>
    %101 = math.absf %80 : vector<2x128x256xf32>
    %cst_30 = arith.constant 0.000000e+00 : f32
    %102 = vector.broadcast %cst_30 : f32 to vector<2x128x256xf32>
    %103 = arith.subf %102, %101 : vector<2x128x256xf32>
    %104 = math.exp %103 : vector<2x128x256xf32>
    %cst_31 = arith.constant 1.000000e+00 : f32
    %105 = vector.broadcast %cst_31 : f32 to vector<2x128x256xf32>
    %106 = arith.addf %105, %104 : vector<2x128x256xf32>
    %107 = math.log %106 : vector<2x128x256xf32>
    %cst_32 = arith.constant 0.000000e+00 : f32
    %108 = vector.broadcast %cst_32 : f32 to vector<2x128x256xf32>
    %109 = arith.cmpf oge, %80, %108 : vector<2x128x256xf32>
    %cst_33 = arith.constant 0.000000e+00 : f32
    %110 = vector.broadcast %cst_33 : f32 to vector<2x128x256xf32>
    %111 = arith.maximumf %80, %110 : vector<2x128x256xf32>
    %cst_34 = arith.constant 5.000000e-01 : f32
    %112 = vector.broadcast %cst_34 : f32 to vector<2x128x256xf32>
    %113 = arith.addf %111, %112 : vector<2x128x256xf32>
    %114 = math.log %113 : vector<2x128x256xf32>
    %115 = arith.subf %80, %107 : vector<2x128x256xf32>
    %116 = arith.select %109, %114, %115 : vector<2x128x256xi1>, vector<2x128x256xf32>
    %117 = arith.addf %100, %116 : vector<2x128x256xf32>
    %c0_35 = arith.constant 0 : index
    %c0_36 = arith.constant 0 : index
    %118 = vector.load %arg8[%c0_35, %c0_36] : memref<128x128xf32, #tpu.memory_space<vmem>>, vector<128x128xf32>
    %c0_37 = arith.constant 0 : index
    %c0_38 = arith.constant 0 : index
    %119 = vector.load %arg7[%c0_37, %c0_38] : memref<256x128xbf16, #tpu.memory_space<vmem>>, vector<256x128xbf16>
    %cst_39 = arith.constant 0.000000e+00 : f32
    %120 = vector.broadcast %cst_39 : f32 to vector<2x1x256xf32>
    %cst_40 = arith.constant -1.000000e+30 : f32
    %121 = vector.broadcast %cst_40 : f32 to vector<2x1x256xf32>
    %cst_41 = arith.constant 0.000000e+00 : f32
    %122 = vector.broadcast %cst_41 : f32 to vector<2x1x256xf32>
    %123 = vector.extract_strided_slice %93 {offsets = [0, 0, 0], sizes = [2, 64, 256], strides = [1, 1, 1]} : vector<2x128x256xf32> to vector<2x64x256xf32>
    %124 = vector.shape_cast %123 : vector<2x64x256xf32> to vector<128x256xf32>
    %125 = vector.extract_strided_slice %117 {offsets = [0, 0, 0], sizes = [2, 64, 256], strides = [1, 1, 1]} : vector<2x128x256xf32> to vector<2x64x256xf32>
    %cst_42 = arith.constant dense<0.000000e+00> : vector<128x256xf32>
    %126 = tpu.matmul %118, %124, %cst_42 {dimension_numbers = #tpu.dot_dimension_numbers<[1], [0], [0], [1], [0, 0, 1, 1], [], []>} : vector<128x128xf32>, vector<128x256xf32>, vector<128x256xf32> -> vector<128x256xf32>
    %127 = vector.shape_cast %126 : vector<128x256xf32> to vector<2x64x256xf32>
    %128 = vector.broadcast %120 : vector<2x1x256xf32> to vector<2x64x256xf32>
    %129 = arith.addf %127, %128 : vector<2x64x256xf32>
    %130 = arith.subf %125, %129 : vector<2x64x256xf32>
    %cst_43 = arith.constant dense<0xFF800000> : vector<2x256xf32>
    %131 = vector.multi_reduction <maximumf>, %130, %cst_43 [1] : vector<2x64x256xf32> to vector<2x256xf32>
    %132 = vector.shape_cast %131 : vector<2x256xf32> to vector<2x1x256xf32>
    %133 = arith.maximumf %121, %132 : vector<2x1x256xf32>
    %134 = vector.broadcast %133 : vector<2x1x256xf32> to vector<2x64x256xf32>
    %135 = arith.subf %130, %134 : vector<2x64x256xf32>
    %136 = math.exp %135 : vector<2x64x256xf32>
    %137 = vector.shape_cast %136 : vector<2x64x256xf32> to vector<128x256xf32>
    %138 = arith.subf %121, %133 : vector<2x1x256xf32>
    %139 = math.exp %138 : vector<2x1x256xf32>
    %140 = arith.mulf %122, %139 : vector<2x1x256xf32>
    %cst_44 = arith.constant dense<0.000000e+00> : vector<128x256xf32>
    %141 = tpu.matmul %118, %137, %cst_44 {dimension_numbers = #tpu.dot_dimension_numbers<[1], [0], [0], [1], [0, 0, 1, 1], [], []>} : vector<128x128xf32>, vector<128x256xf32>, vector<128x256xf32> -> vector<128x256xf32>
    %142 = vector.shape_cast %141 : vector<128x256xf32> to vector<2x64x256xf32>
    %143 = vector.broadcast %140 : vector<2x1x256xf32> to vector<2x64x256xf32>
    %144 = arith.addf %143, %142 : vector<2x64x256xf32>
    %145 = vector.broadcast %133 : vector<2x1x256xf32> to vector<2x64x256xf32>
    %146 = arith.addf %129, %145 : vector<2x64x256xf32>
    %147 = math.exp %146 : vector<2x64x256xf32>
    %148 = arith.mulf %147, %144 : vector<2x64x256xf32>
    %149 = vector.extract_strided_slice %129 {offsets = [0, 63, 0], sizes = [2, 1, 256], strides = [1, 1, 1]} : vector<2x64x256xf32> to vector<2x1x256xf32>
    %150 = vector.extract_strided_slice %144 {offsets = [0, 63, 0], sizes = [2, 1, 256], strides = [1, 1, 1]} : vector<2x64x256xf32> to vector<2x1x256xf32>
    %151 = vector.shape_cast %148 : vector<2x64x256xf32> to vector<128x256xf32>
    %152 = arith.truncf %151 : vector<128x256xf32> to vector<128x256xbf16>
    %cst_45 = arith.constant dense<0.000000e+00> : vector<128x128xf32>
    %153 = tpu.matmul %152, %119, %cst_45 {dimension_numbers = #tpu.dot_dimension_numbers<[1], [0], [0], [1], [0, 0, 1, 1], [], []>} : vector<128x256xbf16>, vector<256x128xbf16>, vector<128x128xf32> -> vector<128x128xf32>
    %154 = vector.shape_cast %153 : vector<128x128xf32> to vector<2x64x128xf32>
    %155 = vector.extract_strided_slice %0 {offsets = [0, 0, 0], sizes = [2, 64, 128], strides = [1, 1, 1]} : vector<2x128x128xf32> to vector<2x64x128xf32>
    %156 = arith.addf %154, %155 : vector<2x64x128xf32>
    %c0_46 = arith.constant 0 : index
    %c0_47 = arith.constant 0 : index
    %c0_48 = arith.constant 0 : index
    %157 = vector.load %arg9[%c0_46, %c0_47, %c0_48] : memref<2x128x128xf32, #tpu.memory_space<vmem>>, vector<2x64x128xf32>
    tpu.vector_store %arg9[%c0_46, %c0_47, %c0_48], %156 {strides = array<i32>} : memref<2x128x128xf32, #tpu.memory_space<vmem>>, vector<2x64x128xf32>,
    %158 = vector.extract_strided_slice %93 {offsets = [0, 64, 0], sizes = [2, 64, 256], strides = [1, 1, 1]} : vector<2x128x256xf32> to vector<2x64x256xf32>
    %159 = vector.shape_cast %158 : vector<2x64x256xf32> to vector<128x256xf32>
    %160 = vector.extract_strided_slice %117 {offsets = [0, 64, 0], sizes = [2, 64, 256], strides = [1, 1, 1]} : vector<2x128x256xf32> to vector<2x64x256xf32>
    %cst_49 = arith.constant dense<0.000000e+00> : vector<128x256xf32>
    %161 = tpu.matmul %118, %159, %cst_49 {dimension_numbers = #tpu.dot_dimension_numbers<[1], [0], [0], [1], [0, 0, 1, 1], [], []>} : vector<128x128xf32>, vector<128x256xf32>, vector<128x256xf32> -> vector<128x256xf32>
    %162 = vector.shape_cast %161 : vector<128x256xf32> to vector<2x64x256xf32>
    %163 = vector.broadcast %149 : vector<2x1x256xf32> to vector<2x64x256xf32>
    %164 = arith.addf %162, %163 : vector<2x64x256xf32>
    %165 = arith.subf %160, %164 : vector<2x64x256xf32>
    %cst_50 = arith.constant dense<0xFF800000> : vector<2x256xf32>
    %166 = vector.multi_reduction <maximumf>, %165, %cst_50 [1] : vector<2x64x256xf32> to vector<2x256xf32>
    %167 = vector.shape_cast %166 : vector<2x256xf32> to vector<2x1x256xf32>
    %168 = arith.maximumf %133, %167 : vector<2x1x256xf32>
    %169 = vector.broadcast %168 : vector<2x1x256xf32> to vector<2x64x256xf32>
    %170 = arith.subf %165, %169 : vector<2x64x256xf32>
    %171 = math.exp %170 : vector<2x64x256xf32>
    %172 = vector.shape_cast %171 : vector<2x64x256xf32> to vector<128x256xf32>
    %173 = arith.subf %133, %168 : vector<2x1x256xf32>
    %174 = math.exp %173 : vector<2x1x256xf32>
    %175 = arith.mulf %150, %174 : vector<2x1x256xf32>
    %cst_51 = arith.constant dense<0.000000e+00> : vector<128x256xf32>
    %176 = tpu.matmul %118, %172, %cst_51 {dimension_numbers = #tpu.dot_dimension_numbers<[1], [0], [0], [1], [0, 0, 1, 1], [], []>} : vector<128x128xf32>, vector<128x256xf32>, vector<128x256xf32> -> vector<128x256xf32>
    %177 = vector.shape_cast %176 : vector<128x256xf32> to vector<2x64x256xf32>
    %178 = vector.broadcast %175 : vector<2x1x256xf32> to vector<2x64x256xf32>
    %179 = arith.addf %178, %177 : vector<2x64x256xf32>
    %180 = vector.broadcast %168 : vector<2x1x256xf32> to vector<2x64x256xf32>
    %181 = arith.addf %164, %180 : vector<2x64x256xf32>
    %182 = math.exp %181 : vector<2x64x256xf32>
    %183 = arith.mulf %182, %179 : vector<2x64x256xf32>
    %184 = vector.shape_cast %183 : vector<2x64x256xf32> to vector<128x256xf32>
    %185 = arith.truncf %184 : vector<128x256xf32> to vector<128x256xbf16>
    %cst_52 = arith.constant dense<0.000000e+00> : vector<128x128xf32>
    %186 = tpu.matmul %185, %119, %cst_52 {dimension_numbers = #tpu.dot_dimension_numbers<[1], [0], [0], [1], [0, 0, 1, 1], [], []>} : vector<128x256xbf16>, vector<256x128xbf16>, vector<128x128xf32> -> vector<128x128xf32>
    %187 = vector.shape_cast %186 : vector<128x128xf32> to vector<2x64x128xf32>
    %188 = vector.extract_strided_slice %0 {offsets = [0, 64, 0], sizes = [2, 64, 128], strides = [1, 1, 1]} : vector<2x128x128xf32> to vector<2x64x128xf32>
    %189 = arith.addf %187, %188 : vector<2x64x128xf32>
    %c0_53 = arith.constant 0 : index
    %c64 = arith.constant 64 : index
    %c0_54 = arith.constant 0 : index
    %190 = vector.load %arg9[%c0_53, %c64, %c0_54] : memref<2x128x128xf32, #tpu.memory_space<vmem>>, vector<2x64x128xf32>
    tpu.vector_store %arg9[%c0_53, %c64, %c0_54], %189 {strides = array<i32>} : memref<2x128x128xf32, #tpu.memory_space<vmem>>, vector<2x64x128xf32>,
    return
  }
  func.func @transform_0(%arg0: i32) -> (i32, i32, i32) {
    %c0_i32 = arith.constant 0 : i32
    %c0_i32_0 = arith.constant 0 : i32
    %c0_i32_1 = arith.constant 0 : i32
    return %arg0, %c0_i32, %c0_i32_0 : i32, i32, i32
  }
  func.func @transform_1(%arg0: i32) -> (i32, i32) {
    %c0_i32 = arith.constant 0 : i32
    %c0_i32_0 = arith.constant 0 : i32
    %c0_i32_1 = arith.constant 0 : i32
    return %c0_i32, %c0_i32_0 : i32, i32
  }
  func.func @transform_2(%arg0: i32) -> (i32, i32) {
    %c0_i32 = arith.constant 0 : i32
    %c0_i32_0 = arith.constant 0 : i32
    %c0_i32_1 = arith.constant 0 : i32
    return %c0_i32, %c0_i32_0 : i32, i32
  }
  func.func @transform_3(%arg0: i32) -> (i32, i32) {
    %c0_i32 = arith.constant 0 : i32
    %c0_i32_0 = arith.constant 0 : i32
    %c0_i32_1 = arith.constant 0 : i32
    return %c0_i32, %c0_i32_0 : i32, i32
  }
  func.func @transform_4(%arg0: i32) -> (i32, i32) {
    %c0_i32 = arith.constant 0 : i32
    %c0_i32_0 = arith.constant 0 : i32
    %c0_i32_1 = arith.constant 0 : i32
    return %c0_i32, %c0_i32_0 : i32, i32
  }
  func.func @transform_5(%arg0: i32) -> (i32, i32) {
    %c0_i32 = arith.constant 0 : i32
    %c0_i32_0 = arith.constant 0 : i32
    %c0_i32_1 = arith.constant 0 : i32
    return %c0_i32, %c0_i32_0 : i32, i32
  }
  func.func @transform_6(%arg0: i32) -> (i32, i32) {
    %c0_i32 = arith.constant 0 : i32
    %c0_i32_0 = arith.constant 0 : i32
    %c0_i32_1 = arith.constant 0 : i32
    return %c0_i32, %c0_i32_0 : i32, i32
  }
  func.func @transform_7(%arg0: i32) -> (i32, i32) {
    %c0_i32 = arith.constant 0 : i32
    %c0_i32_0 = arith.constant 0 : i32
    %c0_i32_1 = arith.constant 0 : i32
    return %c0_i32, %c0_i32_0 : i32, i32
  }
  func.func @transform_8(%arg0: i32) -> (i32, i32, i32) {
    %c0_i32 = arith.constant 0 : i32
    %c0_i32_0 = arith.constant 0 : i32
    %c0_i32_1 = arith.constant 0 : i32
    return %arg0, %c0_i32, %c0_i32_0 : i32, i32, i32
  }
}

</mosaic_0001>

<llo_original>
// kernel: tpu_custom_call.1
$region0: #{tpu_custom_call.1}
  #allocation0 [shape = 'u32[]', space=smem, size = 0x4, offset = 0x4, fixed_abs, tag = 'smem constant byte address 0x4 - core index']
  #allocation1 [shape = 'u32[144,128]{1,0:T(1,128)}', space=vmem, size = 0x12000, scoped, tag = 'internal scratch']
  %s0 = inlined_call_operand.hbm [shape: f32[4,128,128], index: 0, kind: input, shape index: {}]
  %s1 = inlined_call_operand.vmem [shape: f32[1,128], index: 1, kind: input, shape index: {}]
  %s2 = inlined_call_operand.vmem [shape: f32[4,128], index: 2, kind: input, shape index: {}]
  %s3 = inlined_call_operand.vmem [shape: f32[1,128], index: 3, kind: input, shape index: {}]
  %s4 = inlined_call_operand.hbm [shape: bf16[128,512], index: 4, kind: input, shape index: {}]
  %s5 = inlined_call_operand.vmem [shape: f32[1,512], index: 5, kind: input, shape index: {}]
  %s6 = inlined_call_operand.hbm [shape: bf16[256,128], index: 6, kind: input, shape index: {}]
  %s7 = inlined_call_operand.hbm [shape: f32[128,128], index: 7, kind: input, shape index: {}]
  %s8 = inlined_call_operand.hbm [shape: f32[4,128,128], index: 8, kind: output, shape index: {}]
  %s9 = sld [smem:[#allocation0]]
  $region81: #{tpu_custom_call.1} parent=0
    _
  %s11 = ssub.s32 1, %s9
  %s12 = scalar_select 0, %s11, %s9
  $region1: #{tpu_custom_call.1} parent=0
    #allocation2 [shape = 'u8[262144]{0}', space=vmem, size = 0x40000, scoped, tag = 'input window, operand 0']
    #allocation3 [shape = 's32[2]{0}', space=sflag, size = 0x8, scoped, tag = 'scoped memory for tpu_custom_call.1']
    #allocation4 [shape = 's32[2]{0}', space=sflag, size = 0x8, scoped, tag = 'scoped memory for tpu_custom_call.1']
    #allocation5 [shape = 'u8[131072]{0}', space=vmem, size = 0x20000, scoped, tag = 'input window, operand 4, single buffered']
    #allocation6 [shape = 's32[1]{0}', space=sflag, size = 0x4, scoped, tag = 'scoped memory for tpu_custom_call.1']
    #allocation7 [shape = 'u8[65536]{0}', space=vmem, size = 0x10000, scoped, tag = 'input window, operand 6, single buffered']
    #allocation8 [shape = 'u8[65536]{0}', space=vmem, size = 0x10000, scoped, tag = 'input window, operand 7, single buffered']
    #allocation9 [shape = 's32[1]{0}', space=sflag, size = 0x4, scoped, tag = 'scoped memory for tpu_custom_call.1']
    #allocation10 [shape = 'u8[262144]{0}', space=vmem, size = 0x40000, scoped, tag = 'output window, operand 0']
    %13 = vsyncpa [#allocation3], 0
    %s14 = scalar_lea.sflag [#allocation3], 1
    %15 = vsyncpa %s14, 0
    %16 = vsyncpa [#allocation6], 0
    %17 = vsyncpa [#allocation9], 0
    %18 = vsyncpa [#allocation4], 0
    %s19 = scalar_lea.sflag [#allocation4], 1
    %20 = vsyncpa %s19, 0
    loop: start=0, step=1, limit=4
    $region2: #{tpu_custom_call.1} parent=1 // loop_pre_header
      _
    $region3: #{tpu_custom_call.1} parent=1 // loop_header
      %s22 = sphi 0, %s26
      %p23 = scmp.ge.s32.totalorder %s22, 4
      %s32 = sphi 0, %s34
      %s35 = sphi 0, %s32
      %s36 = sphi 0, %s35
      %s52 = sphi 0, %s36
      %s56 = sphi 0, %s56
      %s58 = sphi 0, %s56
      %s59 = sphi 0, %s58
      %s73 = sphi 0, %s59
      %s77 = sphi 0, %s77
      %s79 = sphi 0, %s77
      %s80 = sphi 0, %s79
      %s94 = sphi 0, %s80
      %s98 = sphi 0, %s98
      %s100 = sphi 0, %s98
      %s101 = sphi 0, %s100
      %s115 = sphi 0, %s101
      %s119 = sphi 0, %s119
      %s121 = sphi 0, %s119
      %s122 = sphi 0, %s121
      %s136 = sphi 0, %s122
      %s140 = sphi 0, %s140
      %s142 = sphi 0, %s140
      %s143 = sphi 0, %s142
      %s157 = sphi 0, %s143
      %s161 = sphi 0, %s161
      %s163 = sphi 0, %s161
      %s164 = sphi 0, %s163
      %s178 = sphi 0, %s164
      %s182 = sphi 0, %s182
      %s184 = sphi 0, %s182
      %s185 = sphi 0, %s184
      %s199 = sphi 0, %s185
      %s205 = sphi 0, %s207
      %s208 = sphi 0, %s205
      %s209 = sphi 0, %s208
      %s225 = sphi 0, %s209
    $region4: #{tpu_custom_call.1} parent=1 // loop_header_branch
      %25 = sbr.rel (%p23) target = $region8
    $region5: #{tpu_custom_call.1} parent=1 // loop_body
      %s27 = ssub.s32 %s22, 1
      %s28 = ssub.s32 %s22, 2
      %s29 = sadd.s32 %s22, 1
      %s30 = ssub.s32 %s22, %s29
      %p31 = scmp.eq.s32.totalorder %s30, 0
      %s33 = sadd.s32 %s32, 1
      %s34 = scalar_select %p31, %s32, %s33
      %p37 = pneg %p31
      %p38 = scmp.eq.s32.totalorder %s22, 1
      %p39 = por %p37, %p38
      %p40 = scmp.ne.s32.totalorder %s32, %s35
      %p41 = scmp.eq.s32.totalorder %s22, 0
      %p42 = por %p40, %p41
      %p43 = scmp.ne.s32.totalorder %s32, %s35
      %p44 = scmp.eq.s32.totalorder %s27, 1
      %p45 = por %p43, %p44
      %p46 = scmp.ne.s32.totalorder %s35, %s36
      %p47 = scmp.eq.s32.totalorder %s27, 0
      %p48 = por %p46, %p47
      %p49 = scmp.ne.s32.totalorder %s35, %s36
      %p50 = scmp.eq.s32.totalorder %s28, 1
      %p51 = por %p49, %p50
      %p53 = scmp.ne.s32.totalorder %s36, %s52
      %p54 = scmp.eq.s32.totalorder %s28, 0
      %p55 = por %p53, %p54
      %s57 = sadd.s32 %s56, 1
      %p60 = scmp.eq.s32.totalorder %s22, 1
      %p61 = scmp.ne.s32.totalorder %s56, %s58
      %p62 = scmp.eq.s32.totalorder %s22, 0
      %p63 = por %p61, %p62
      %p64 = scmp.ne.s32.totalorder %s56, %s58
      %p65 = scmp.eq.s32.totalorder %s27, 1
      %p66 = por %p64, %p65
      %p67 = scmp.ne.s32.totalorder %s58, %s59
      %p68 = scmp.eq.s32.totalorder %s27, 0
      %p69 = por %p67, %p68
      %p70 = scmp.ne.s32.totalorder %s58, %s59
      %p71 = scmp.eq.s32.totalorder %s28, 1
      %p72 = por %p70, %p71
      %p74 = scmp.ne.s32.totalorder %s59, %s73
      %p75 = scmp.eq.s32.totalorder %s28, 0
      %p76 = por %p74, %p75
      %s78 = sadd.s32 %s77, 1
      %p81 = scmp.eq.s32.totalorder %s22, 1
      %p82 = scmp.ne.s32.totalorder %s77, %s79
      %p83 = scmp.eq.s32.totalorder %s22, 0
      %p84 = por %p82, %p83
      %p85 = scmp.ne.s32.totalorder %s77, %s79
      %p86 = scmp.eq.s32.totalorder %s27, 1
      %p87 = por %p85, %p86
      %p88 = scmp.ne.s32.totalorder %s79, %s80
      %p89 = scmp.eq.s32.totalorder %s27, 0
      %p90 = por %p88, %p89
      %p91 = scmp.ne.s32.totalorder %s79, %s80
      %p92 = scmp.eq.s32.totalorder %s28, 1
      %p93 = por %p91, %p92
      %p95 = scmp.ne.s32.totalorder %s80, %s94
      %p96 = scmp.eq.s32.totalorder %s28, 0
      %p97 = por %p95, %p96
      %s99 = sadd.s32 %s98, 1
      %p102 = scmp.eq.s32.totalorder %s22, 1
      %p103 = scmp.ne.s32.totalorder %s98, %s100
      %p104 = scmp.eq.s32.totalorder %s22, 0
      %p105 = por %p103, %p104
      %p106 = scmp.ne.s32.totalorder %s98, %s100
      %p107 = scmp.eq.s32.totalorder %s27, 1
      %p108 = por %p106, %p107
      %p109 = scmp.ne.s32.totalorder %s100, %s101
      %p110 = scmp.eq.s32.totalorder %s27, 0
      %p111 = por %p109, %p110
      %p112 = scmp.ne.s32.totalorder %s100, %s101
      %p113 = scmp.eq.s32.totalorder %s28, 1
      %p114 = por %p112, %p113
      %p116 = scmp.ne.s32.totalorder %s101, %s115
      %p117 = scmp.eq.s32.totalorder %s28, 0
      %p118 = por %p116, %p117
      %s120 = sadd.s32 %s119, 1
      %p123 = scmp.eq.s32.totalorder %s22, 1
      %p124 = scmp.ne.s32.totalorder %s119, %s121
      %p125 = scmp.eq.s32.totalorder %s22, 0
      %p126 = por %p124, %p125
      %p127 = scmp.ne.s32.totalorder %s119, %s121
      %p128 = scmp.eq.s32.totalorder %s27, 1
      %p129 = por %p127, %p128
      %p130 = scmp.ne.s32.totalorder %s121, %s122
      %p131 = scmp.eq.s32.totalorder %s27, 0
      %p132 = por %p130, %p131
      %p133 = scmp.ne.s32.totalorder %s121, %s122
      %p134 = scmp.eq.s32.totalorder %s28, 1
      %p135 = por %p133, %p134
      %p137 = scmp.ne.s32.totalorder %s122, %s136
      %p138 = scmp.eq.s32.totalorder %s28, 0
      %p139 = por %p137, %p138
      %s141 = sadd.s32 %s140, 1
      %p144 = scmp.eq.s32.totalorder %s22, 1
      %p145 = scmp.ne.s32.totalorder %s140, %s142
      %p146 = scmp.eq.s32.totalorder %s22, 0
      %p147 = por %p145, %p146
      %p148 = scmp.ne.s32.totalorder %s140, %s142
      %p149 = scmp.eq.s32.totalorder %s27, 1
      %p150 = por %p148, %p149
      %p151 = scmp.ne.s32.totalorder %s142, %s143
      %p152 = scmp.eq.s32.totalorder %s27, 0
      %p153 = por %p151, %p152
      %p154 = scmp.ne.s32.totalorder %s142, %s143
      %p155 = scmp.eq.s32.totalorder %s28, 1
      %p156 = por %p154, %p155
      %p158 = scmp.ne.s32.totalorder %s143, %s157
      %p159 = scmp.eq.s32.totalorder %s28, 0
      %p160 = por %p158, %p159
      %s162 = sadd.s32 %s161, 1
      %p165 = scmp.eq.s32.totalorder %s22, 1
      %p166 = scmp.ne.s32.totalorder %s161, %s163
      %p167 = scmp.eq.s32.totalorder %s22, 0
      %p168 = por %p166, %p167
      %p169 = scmp.ne.s32.totalorder %s161, %s163
      %p170 = scmp.eq.s32.totalorder %s27, 1
      %p171 = por %p169, %p170
      %p172 = scmp.ne.s32.totalorder %s163, %s164
      %p173 = scmp.eq.s32.totalorder %s27, 0
      %p174 = por %p172, %p173
      %p175 = scmp.ne.s32.totalorder %s163, %s164
      %p176 = scmp.eq.s32.totalorder %s28, 1
      %p177 = por %p175, %p176
      %p179 = scmp.ne.s32.totalorder %s164, %s178
      %p180 = scmp.eq.s32.totalorder %s28, 0
      %p181 = por %p179, %p180
      %s183 = sadd.s32 %s182, 1
      %p186 = scmp.eq.s32.totalorder %s22, 1
      %p187 = scmp.ne.s32.totalorder %s182, %s184
      %p188 = scmp.eq.s32.totalorder %s22, 0
      %p189 = por %p187, %p188
      %p190 = scmp.ne.s32.totalorder %s182, %s184
      %p191 = scmp.eq.s32.totalorder %s27, 1
      %p192 = por %p190, %p191
      %p193 = scmp.ne.s32.totalorder %s184, %s185
      %p194 = scmp.eq.s32.totalorder %s27, 0
      %p195 = por %p193, %p194
      %p196 = scmp.ne.s32.totalorder %s184, %s185
      %p197 = scmp.eq.s32.totalorder %s28, 1
      %p198 = por %p196, %p197
      %p200 = scmp.ne.s32.totalorder %s185, %s199
      %p201 = scmp.eq.s32.totalorder %s28, 0
      %p202 = por %p200, %p201
      %s203 = ssub.s32 %s22, %s29
      %p204 = scmp.eq.s32.totalorder %s203, 0
      %s206 = sadd.s32 %s205, 1
      %s207 = scalar_select %p204, %s205, %s206
      %p210 = pneg %p204
      %p211 = scmp.eq.s32.totalorder %s22, 1
      %p212 = por %p210, %p211
      %p213 = scmp.ne.s32.totalorder %s205, %s208
      %p214 = scmp.eq.s32.totalorder %s22, 0
      %p215 = por %p213, %p214
      %p216 = scmp.ne.s32.totalorder %s205, %s208
      %p217 = scmp.eq.s32.totalorder %s27, 1
      %p218 = por %p216, %p217
      %p219 = scmp.ne.s32.totalorder %s208, %s209
      %p220 = scmp.eq.s32.totalorder %s27, 0
      %p221 = por %p219, %p220
      %p222 = scmp.ne.s32.totalorder %s208, %s209
      %p223 = scmp.eq.s32.totalorder %s28, 1
      %p224 = por %p222, %p223
      %p226 = scmp.ne.s32.totalorder %s209, %s225
      %p227 = scmp.eq.s32.totalorder %s28, 0
      %p228 = por %p226, %p227
      %p229 = scmp.le.s32.totalorder 1, %s22
      %p230 = scmp.lt.s32.totalorder %s22, 3
      %p231 = pnand %p229, %p230
      %p232 = pneg %p231
      // Predicated region
      $region9: #{tpu_custom_call.1} parent=5 // pred_check
        _
      $region10: #{tpu_custom_call.1} parent=5 // pred_check_branch
        %234 = sbr.rel (%p231) target = $region12
      $region11: #{tpu_custom_call.1} parent=5 // pred_region
        %s235 = ssub.s32 %s22, 1
        // Predicated region
        $region13: #{tpu_custom_call.1} parent=11 // pred_check
          %p236 = pneg %p69
        $region14: #{tpu_custom_call.1} parent=11 // pred_check_branch
          %238 = sbr.rel (%p236) target = $region16
        $region15: #{tpu_custom_call.1} parent=11 // pred_region
          _
        $region16: #{tpu_custom_call.1} parent=11 // pred_fallthru
          _
        // Predicated region
        $region17: #{tpu_custom_call.1} parent=11 // pred_check
          %p239 = pneg %p90
        $region18: #{tpu_custom_call.1} parent=11 // pred_check_branch
          %241 = sbr.rel (%p239) target = $region20
        $region19: #{tpu_custom_call.1} parent=11 // pred_region
          _
        $region20: #{tpu_custom_call.1} parent=11 // pred_fallthru
          _
        // Predicated region
        $region21: #{tpu_custom_call.1} parent=11 // pred_check
          %p242 = pneg %p111
        $region22: #{tpu_custom_call.1} parent=11 // pred_check_branch
          %244 = sbr.rel (%p242) target = $region24
        $region23: #{tpu_custom_call.1} parent=11 // pred_region
          _
        $region24: #{tpu_custom_call.1} parent=11 // pred_fallthru
          _
        // Predicated region
        $region25: #{tpu_custom_call.1} parent=11 // pred_check
          %p245 = pneg %p132
        $region26: #{tpu_custom_call.1} parent=11 // pred_check_branch
          %247 = sbr.rel (%p245) target = $region28
        $region27: #{tpu_custom_call.1} parent=11 // pred_region
          %s249 = ssub.s32 4096, 4096
          %250 = vsyncadd [#allocation6], %s249
          %s251 = sshll.u32 [#allocation5], 4
          %s252 = int_to_ptr.vmem [resolvable:$true] %s251
          %257 = dma.hbm_to_vmem [thread:$0]  %s4, 4096, %s252, [#allocation6], 256, 256, 16
        $region28: #{tpu_custom_call.1} parent=11 // pred_fallthru
          _
        // Predicated region
        $region29: #{tpu_custom_call.1} parent=11 // pred_check
          %p258 = pneg %p153
        $region30: #{tpu_custom_call.1} parent=11 // pred_check_branch
          %260 = sbr.rel (%p258) target = $region32
        $region31: #{tpu_custom_call.1} parent=11 // pred_region
          _
        $region32: #{tpu_custom_call.1} parent=11 // pred_fallthru
          _
        // Predicated region
        $region33: #{tpu_custom_call.1} parent=11 // pred_check
          %p261 = pneg %p174
        $region34: #{tpu_custom_call.1} parent=11 // pred_check_branch
          %263 = sbr.rel (%p261) target = $region36
        $region35: #{tpu_custom_call.1} parent=11 // pred_region
          %s265 = ssub.s32 2048, 2048
          %266 = vsyncadd [#allocation6], %s265
          %s267 = sshll.u32 [#allocation7], 4
          %s268 = int_to_ptr.vmem [resolvable:$true] %s267
          %273 = dma.hbm_to_vmem [thread:$0]  %s6, 2048, %s268, [#allocation6], 64, 64, 4
        $region36: #{tpu_custom_call.1} parent=11 // pred_fallthru
          _
        // Predicated region
        $region37: #{tpu_custom_call.1} parent=11 // pred_check
          %p274 = pneg %p195
        $region38: #{tpu_custom_call.1} parent=11 // pred_check_branch
          %276 = sbr.rel (%p274) target = $region40
        $region39: #{tpu_custom_call.1} parent=11 // pred_region
          %s278 = ssub.s32 2048, 2048
          %279 = vsyncadd [#allocation9], %s278
          %s280 = sshll.u32 [#allocation8], 4
          %s281 = int_to_ptr.vmem [resolvable:$true] %s280
          %286 = dma.hbm_to_vmem [thread:$0]  %s7, 2048, %s281, [#allocation9], 128, 128, 8
        $region40: #{tpu_custom_call.1} parent=11 // pred_fallthru
          _
      $region12: #{tpu_custom_call.1} parent=5 // pred_fallthru
        _
      %p287 = scmp.lt.s32.totalorder %s22, 2
      // Predicated region
      $region41: #{tpu_custom_call.1} parent=5 // pred_check
        %p288 = pneg %p287
      $region42: #{tpu_custom_call.1} parent=5 // pred_check_branch
        %290 = sbr.rel (%p288) target = $region44
      $region43: #{tpu_custom_call.1} parent=5 // pred_region
        // Predicated region
        $region45: #{tpu_custom_call.1} parent=43 // pred_check
          %p291 = pneg %p42
        $region46: #{tpu_custom_call.1} parent=43 // pred_check_branch
          %293 = sbr.rel (%p291) target = $region48
        $region47: #{tpu_custom_call.1} parent=43 // pred_region
          %s294 = sand.u32 %s32, 1
          %s295 = scalar_lea.sflag [#allocation3], %s294
          %s296 = sand.u32 %s32, 1
          %s297 = smul.addr %s296, 256
          %s298 = scalar_lea.vmem [#allocation2], %s297
          %s299 = smul.u32 2, %s22
          %s301 = ssub.s32 4096, 4096
          %302 = vsyncadd %s295, %s301
          %s303 = smul.addr %s299, 16
          %s304 = smul.addr %s303, 128
          %s305 = scalar_lea.hbm %s0, %s304
          %s306 = sshll.u32 %s298, 4
          %s307 = int_to_ptr.vmem [resolvable:$true] %s306
          %312 = dma.hbm_to_vmem [thread:$0]  %s305, 4096, %s307, %s295, 128, 128, 8
        $region48: #{tpu_custom_call.1} parent=43 // pred_fallthru
          _
      $region44: #{tpu_custom_call.1} parent=5 // pred_fallthru
        _
      %p313 = scmp.le.s32.totalorder 1, %s22
      %p314 = scmp.lt.s32.totalorder %s22, 3
      %p315 = pnand %p313, %p314
      %p316 = pneg %p315
      // Predicated region
      $region49: #{tpu_custom_call.1} parent=5 // pred_check
        _
      $region50: #{tpu_custom_call.1} parent=5 // pred_check_branch
        %318 = sbr.rel (%p315) target = $region52
      $region51: #{tpu_custom_call.1} parent=5 // pred_region
        %s319 = ssub.s32 %s22, 1
        %s320 = sand.u32 %s35, 1
        %s321 = scalar_lea.sflag [#allocation3], %s320
        %s322 = sand.u32 %s35, 1
        %s323 = smul.addr %s322, 256
        %s324 = scalar_lea.vmem [#allocation2], %s323
        // Predicated region
        $region53: #{tpu_custom_call.1} parent=51 // pred_check
          %p325 = pneg %p48
        $region54: #{tpu_custom_call.1} parent=51 // pred_check_branch
          %327 = sbr.rel (%p325) target = $region56
        $region55: #{tpu_custom_call.1} parent=51 // pred_region
          %328 = dma.done %s321, 4096
        $region56: #{tpu_custom_call.1} parent=51 // pred_fallthru
          _
        // Predicated region
        $region57: #{tpu_custom_call.1} parent=51 // pred_check
          %p329 = pneg %p132
        $region58: #{tpu_custom_call.1} parent=51 // pred_check_branch
          %331 = sbr.rel (%p329) target = $region60
        $region59: #{tpu_custom_call.1} parent=51 // pred_region
          %332 = dma.done [#allocation6], 4096
        $region60: #{tpu_custom_call.1} parent=51 // pred_fallthru
          _
        // Predicated region
        $region61: #{tpu_custom_call.1} parent=51 // pred_check
          %p333 = pneg %p174
        $region62: #{tpu_custom_call.1} parent=51 // pred_check_branch
          %335 = sbr.rel (%p333) target = $region64
        $region63: #{tpu_custom_call.1} parent=51 // pred_region
          %336 = dma.done [#allocation6], 2048
        $region64: #{tpu_custom_call.1} parent=51 // pred_fallthru
          _
        // Predicated region
        $region65: #{tpu_custom_call.1} parent=51 // pred_check
          %p337 = pneg %p195
        $region66: #{tpu_custom_call.1} parent=51 // pred_check_branch
          %339 = sbr.rel (%p337) target = $region68
        $region67: #{tpu_custom_call.1} parent=51 // pred_region
          %340 = dma.done [#allocation9], 2048
        $region68: #{tpu_custom_call.1} parent=51 // pred_fallthru
          _
        %s341 = sand.u32 %s35, 1
        %s342 = scalar_lea.sflag [#allocation3], %s341
        %s343 = sand.u32 %s35, 1
        %s344 = smul.addr %s343, 256
        %s345 = scalar_lea.vmem [#allocation2], %s344
        %p346 = pneg %p48
        %p347 = pneg %p45
        %p348 = pneg %p69
        %p349 = pneg %p66
        %p350 = pneg %p90
        %p351 = pneg %p87
        %p352 = pneg %p111
        %p353 = pneg %p108
        %p354 = pneg %p132
        %p355 = pneg %p129
        %p356 = pneg %p153
        %p357 = pneg %p150
        %p358 = pneg %p174
        %p359 = pneg %p171
        %p360 = pneg %p195
        %p361 = pneg %p192
        %p362 = pneg %p221
        %p363 = pneg %p218
        %s364 = sand.u32 %s208, 1
        %s365 = scalar_lea.sflag [#allocation4], %s364
        %s366 = sand.u32 %s208, 1
        %s367 = smul.addr %s366, 256
        %s368 = scalar_lea.vmem [#allocation10], %s367
        %s369 = smul.u32 2, %s27
        %s370 = smul.u32 2, %s27
        %v372 = vld [vmem:[%s324] sm:$0xff]
        %v373 = vld [vmem:[%s324 + $0x8] sm:$0xff]
        %v374 = vld [vmem:[%s324 + $0x10] sm:$0xff]
        %v375 = vld [vmem:[%s324 + $0x18] sm:$0xff]
        %v376 = vld [vmem:[%s324 + $0x20] sm:$0xff]
        %v377 = vld [vmem:[%s324 + $0x28] sm:$0xff]
        %v378 = vld [vmem:[%s324 + $0x30] sm:$0xff]
        %v379 = vld [vmem:[%s324 + $0x38] sm:$0xff]
        %v380 = vld [vmem:[%s324 + $0x40] sm:$0xff]
        %v381 = vld [vmem:[%s324 + $0x48] sm:$0xff]
        %v382 = vld [vmem:[%s324 + $0x50] sm:$0xff]
        %v383 = vld [vmem:[%s324 + $0x58] sm:$0xff]
        %v384 = vld [vmem:[%s324 + $0x60] sm:$0xff]
        %v385 = vld [vmem:[%s324 + $0x68] sm:$0xff]
        %v386 = vld [vmem:[%s324 + $0x70] sm:$0xff]
        %v387 = vld [vmem:[%s324 + $0x78] sm:$0xff]
        %v388 = vld [vmem:[%s324 + $0x80] sm:$0xff]
        %v389 = vld [vmem:[%s324 + $0x88] sm:$0xff]
        %v390 = vld [vmem:[%s324 + $0x90] sm:$0xff]
        %v391 = vld [vmem:[%s324 + $0x98] sm:$0xff]
        %v392 = vld [vmem:[%s324 + $0xa0] sm:$0xff]
        %v393 = vld [vmem:[%s324 + $0xa8] sm:$0xff]
        %v394 = vld [vmem:[%s324 + $0xb0] sm:$0xff]
        %v395 = vld [vmem:[%s324 + $0xb8] sm:$0xff]
        %v396 = vld [vmem:[%s324 + $0xc0] sm:$0xff]
        %v397 = vld [vmem:[%s324 + $0xc8] sm:$0xff]
        %v398 = vld [vmem:[%s324 + $0xd0] sm:$0xff]
        %v399 = vld [vmem:[%s324 + $0xd8] sm:$0xff]
        %v400 = vld [vmem:[%s324 + $0xe0] sm:$0xff]
        %v401 = vld [vmem:[%s324 + $0xe8] sm:$0xff]
        %v402 = vld [vmem:[%s324 + $0xf0] sm:$0xff]
        %v403 = vld [vmem:[%s324 + $0xf8] sm:$0xff]
        %v404 = vmul.f32 %v372, %v372
        %v405 = vmul.f32 %v373, %v373
        %v406 = vmul.f32 %v374, %v374
        %v407 = vmul.f32 %v375, %v375
        %v408 = vmul.f32 %v376, %v376
        %v409 = vmul.f32 %v377, %v377
        %v410 = vmul.f32 %v378, %v378
        %v411 = vmul.f32 %v379, %v379
        %v412 = vmul.f32 %v380, %v380
        %v413 = vmul.f32 %v381, %v381
        %v414 = vmul.f32 %v382, %v382
        %v415 = vmul.f32 %v383, %v383
        %v416 = vmul.f32 %v384, %v384
        %v417 = vmul.f32 %v385, %v385
        %v418 = vmul.f32 %v386, %v386
        %v419 = vmul.f32 %v387, %v387
        %v420 = vmul.f32 %v388, %v388
        %v421 = vmul.f32 %v389, %v389
        %v422 = vmul.f32 %v390, %v390
        %v423 = vmul.f32 %v391, %v391
        %v424 = vmul.f32 %v392, %v392
        %v425 = vmul.f32 %v393, %v393
        %v426 = vmul.f32 %v394, %v394
        %v427 = vmul.f32 %v395, %v395
        %v428 = vmul.f32 %v396, %v396
        %v429 = vmul.f32 %v397, %v397
        %v430 = vmul.f32 %v398, %v398
        %v431 = vmul.f32 %v399, %v399
        %v432 = vmul.f32 %v400, %v400
        %v433 = vmul.f32 %v401, %v401
        %v434 = vmul.f32 %v402, %v402
        %v435 = vmul.f32 %v403, %v403
        %436 = vadd.xlane.f32.xlu0 %v404
        %v437 = vpop.xlane.xlu0 %436
        %438 = vadd.xlane.f32.xlu0 %v405
        %v439 = vpop.xlane.xlu0 %438
        %440 = vadd.xlane.f32.xlu0 %v406
        %v441 = vpop.xlane.xlu0 %440
        %442 = vadd.xlane.f32.xlu0 %v407
        %v443 = vpop.xlane.xlu0 %442
        %444 = vadd.xlane.f32.xlu0 %v408
        %v445 = vpop.xlane.xlu0 %444
        %446 = vadd.xlane.f32.xlu0 %v409
        %v447 = vpop.xlane.xlu0 %446
        %448 = vadd.xlane.f32.xlu0 %v410
        %v449 = vpop.xlane.xlu0 %448
        %450 = vadd.xlane.f32.xlu0 %v411
        %v451 = vpop.xlane.xlu0 %450
        %452 = vadd.xlane.f32.xlu0 %v412
        %v453 = vpop.xlane.xlu0 %452
        %454 = vadd.xlane.f32.xlu0 %v413
        %v455 = vpop.xlane.xlu0 %454
        %456 = vadd.xlane.f32.xlu0 %v414
        %v457 = vpop.xlane.xlu0 %456
        %458 = vadd.xlane.f32.xlu0 %v415
        %v459 = vpop.xlane.xlu0 %458
        %460 = vadd.xlane.f32.xlu0 %v416
        %v461 = vpop.xlane.xlu0 %460
        %462 = vadd.xlane.f32.xlu0 %v417
        %v463 = vpop.xlane.xlu0 %462
        %464 = vadd.xlane.f32.xlu0 %v418
        %v465 = vpop.xlane.xlu0 %464
        %466 = vadd.xlane.f32.xlu0 %v419
        %v467 = vpop.xlane.xlu0 %466
        %468 = vadd.xlane.f32.xlu0 %v420
        %v469 = vpop.xlane.xlu0 %468
        %470 = vadd.xlane.f32.xlu0 %v421
        %v471 = vpop.xlane.xlu0 %470
        %472 = vadd.xlane.f32.xlu0 %v422
        %v473 = vpop.xlane.xlu0 %472
        %474 = vadd.xlane.f32.xlu0 %v423
        %v475 = vpop.xlane.xlu0 %474
        %476 = vadd.xlane.f32.xlu0 %v424
        %v477 = vpop.xlane.xlu0 %476
        %478 = vadd.xlane.f32.xlu0 %v425
        %v479 = vpop.xlane.xlu0 %478
        %480 = vadd.xlane.f32.xlu0 %v426
        %v481 = vpop.xlane.xlu0 %480
        %482 = vadd.xlane.f32.xlu0 %v427
        %v483 = vpop.xlane.xlu0 %482
        %484 = vadd.xlane.f32.xlu0 %v428
        %v485 = vpop.xlane.xlu0 %484
        %486 = vadd.xlane.f32.xlu0 %v429
        %v487 = vpop.xlane.xlu0 %486
        %488 = vadd.xlane.f32.xlu0 %v430
        %v489 = vpop.xlane.xlu0 %488
        %490 = vadd.xlane.f32.xlu0 %v431
        %v491 = vpop.xlane.xlu0 %490
        %492 = vadd.xlane.f32.xlu0 %v432
        %v493 = vpop.xlane.xlu0 %492
        %494 = vadd.xlane.f32.xlu0 %v433
        %v495 = vpop.xlane.xlu0 %494
        %496 = vadd.xlane.f32.xlu0 %v434
        %v497 = vpop.xlane.xlu0 %496
        %498 = vadd.xlane.f32.xlu0 %v435
        %v499 = vpop.xlane.xlu0 %498
        %v500 = vrcp.pop 128.0
        %v501 = vmul.f32 %v437, %v500
        %v502 = vmul.f32 %v439, %v500
        %v503 = vmul.f32 %v441, %v500
        %v504 = vmul.f32 %v443, %v500
        %v505 = vmul.f32 %v445, %v500
        %v506 = vmul.f32 %v447, %v500
        %v507 = vmul.f32 %v449, %v500
        %v508 = vmul.f32 %v451, %v500
        %v509 = vmul.f32 %v453, %v500
        %v510 = vmul.f32 %v455, %v500
        %v511 = vmul.f32 %v457, %v500
        %v512 = vmul.f32 %v459, %v500
        %v513 = vmul.f32 %v461, %v500
        %v514 = vmul.f32 %v463, %v500
        %v515 = vmul.f32 %v465, %v500
        %v516 = vmul.f32 %v467, %v500
        %v517 = vmul.f32 %v469, %v500
        %v518 = vmul.f32 %v471, %v500
        %v519 = vmul.f32 %v473, %v500
        %v520 = vmul.f32 %v475, %v500
        %v521 = vmul.f32 %v477, %v500
        %v522 = vmul.f32 %v479, %v500
        %v523 = vmul.f32 %v481, %v500
        %v524 = vmul.f32 %v483, %v500
        %v525 = vmul.f32 %v485, %v500
        %v526 = vmul.f32 %v487, %v500
        %v527 = vmul.f32 %v489, %v500
        %v528 = vmul.f32 %v491, %v500
        %v529 = vmul.f32 %v493, %v500
        %v530 = vmul.f32 %v495, %v500
        %v531 = vmul.f32 %v497, %v500
        %v532 = vmul.f32 %v499, %v500
        %v533 = vadd.f32 %v501, 1e-06
        %v534 = vadd.f32 %v502, 1e-06
        %v535 = vadd.f32 %v503, 1e-06
        %v536 = vadd.f32 %v504, 1e-06
        %v537 = vadd.f32 %v505, 1e-06
        %v538 = vadd.f32 %v506, 1e-06
        %v539 = vadd.f32 %v507, 1e-06
        %v540 = vadd.f32 %v508, 1e-06
        %v541 = vadd.f32 %v509, 1e-06
        %v542 = vadd.f32 %v510, 1e-06
        %v543 = vadd.f32 %v511, 1e-06
        %v544 = vadd.f32 %v512, 1e-06
        %v545 = vadd.f32 %v513, 1e-06
        %v546 = vadd.f32 %v514, 1e-06
        %v547 = vadd.f32 %v515, 1e-06
        %v548 = vadd.f32 %v516, 1e-06
        %v549 = vadd.f32 %v517, 1e-06
        %v550 = vadd.f32 %v518, 1e-06
        %v551 = vadd.f32 %v519, 1e-06
        %v552 = vadd.f32 %v520, 1e-06
        %v553 = vadd.f32 %v521, 1e-06
        %v554 = vadd.f32 %v522, 1e-06
        %v555 = vadd.f32 %v523, 1e-06
        %v556 = vadd.f32 %v524, 1e-06
        %v557 = vadd.f32 %v525, 1e-06
        %v558 = vadd.f32 %v526, 1e-06
        %v559 = vadd.f32 %v527, 1e-06
        %v560 = vadd.f32 %v528, 1e-06
        %v561 = vadd.f32 %v529, 1e-06
        %v562 = vadd.f32 %v530, 1e-06
        %v563 = vadd.f32 %v531, 1e-06
        %v564 = vadd.f32 %v532, 1e-06
        %v565 = vrsqrt.pop %v533
        %v566 = vrsqrt.pop %v534
        %v567 = vrsqrt.pop %v535
        %v568 = vrsqrt.pop %v536
        %v569 = vrsqrt.pop %v537
        %v570 = vrsqrt.pop %v538
        %v571 = vrsqrt.pop %v539
        %v572 = vrsqrt.pop %v540
        %v573 = vrsqrt.pop %v541
        %v574 = vrsqrt.pop %v542
        %v575 = vrsqrt.pop %v543
        %v576 = vrsqrt.pop %v544
        %v577 = vrsqrt.pop %v545
        %v578 = vrsqrt.pop %v546
        %v579 = vrsqrt.pop %v547
        %v580 = vrsqrt.pop %v548
        %v581 = vrsqrt.pop %v549
        %v582 = vrsqrt.pop %v550
        %v583 = vrsqrt.pop %v551
        %v584 = vrsqrt.pop %v552
        %v585 = vrsqrt.pop %v553
        %v586 = vrsqrt.pop %v554
        %v587 = vrsqrt.pop %v555
        %v588 = vrsqrt.pop %v556
        %v589 = vrsqrt.pop %v557
        %v590 = vrsqrt.pop %v558
        %v591 = vrsqrt.pop %v559
        %v592 = vrsqrt.pop %v560
        %v593 = vrsqrt.pop %v561
        %v594 = vrsqrt.pop %v562
        %v595 = vrsqrt.pop %v563
        %v596 = vrsqrt.pop %v564
        %v597 = vmul.f32 %v372, %v565
        %v598 = vmul.f32 %v373, %v566
        %v599 = vmul.f32 %v374, %v567
        %v600 = vmul.f32 %v375, %v568
        %v601 = vmul.f32 %v376, %v569
        %v602 = vmul.f32 %v377, %v570
        %v603 = vmul.f32 %v378, %v571
        %v604 = vmul.f32 %v379, %v572
        %v605 = vmul.f32 %v380, %v573
        %v606 = vmul.f32 %v381, %v574
        %v607 = vmul.f32 %v382, %v575
        %v608 = vmul.f32 %v383, %v576
        %v609 = vmul.f32 %v384, %v577
        %v610 = vmul.f32 %v385, %v578
        %v611 = vmul.f32 %v386, %v579
        %v612 = vmul.f32 %v387, %v580
        %v613 = vmul.f32 %v388, %v581
        %v614 = vmul.f32 %v389, %v582
        %v615 = vmul.f32 %v390, %v583
        %v616 = vmul.f32 %v391, %v584
        %v617 = vmul.f32 %v392, %v585
        %v618 = vmul.f32 %v393, %v586
        %v619 = vmul.f32 %v394, %v587
        %v620 = vmul.f32 %v395, %v588
        %v621 = vmul.f32 %v396, %v589
        %v622 = vmul.f32 %v397, %v590
        %v623 = vmul.f32 %v398, %v591
        %v624 = vmul.f32 %v399, %v592
        %v625 = vmul.f32 %v400, %v593
        %v626 = vmul.f32 %v401, %v594
        %v627 = vmul.f32 %v402, %v595
        %v628 = vmul.f32 %v403, %v596
        %v629 = vld [vmem:[%s1] sm:$0x1]
        %v631 = vlaneseq
        %v632 = vshrl.u32 %v631, 7
        %v633 = vsub.s32 0, %v632
        %v634 = vrot.slane %v629, %v633
        %v636 = vmul.f32 %v597, %v634
        %v637 = vmul.f32 %v598, %v634
        %v638 = vmul.f32 %v599, %v634
        %v639 = vmul.f32 %v600, %v634
        %v640 = vmul.f32 %v601, %v634
        %v641 = vmul.f32 %v602, %v634
        %v642 = vmul.f32 %v603, %v634
        %v643 = vmul.f32 %v604, %v634
        %v644 = vmul.f32 %v605, %v634
        %v645 = vmul.f32 %v606, %v634
        %v646 = vmul.f32 %v607, %v634
        %v647 = vmul.f32 %v608, %v634
        %v648 = vmul.f32 %v609, %v634
        %v649 = vmul.f32 %v610, %v634
        %v650 = vmul.f32 %v611, %v634
        %v651 = vmul.f32 %v612, %v634
        %v652 = vmul.f32 %v613, %v634
        %v653 = vmul.f32 %v614, %v634
        %v654 = vmul.f32 %v615, %v634
        %v655 = vmul.f32 %v616, %v634
        %v656 = vmul.f32 %v617, %v634
        %v657 = vmul.f32 %v618, %v634
        %v658 = vmul.f32 %v619, %v634
        %v659 = vmul.f32 %v620, %v634
        %v660 = vmul.f32 %v621, %v634
        %v661 = vmul.f32 %v622, %v634
        %v662 = vmul.f32 %v623, %v634
        %v663 = vmul.f32 %v624, %v634
        %v664 = vmul.f32 %v625, %v634
        %v665 = vmul.f32 %v626, %v634
        %v666 = vmul.f32 %v627, %v634
        %v667 = vmul.f32 %v628, %v634
        %v668 = vld [vmem:[%s2] sm:$0xf]
        %v669 = vld [vmem:[%s3] sm:$0x1]
        %v670 = vlaneseq
        %v671 = vshrl.u32 %v670, 7
        %v672 = vsub.s32 3, %v671
        %v673 = vrot.slane %v668, %v672
        %v674 = vmul.f32 %v636, %v673
        %v675 = vmul.f32 %v637, %v673
        %v676 = vmul.f32 %v638, %v673
        %v677 = vmul.f32 %v639, %v673
        %v678 = vmul.f32 %v640, %v673
        %v679 = vmul.f32 %v641, %v673
        %v680 = vmul.f32 %v642, %v673
        %v681 = vmul.f32 %v643, %v673
        %v682 = vmul.f32 %v644, %v673
        %v683 = vmul.f32 %v645, %v673
        %v684 = vmul.f32 %v646, %v673
        %v685 = vmul.f32 %v647, %v673
        %v686 = vmul.f32 %v648, %v673
        %v687 = vmul.f32 %v649, %v673
        %v688 = vmul.f32 %v650, %v673
        %v689 = vmul.f32 %v651, %v673
        %v690 = vmul.f32 %v652, %v673
        %v691 = vmul.f32 %v653, %v673
        %v692 = vmul.f32 %v654, %v673
        %v693 = vmul.f32 %v655, %v673
        %v694 = vmul.f32 %v656, %v673
        %v695 = vmul.f32 %v657, %v673
        %v696 = vmul.f32 %v658, %v673
        %v697 = vmul.f32 %v659, %v673
        %v698 = vmul.f32 %v660, %v673
        %v699 = vmul.f32 %v661, %v673
        %v700 = vmul.f32 %v662, %v673
        %v701 = vmul.f32 %v663, %v673
        %v702 = vmul.f32 %v664, %v673
        %v703 = vmul.f32 %v665, %v673
        %v704 = vmul.f32 %v666, %v673
        %v705 = vmul.f32 %v667, %v673
        %v707 = vlaneseq
        %v708 = vshrl.u32 %v707, 7
        %v709 = vsub.s32 0, %v708
        %v710 = vrot.slane %v669, %v709
        %v712 = vadd.f32 %v674, %v710
        %v713 = vadd.f32 %v675, %v710
        %v714 = vadd.f32 %v676, %v710
        %v715 = vadd.f32 %v677, %v710
        %v716 = vadd.f32 %v678, %v710
        %v717 = vadd.f32 %v679, %v710
        %v718 = vadd.f32 %v680, %v710
        %v719 = vadd.f32 %v681, %v710
        %v720 = vadd.f32 %v682, %v710
        %v721 = vadd.f32 %v683, %v710
        %v722 = vadd.f32 %v684, %v710
        %v723 = vadd.f32 %v685, %v710
        %v724 = vadd.f32 %v686, %v710
        %v725 = vadd.f32 %v687, %v710
        %v726 = vadd.f32 %v688, %v710
        %v727 = vadd.f32 %v689, %v710
        %v728 = vadd.f32 %v690, %v710
        %v729 = vadd.f32 %v691, %v710
        %v730 = vadd.f32 %v692, %v710
        %v731 = vadd.f32 %v693, %v710
        %v732 = vadd.f32 %v694, %v710
        %v733 = vadd.f32 %v695, %v710
        %v734 = vadd.f32 %v696, %v710
        %v735 = vadd.f32 %v697, %v710
        %v736 = vadd.f32 %v698, %v710
        %v737 = vadd.f32 %v699, %v710
        %v738 = vadd.f32 %v700, %v710
        %v739 = vadd.f32 %v701, %v710
        %v740 = vadd.f32 %v702, %v710
        %v741 = vadd.f32 %v703, %v710
        %v742 = vadd.f32 %v704, %v710
        %v743 = vadd.f32 %v705, %v710
        %v744 = vlaneseq
        %v745 = vshrl.u32 %v744, 7
        %v746 = vadd.s32 %v745, 8
        %v747 = vadd.s32 %v745, 16
        %v748 = vadd.s32 %v745, 24
        %v749 = vadd.s32 %v745, 32
        %v750 = vadd.s32 %v745, 40
        %v751 = vadd.s32 %v745, 48
        %v752 = vadd.s32 %v745, 56
        %v753 = vadd.s32 %v745, 64
        %v754 = vadd.s32 %v745, 72
        %v755 = vadd.s32 %v745, 80
        %v756 = vadd.s32 %v745, 88
        %v757 = vadd.s32 %v745, 96
        %v758 = vadd.s32 %v745, 104
        %v759 = vadd.s32 %v745, 112
        %v760 = vadd.s32 %v745, 120
        %v761 = vrot.slane %v636, 7
        %v762 = vrot.slane %v637, 7
        %v763 = vrot.slane %v638, 7
        %v764 = vrot.slane %v639, 7
        %v765 = vrot.slane %v640, 7
        %v766 = vrot.slane %v641, 7
        %v767 = vrot.slane %v642, 7
        %v768 = vrot.slane %v643, 7
        %v769 = vrot.slane %v644, 7
        %v770 = vrot.slane %v645, 7
        %v771 = vrot.slane %v646, 7
        %v772 = vrot.slane %v647, 7
        %v773 = vrot.slane %v648, 7
        %v774 = vrot.slane %v649, 7
        %v775 = vrot.slane %v650, 7
        %v776 = vrot.slane %v651, 7
        %v777 = vrot.slane %v652, 7
        %v778 = vrot.slane %v653, 7
        %v779 = vrot.slane %v654, 7
        %v780 = vrot.slane %v655, 7
        %v781 = vrot.slane %v656, 7
        %v782 = vrot.slane %v657, 7
        %v783 = vrot.slane %v658, 7
        %v784 = vrot.slane %v659, 7
        %v785 = vrot.slane %v660, 7
        %v786 = vrot.slane %v661, 7
        %v787 = vrot.slane %v662, 7
        %v788 = vrot.slane %v663, 7
        %v789 = vrot.slane %v664, 7
        %v790 = vrot.slane %v665, 7
        %v791 = vrot.slane %v666, 7
        %v792 = vrot.slane %v667, 7
        %vm793 = vcmp.lt.s32.totalorder %v745, 1
        %v794 = vsel %vm793, %v791, %v792
        %v795 = vsel %vm793, %v790, %v791
        %v796 = vsel %vm793, %v789, %v790
        %v797 = vsel %vm793, %v788, %v789
        %v798 = vsel %vm793, %v787, %v788
        %v799 = vsel %vm793, %v786, %v787
        %v800 = vsel %vm793, %v785, %v786
        %v801 = vsel %vm793, %v784, %v785
        %v802 = vsel %vm793, %v783, %v784
        %v803 = vsel %vm793, %v782, %v783
        %v804 = vsel %vm793, %v781, %v782
        %v805 = vsel %vm793, %v780, %v781
        %v806 = vsel %vm793, %v779, %v780
        %v807 = vsel %vm793, %v778, %v779
        %v808 = vsel %vm793, %v777, %v778
        %v809 = vsel %vm793, %v776, %v777
        %v810 = vsel %vm793, %v775, %v776
        %v811 = vsel %vm793, %v774, %v775
        %v812 = vsel %vm793, %v773, %v774
        %v813 = vsel %vm793, %v772, %v773
        %v814 = vsel %vm793, %v771, %v772
        %v815 = vsel %vm793, %v770, %v771
        %v816 = vsel %vm793, %v769, %v770
        %v817 = vsel %vm793, %v768, %v769
        %v818 = vsel %vm793, %v767, %v768
        %v819 = vsel %vm793, %v766, %v767
        %v820 = vsel %vm793, %v765, %v766
        %v821 = vsel %vm793, %v764, %v765
        %v822 = vsel %vm793, %v763, %v764
        %v823 = vsel %vm793, %v762, %v763
        %v824 = vsel %vm793, %v761, %v762
        %v825 = vsel %vm793, %v792, %v761
        %vm826 = vcmp.ge.s32.totalorder %v745, 1
        %vm827 = vcmp.ge.s32.totalorder %v746, 1
        %vm828 = vcmp.ge.s32.totalorder %v747, 1
        %vm829 = vcmp.ge.s32.totalorder %v748, 1
        %vm830 = vcmp.ge.s32.totalorder %v749, 1
        %vm831 = vcmp.ge.s32.totalorder %v750, 1
        %vm832 = vcmp.ge.s32.totalorder %v751, 1
        %vm833 = vcmp.ge.s32.totalorder %v752, 1
        %vm834 = vcmp.ge.s32.totalorder %v753, 1
        %vm835 = vcmp.ge.s32.totalorder %v754, 1
        %vm836 = vcmp.ge.s32.totalorder %v755, 1
        %vm837 = vcmp.ge.s32.totalorder %v756, 1
        %vm838 = vcmp.ge.s32.totalorder %v757, 1
        %vm839 = vcmp.ge.s32.totalorder %v758, 1
        %vm840 = vcmp.ge.s32.totalorder %v759, 1
        %vm841 = vcmp.ge.s32.totalorder %v760, 1
        %v842 = vsel %vm826, 1, 0
        %v843 = vsel %vm827, 1, 0
        %v844 = vsel %vm828, 1, 0
        %v845 = vsel %vm829, 1, 0
        %v846 = vsel %vm830, 1, 0
        %v847 = vsel %vm831, 1, 0
        %v848 = vsel %vm832, 1, 0
        %v849 = vsel %vm833, 1, 0
        %v850 = vsel %vm834, 1, 0
        %v851 = vsel %vm835, 1, 0
        %v852 = vsel %vm836, 1, 0
        %v853 = vsel %vm837, 1, 0
        %v854 = vsel %vm838, 1, 0
        %v855 = vsel %vm839, 1, 0
        %v856 = vsel %vm840, 1, 0
        %v857 = vsel %vm841, 1, 0
        %vm858 = vcmp.eq.s32.totalorder %v842, 1
        %vm859 = vcmp.eq.s32.totalorder %v843, 1
        %vm860 = vcmp.eq.s32.totalorder %v844, 1
        %vm861 = vcmp.eq.s32.totalorder %v845, 1
        %vm862 = vcmp.eq.s32.totalorder %v846, 1
        %vm863 = vcmp.eq.s32.totalorder %v847, 1
        %vm864 = vcmp.eq.s32.totalorder %v848, 1
        %vm865 = vcmp.eq.s32.totalorder %v849, 1
        %vm866 = vcmp.eq.s32.totalorder %v850, 1
        %vm867 = vcmp.eq.s32.totalorder %v851, 1
        %vm868 = vcmp.eq.s32.totalorder %v852, 1
        %vm869 = vcmp.eq.s32.totalorder %v853, 1
        %vm870 = vcmp.eq.s32.totalorder %v854, 1
        %vm871 = vcmp.eq.s32.totalorder %v855, 1
        %vm872 = vcmp.eq.s32.totalorder %v856, 1
        %vm873 = vcmp.eq.s32.totalorder %v857, 1
        %v874 = vsel %vm858, %v825, 0.0
        %v875 = vsel %vm859, %v824, 0.0
        %v876 = vsel %vm860, %v823, 0.0
        %v877 = vsel %vm861, %v822, 0.0
        %v878 = vsel %vm862, %v821, 0.0
        %v879 = vsel %vm863, %v820, 0.0
        %v880 = vsel %vm864, %v819, 0.0
        %v881 = vsel %vm865, %v818, 0.0
        %v882 = vsel %vm866, %v817, 0.0
        %v883 = vsel %vm867, %v816, 0.0
        %v884 = vsel %vm868, %v815, 0.0
        %v885 = vsel %vm869, %v814, 0.0
        %v886 = vsel %vm870, %v813, 0.0
        %v887 = vsel %vm871, %v812, 0.0
        %v888 = vsel %vm872, %v811, 0.0
        %v889 = vsel %vm873, %v810, 0.0
        %v890 = vsel %vm858, %v809, 0.0
        %v891 = vsel %vm859, %v808, 0.0
        %v892 = vsel %vm860, %v807, 0.0
        %v893 = vsel %vm861, %v806, 0.0
        %v894 = vsel %vm862, %v805, 0.0
        %v895 = vsel %vm863, %v804, 0.0
        %v896 = vsel %vm864, %v803, 0.0
        %v897 = vsel %vm865, %v802, 0.0
        %v898 = vsel %vm866, %v801, 0.0
        %v899 = vsel %vm867, %v800, 0.0
        %v900 = vsel %vm868, %v799, 0.0
        %v901 = vsel %vm869, %v798, 0.0
        %v902 = vsel %vm870, %v797, 0.0
        %v903 = vsel %vm871, %v796, 0.0
        %v904 = vsel %vm872, %v795, 0.0
        %v905 = vsel %vm873, %v794, 0.0
        %v906 = vlaneseq
        %v907 = vshrl.u32 %v906, 7
        %v908 = vsub.s32 2, %v907
        %v909 = vrot.slane %v668, %v908
        %v910 = vmul.f32 %v874, %v909
        %v911 = vmul.f32 %v875, %v909
        %v912 = vmul.f32 %v876, %v909
        %v913 = vmul.f32 %v877, %v909
        %v914 = vmul.f32 %v878, %v909
        %v915 = vmul.f32 %v879, %v909
        %v916 = vmul.f32 %v880, %v909
        %v917 = vmul.f32 %v881, %v909
        %v918 = vmul.f32 %v882, %v909
        %v919 = vmul.f32 %v883, %v909
        %v920 = vmul.f32 %v884, %v909
        %v921 = vmul.f32 %v885, %v909
        %v922 = vmul.f32 %v886, %v909
        %v923 = vmul.f32 %v887, %v909
        %v924 = vmul.f32 %v888, %v909
        %v925 = vmul.f32 %v889, %v909
        %v926 = vmul.f32 %v890, %v909
        %v927 = vmul.f32 %v891, %v909
        %v928 = vmul.f32 %v892, %v909
        %v929 = vmul.f32 %v893, %v909
        %v930 = vmul.f32 %v894, %v909
        %v931 = vmul.f32 %v895, %v909
        %v932 = vmul.f32 %v896, %v909
        %v933 = vmul.f32 %v897, %v909
        %v934 = vmul.f32 %v898, %v909
        %v935 = vmul.f32 %v899, %v909
        %v936 = vmul.f32 %v900, %v909
        %v937 = vmul.f32 %v901, %v909
        %v938 = vmul.f32 %v902, %v909
        %v939 = vmul.f32 %v903, %v909
        %v940 = vmul.f32 %v904, %v909
        %v941 = vmul.f32 %v905, %v909
        %v942 = vadd.f32 %v712, %v910
        %v943 = vadd.f32 %v713, %v911
        %v944 = vadd.f32 %v714, %v912
        %v945 = vadd.f32 %v715, %v913
        %v946 = vadd.f32 %v716, %v914
        %v947 = vadd.f32 %v717, %v915
        %v948 = vadd.f32 %v718, %v916
        %v949 = vadd.f32 %v719, %v917
        %v950 = vadd.f32 %v720, %v918
        %v951 = vadd.f32 %v721, %v919
        %v952 = vadd.f32 %v722, %v920
        %v953 = vadd.f32 %v723, %v921
        %v954 = vadd.f32 %v724, %v922
        %v955 = vadd.f32 %v725, %v923
        %v956 = vadd.f32 %v726, %v924
        %v957 = vadd.f32 %v727, %v925
        %v958 = vadd.f32 %v728, %v926
        %v959 = vadd.f32 %v729, %v927
        %v960 = vadd.f32 %v730, %v928
        %v961 = vadd.f32 %v731, %v929
        %v962 = vadd.f32 %v732, %v930
        %v963 = vadd.f32 %v733, %v931
        %v964 = vadd.f32 %v734, %v932
        %v965 = vadd.f32 %v735, %v933
        %v966 = vadd.f32 %v736, %v934
        %v967 = vadd.f32 %v737, %v935
        %v968 = vadd.f32 %v738, %v936
        %v969 = vadd.f32 %v739, %v937
        %v970 = vadd.f32 %v740, %v938
        %v971 = vadd.f32 %v741, %v939
        %v972 = vadd.f32 %v742, %v940
        %v973 = vadd.f32 %v743, %v941
        %v974 = vrot.slane %v636, 6
        %v975 = vrot.slane %v637, 6
        %v976 = vrot.slane %v638, 6
        %v977 = vrot.slane %v639, 6
        %v978 = vrot.slane %v640, 6
        %v979 = vrot.slane %v641, 6
        %v980 = vrot.slane %v642, 6
        %v981 = vrot.slane %v643, 6
        %v982 = vrot.slane %v644, 6
        %v983 = vrot.slane %v645, 6
        %v984 = vrot.slane %v646, 6
        %v985 = vrot.slane %v647, 6
        %v986 = vrot.slane %v648, 6
        %v987 = vrot.slane %v649, 6
        %v988 = vrot.slane %v650, 6
        %v989 = vrot.slane %v651, 6
        %v990 = vrot.slane %v652, 6
        %v991 = vrot.slane %v653, 6
        %v992 = vrot.slane %v654, 6
        %v993 = vrot.slane %v655, 6
        %v994 = vrot.slane %v656, 6
        %v995 = vrot.slane %v657, 6
        %v996 = vrot.slane %v658, 6
        %v997 = vrot.slane %v659, 6
        %v998 = vrot.slane %v660, 6
        %v999 = vrot.slane %v661, 6
        %v1000 = vrot.slane %v662, 6
        %v1001 = vrot.slane %v663, 6
        %v1002 = vrot.slane %v664, 6
        %v1003 = vrot.slane %v665, 6
        %v1004 = vrot.slane %v666, 6
        %v1005 = vrot.slane %v667, 6
        %vm1006 = vcmp.lt.s32.totalorder %v745, 2
        %v1007 = vsel %vm1006, %v1004, %v1005
        %v1008 = vsel %vm1006, %v1003, %v1004
        %v1009 = vsel %vm1006, %v1002, %v1003
        %v1010 = vsel %vm1006, %v1001, %v1002
        %v1011 = vsel %vm1006, %v1000, %v1001
        %v1012 = vsel %vm1006, %v999, %v1000
        %v1013 = vsel %vm1006, %v998, %v999
        %v1014 = vsel %vm1006, %v997, %v998
        %v1015 = vsel %vm1006, %v996, %v997
        %v1016 = vsel %vm1006, %v995, %v996
        %v1017 = vsel %vm1006, %v994, %v995
        %v1018 = vsel %vm1006, %v993, %v994
        %v1019 = vsel %vm1006, %v992, %v993
        %v1020 = vsel %vm1006, %v991, %v992
        %v1021 = vsel %vm1006, %v990, %v991
        %v1022 = vsel %vm1006, %v989, %v990
        %v1023 = vsel %vm1006, %v988, %v989
        %v1024 = vsel %vm1006, %v987, %v988
        %v1025 = vsel %vm1006, %v986, %v987
        %v1026 = vsel %vm1006, %v985, %v986
        %v1027 = vsel %vm1006, %v984, %v985
        %v1028 = vsel %vm1006, %v983, %v984
        %v1029 = vsel %vm1006, %v982, %v983
        %v1030 = vsel %vm1006, %v981, %v982
        %v1031 = vsel %vm1006, %v980, %v981
        %v1032 = vsel %vm1006, %v979, %v980
        %v1033 = vsel %vm1006, %v978, %v979
        %v1034 = vsel %vm1006, %v977, %v978
        %v1035 = vsel %vm1006, %v976, %v977
        %v1036 = vsel %vm1006, %v975, %v976
        %v1037 = vsel %vm1006, %v974, %v975
        %v1038 = vsel %vm1006, %v1005, %v974
        %vm1039 = vcmp.ge.s32.totalorder %v745, 2
        %vm1040 = vcmp.ge.s32.totalorder %v746, 2
        %vm1041 = vcmp.ge.s32.totalorder %v747, 2
        %vm1042 = vcmp.ge.s32.totalorder %v748, 2
        %vm1043 = vcmp.ge.s32.totalorder %v749, 2
        %vm1044 = vcmp.ge.s32.totalorder %v750, 2
        %vm1045 = vcmp.ge.s32.totalorder %v751, 2
        %vm1046 = vcmp.ge.s32.totalorder %v752, 2
        %vm1047 = vcmp.ge.s32.totalorder %v753, 2
        %vm1048 = vcmp.ge.s32.totalorder %v754, 2
        %vm1049 = vcmp.ge.s32.totalorder %v755, 2
        %vm1050 = vcmp.ge.s32.totalorder %v756, 2
        %vm1051 = vcmp.ge.s32.totalorder %v757, 2
        %vm1052 = vcmp.ge.s32.totalorder %v758, 2
        %vm1053 = vcmp.ge.s32.totalorder %v759, 2
        %vm1054 = vcmp.ge.s32.totalorder %v760, 2
        %v1055 = vsel %vm1039, 1, 0
        %v1056 = vsel %vm1040, 1, 0
        %v1057 = vsel %vm1041, 1, 0
        %v1058 = vsel %vm1042, 1, 0
        %v1059 = vsel %vm1043, 1, 0
        %v1060 = vsel %vm1044, 1, 0
        %v1061 = vsel %vm1045, 1, 0
        %v1062 = vsel %vm1046, 1, 0
        %v1063 = vsel %vm1047, 1, 0
        %v1064 = vsel %vm1048, 1, 0
        %v1065 = vsel %vm1049, 1, 0
        %v1066 = vsel %vm1050, 1, 0
        %v1067 = vsel %vm1051, 1, 0
        %v1068 = vsel %vm1052, 1, 0
        %v1069 = vsel %vm1053, 1, 0
        %v1070 = vsel %vm1054, 1, 0
        %vm1071 = vcmp.eq.s32.totalorder %v1055, 1
        %vm1072 = vcmp.eq.s32.totalorder %v1056, 1
        %vm1073 = vcmp.eq.s32.totalorder %v1057, 1
        %vm1074 = vcmp.eq.s32.totalorder %v1058, 1
        %vm1075 = vcmp.eq.s32.totalorder %v1059, 1
        %vm1076 = vcmp.eq.s32.totalorder %v1060, 1
        %vm1077 = vcmp.eq.s32.totalorder %v1061, 1
        %vm1078 = vcmp.eq.s32.totalorder %v1062, 1
        %vm1079 = vcmp.eq.s32.totalorder %v1063, 1
        %vm1080 = vcmp.eq.s32.totalorder %v1064, 1
        %vm1081 = vcmp.eq.s32.totalorder %v1065, 1
        %vm1082 = vcmp.eq.s32.totalorder %v1066, 1
        %vm1083 = vcmp.eq.s32.totalorder %v1067, 1
        %vm1084 = vcmp.eq.s32.totalorder %v1068, 1
        %vm1085 = vcmp.eq.s32.totalorder %v1069, 1
        %vm1086 = vcmp.eq.s32.totalorder %v1070, 1
        %v1087 = vsel %vm1071, %v1038, 0.0
        %v1088 = vsel %vm1072, %v1037, 0.0
        %v1089 = vsel %vm1073, %v1036, 0.0
        %v1090 = vsel %vm1074, %v1035, 0.0
        %v1091 = vsel %vm1075, %v1034, 0.0
        %v1092 = vsel %vm1076, %v1033, 0.0
        %v1093 = vsel %vm1077, %v1032, 0.0
        %v1094 = vsel %vm1078, %v1031, 0.0
        %v1095 = vsel %vm1079, %v1030, 0.0
        %v1096 = vsel %vm1080, %v1029, 0.0
        %v1097 = vsel %vm1081, %v1028, 0.0
        %v1098 = vsel %vm1082, %v1027, 0.0
        %v1099 = vsel %vm1083, %v1026, 0.0
        %v1100 = vsel %vm1084, %v1025, 0.0
        %v1101 = vsel %vm1085, %v1024, 0.0
        %v1102 = vsel %vm1086, %v1023, 0.0
        %v1103 = vsel %vm1071, %v1022, 0.0
        %v1104 = vsel %vm1072, %v1021, 0.0
        %v1105 = vsel %vm1073, %v1020, 0.0
        %v1106 = vsel %vm1074, %v1019, 0.0
        %v1107 = vsel %vm1075, %v1018, 0.0
        %v1108 = vsel %vm1076, %v1017, 0.0
        %v1109 = vsel %vm1077, %v1016, 0.0
        %v1110 = vsel %vm1078, %v1015, 0.0
        %v1111 = vsel %vm1079, %v1014, 0.0
        %v1112 = vsel %vm1080, %v1013, 0.0
        %v1113 = vsel %vm1081, %v1012, 0.0
        %v1114 = vsel %vm1082, %v1011, 0.0
        %v1115 = vsel %vm1083, %v1010, 0.0
        %v1116 = vsel %vm1084, %v1009, 0.0
        %v1117 = vsel %vm1085, %v1008, 0.0
        %v1118 = vsel %vm1086, %v1007, 0.0
        %v1119 = vlaneseq
        %v1120 = vshrl.u32 %v1119, 7
        %v1121 = vsub.s32 1, %v1120
        %v1122 = vrot.slane %v668, %v1121
        %v1123 = vmul.f32 %v1087, %v1122
        %v1124 = vmul.f32 %v1088, %v1122
        %v1125 = vmul.f32 %v1089, %v1122
        %v1126 = vmul.f32 %v1090, %v1122
        %v1127 = vmul.f32 %v1091, %v1122
        %v1128 = vmul.f32 %v1092, %v1122
        %v1129 = vmul.f32 %v1093, %v1122
        %v1130 = vmul.f32 %v1094, %v1122
        %v1131 = vmul.f32 %v1095, %v1122
        %v1132 = vmul.f32 %v1096, %v1122
        %v1133 = vmul.f32 %v1097, %v1122
        %v1134 = vmul.f32 %v1098, %v1122
        %v1135 = vmul.f32 %v1099, %v1122
        %v1136 = vmul.f32 %v1100, %v1122
        %v1137 = vmul.f32 %v1101, %v1122
        %v1138 = vmul.f32 %v1102, %v1122
        %v1139 = vmul.f32 %v1103, %v1122
        %v1140 = vmul.f32 %v1104, %v1122
        %v1141 = vmul.f32 %v1105, %v1122
        %v1142 = vmul.f32 %v1106, %v1122
        %v1143 = vmul.f32 %v1107, %v1122
        %v1144 = vmul.f32 %v1108, %v1122
        %v1145 = vmul.f32 %v1109, %v1122
        %v1146 = vmul.f32 %v1110, %v1122
        %v1147 = vmul.f32 %v1111, %v1122
        %v1148 = vmul.f32 %v1112, %v1122
        %v1149 = vmul.f32 %v1113, %v1122
        %v1150 = vmul.f32 %v1114, %v1122
        %v1151 = vmul.f32 %v1115, %v1122
        %v1152 = vmul.f32 %v1116, %v1122
        %v1153 = vmul.f32 %v1117, %v1122
        %v1154 = vmul.f32 %v1118, %v1122
        %v1155 = vadd.f32 %v942, %v1123
        %v1156 = vadd.f32 %v943, %v1124
        %v1157 = vadd.f32 %v944, %v1125
        %v1158 = vadd.f32 %v945, %v1126
        %v1159 = vadd.f32 %v946, %v1127
        %v1160 = vadd.f32 %v947, %v1128
        %v1161 = vadd.f32 %v948, %v1129
        %v1162 = vadd.f32 %v949, %v1130
        %v1163 = vadd.f32 %v950, %v1131
        %v1164 = vadd.f32 %v951, %v1132
        %v1165 = vadd.f32 %v952, %v1133
        %v1166 = vadd.f32 %v953, %v1134
        %v1167 = vadd.f32 %v954, %v1135
        %v1168 = vadd.f32 %v955, %v1136
        %v1169 = vadd.f32 %v956, %v1137
        %v1170 = vadd.f32 %v957, %v1138
        %v1171 = vadd.f32 %v958, %v1139
        %v1172 = vadd.f32 %v959, %v1140
        %v1173 = vadd.f32 %v960, %v1141
        %v1174 = vadd.f32 %v961, %v1142
        %v1175 = vadd.f32 %v962, %v1143
        %v1176 = vadd.f32 %v963, %v1144
        %v1177 = vadd.f32 %v964, %v1145
        %v1178 = vadd.f32 %v965, %v1146
        %v1179 = vadd.f32 %v966, %v1147
        %v1180 = vadd.f32 %v967, %v1148
        %v1181 = vadd.f32 %v968, %v1149
        %v1182 = vadd.f32 %v969, %v1150
        %v1183 = vadd.f32 %v970, %v1151
        %v1184 = vadd.f32 %v971, %v1152
        %v1185 = vadd.f32 %v972, %v1153
        %v1186 = vadd.f32 %v973, %v1154
        %v1187 = vrot.slane %v636, 5
        %v1188 = vrot.slane %v637, 5
        %v1189 = vrot.slane %v638, 5
        %v1190 = vrot.slane %v639, 5
        %v1191 = vrot.slane %v640, 5
        %v1192 = vrot.slane %v641, 5
        %v1193 = vrot.slane %v642, 5
        %v1194 = vrot.slane %v643, 5
        %v1195 = vrot.slane %v644, 5
        %v1196 = vrot.slane %v645, 5
        %v1197 = vrot.slane %v646, 5
        %v1198 = vrot.slane %v647, 5
        %v1199 = vrot.slane %v648, 5
        %v1200 = vrot.slane %v649, 5
        %v1201 = vrot.slane %v650, 5
        %v1202 = vrot.slane %v651, 5
        %v1203 = vrot.slane %v652, 5
        %v1204 = vrot.slane %v653, 5
        %v1205 = vrot.slane %v654, 5
        %v1206 = vrot.slane %v655, 5
        %v1207 = vrot.slane %v656, 5
        %v1208 = vrot.slane %v657, 5
        %v1209 = vrot.slane %v658, 5
        %v1210 = vrot.slane %v659, 5
        %v1211 = vrot.slane %v660, 5
        %v1212 = vrot.slane %v661, 5
        %v1213 = vrot.slane %v662, 5
        %v1214 = vrot.slane %v663, 5
        %v1215 = vrot.slane %v664, 5
        %v1216 = vrot.slane %v665, 5
        %v1217 = vrot.slane %v666, 5
        %v1218 = vrot.slane %v667, 5
        %vm1219 = vcmp.lt.s32.totalorder %v745, 3
        %v1220 = vsel %vm1219, %v1217, %v1218
        %v1221 = vsel %vm1219, %v1216, %v1217
        %v1222 = vsel %vm1219, %v1215, %v1216
        %v1223 = vsel %vm1219, %v1214, %v1215
        %v1224 = vsel %vm1219, %v1213, %v1214
        %v1225 = vsel %vm1219, %v1212, %v1213
        %v1226 = vsel %vm1219, %v1211, %v1212
        %v1227 = vsel %vm1219, %v1210, %v1211
        %v1228 = vsel %vm1219, %v1209, %v1210
        %v1229 = vsel %vm1219, %v1208, %v1209
        %v1230 = vsel %vm1219, %v1207, %v1208
        %v1231 = vsel %vm1219, %v1206, %v1207
        %v1232 = vsel %vm1219, %v1205, %v1206
        %v1233 = vsel %vm1219, %v1204, %v1205
        %v1234 = vsel %vm1219, %v1203, %v1204
        %v1235 = vsel %vm1219, %v1202, %v1203
        %v1236 = vsel %vm1219, %v1201, %v1202
        %v1237 = vsel %vm1219, %v1200, %v1201
        %v1238 = vsel %vm1219, %v1199, %v1200
        %v1239 = vsel %vm1219, %v1198, %v1199
        %v1240 = vsel %vm1219, %v1197, %v1198
        %v1241 = vsel %vm1219, %v1196, %v1197
        %v1242 = vsel %vm1219, %v1195, %v1196
        %v1243 = vsel %vm1219, %v1194, %v1195
        %v1244 = vsel %vm1219, %v1193, %v1194
        %v1245 = vsel %vm1219, %v1192, %v1193
        %v1246 = vsel %vm1219, %v1191, %v1192
        %v1247 = vsel %vm1219, %v1190, %v1191
        %v1248 = vsel %vm1219, %v1189, %v1190
        %v1249 = vsel %vm1219, %v1188, %v1189
        %v1250 = vsel %vm1219, %v1187, %v1188
        %v1251 = vsel %vm1219, %v1218, %v1187
        %vm1252 = vcmp.ge.s32.totalorder %v745, 3
        %vm1253 = vcmp.ge.s32.totalorder %v746, 3
        %vm1254 = vcmp.ge.s32.totalorder %v747, 3
        %vm1255 = vcmp.ge.s32.totalorder %v748, 3
        %vm1256 = vcmp.ge.s32.totalorder %v749, 3
        %vm1257 = vcmp.ge.s32.totalorder %v750, 3
        %vm1258 = vcmp.ge.s32.totalorder %v751, 3
        %vm1259 = vcmp.ge.s32.totalorder %v752, 3
        %vm1260 = vcmp.ge.s32.totalorder %v753, 3
        %vm1261 = vcmp.ge.s32.totalorder %v754, 3
        %vm1262 = vcmp.ge.s32.totalorder %v755, 3
        %vm1263 = vcmp.ge.s32.totalorder %v756, 3
        %vm1264 = vcmp.ge.s32.totalorder %v757, 3
        %vm1265 = vcmp.ge.s32.totalorder %v758, 3
        %vm1266 = vcmp.ge.s32.totalorder %v759, 3
        %vm1267 = vcmp.ge.s32.totalorder %v760, 3
        %v1268 = vsel %vm1252, 1, 0
        %v1269 = vsel %vm1253, 1, 0
        %v1270 = vsel %vm1254, 1, 0
        %v1271 = vsel %vm1255, 1, 0
        %v1272 = vsel %vm1256, 1, 0
        %v1273 = vsel %vm1257, 1, 0
        %v1274 = vsel %vm1258, 1, 0
        %v1275 = vsel %vm1259, 1, 0
        %v1276 = vsel %vm1260, 1, 0
        %v1277 = vsel %vm1261, 1, 0
        %v1278 = vsel %vm1262, 1, 0
        %v1279 = vsel %vm1263, 1, 0
        %v1280 = vsel %vm1264, 1, 0
        %v1281 = vsel %vm1265, 1, 0
        %v1282 = vsel %vm1266, 1, 0
        %v1283 = vsel %vm1267, 1, 0
        %vm1284 = vcmp.eq.s32.totalorder %v1268, 1
        %vm1285 = vcmp.eq.s32.totalorder %v1269, 1
        %vm1286 = vcmp.eq.s32.totalorder %v1270, 1
        %vm1287 = vcmp.eq.s32.totalorder %v1271, 1
        %vm1288 = vcmp.eq.s32.totalorder %v1272, 1
        %vm1289 = vcmp.eq.s32.totalorder %v1273, 1
        %vm1290 = vcmp.eq.s32.totalorder %v1274, 1
        %vm1291 = vcmp.eq.s32.totalorder %v1275, 1
        %vm1292 = vcmp.eq.s32.totalorder %v1276, 1
        %vm1293 = vcmp.eq.s32.totalorder %v1277, 1
        %vm1294 = vcmp.eq.s32.totalorder %v1278, 1
        %vm1295 = vcmp.eq.s32.totalorder %v1279, 1
        %vm1296 = vcmp.eq.s32.totalorder %v1280, 1
        %vm1297 = vcmp.eq.s32.totalorder %v1281, 1
        %vm1298 = vcmp.eq.s32.totalorder %v1282, 1
        %vm1299 = vcmp.eq.s32.totalorder %v1283, 1
        %v1300 = vsel %vm1284, %v1251, 0.0
        %v1301 = vsel %vm1285, %v1250, 0.0
        %v1302 = vsel %vm1286, %v1249, 0.0
        %v1303 = vsel %vm1287, %v1248, 0.0
        %v1304 = vsel %vm1288, %v1247, 0.0
        %v1305 = vsel %vm1289, %v1246, 0.0
        %v1306 = vsel %vm1290, %v1245, 0.0
        %v1307 = vsel %vm1291, %v1244, 0.0
        %v1308 = vsel %vm1292, %v1243, 0.0
        %v1309 = vsel %vm1293, %v1242, 0.0
        %v1310 = vsel %vm1294, %v1241, 0.0
        %v1311 = vsel %vm1295, %v1240, 0.0
        %v1312 = vsel %vm1296, %v1239, 0.0
        %v1313 = vsel %vm1297, %v1238, 0.0
        %v1314 = vsel %vm1298, %v1237, 0.0
        %v1315 = vsel %vm1299, %v1236, 0.0
        %v1316 = vsel %vm1284, %v1235, 0.0
        %v1317 = vsel %vm1285, %v1234, 0.0
        %v1318 = vsel %vm1286, %v1233, 0.0
        %v1319 = vsel %vm1287, %v1232, 0.0
        %v1320 = vsel %vm1288, %v1231, 0.0
        %v1321 = vsel %vm1289, %v1230, 0.0
        %v1322 = vsel %vm1290, %v1229, 0.0
        %v1323 = vsel %vm1291, %v1228, 0.0
        %v1324 = vsel %vm1292, %v1227, 0.0
        %v1325 = vsel %vm1293, %v1226, 0.0
        %v1326 = vsel %vm1294, %v1225, 0.0
        %v1327 = vsel %vm1295, %v1224, 0.0
        %v1328 = vsel %vm1296, %v1223, 0.0
        %v1329 = vsel %vm1297, %v1222, 0.0
        %v1330 = vsel %vm1298, %v1221, 0.0
        %v1331 = vsel %vm1299, %v1220, 0.0
        %v1332 = vlaneseq
        %v1333 = vshrl.u32 %v1332, 7
        %v1334 = vsub.s32 0, %v1333
        %v1335 = vrot.slane %v668, %v1334
        %v1336 = vmul.f32 %v1300, %v1335
        %v1337 = vmul.f32 %v1301, %v1335
        %v1338 = vmul.f32 %v1302, %v1335
        %v1339 = vmul.f32 %v1303, %v1335
        %v1340 = vmul.f32 %v1304, %v1335
        %v1341 = vmul.f32 %v1305, %v1335
        %v1342 = vmul.f32 %v1306, %v1335
        %v1343 = vmul.f32 %v1307, %v1335
        %v1344 = vmul.f32 %v1308, %v1335
        %v1345 = vmul.f32 %v1309, %v1335
        %v1346 = vmul.f32 %v1310, %v1335
        %v1347 = vmul.f32 %v1311, %v1335
        %v1348 = vmul.f32 %v1312, %v1335
        %v1349 = vmul.f32 %v1313, %v1335
        %v1350 = vmul.f32 %v1314, %v1335
        %v1351 = vmul.f32 %v1315, %v1335
        %v1352 = vmul.f32 %v1316, %v1335
        %v1353 = vmul.f32 %v1317, %v1335
        %v1354 = vmul.f32 %v1318, %v1335
        %v1355 = vmul.f32 %v1319, %v1335
        %v1356 = vmul.f32 %v1320, %v1335
        %v1357 = vmul.f32 %v1321, %v1335
        %v1358 = vmul.f32 %v1322, %v1335
        %v1359 = vmul.f32 %v1323, %v1335
        %v1360 = vmul.f32 %v1324, %v1335
        %v1361 = vmul.f32 %v1325, %v1335
        %v1362 = vmul.f32 %v1326, %v1335
        %v1363 = vmul.f32 %v1327, %v1335
        %v1364 = vmul.f32 %v1328, %v1335
        %v1365 = vmul.f32 %v1329, %v1335
        %v1366 = vmul.f32 %v1330, %v1335
        %v1367 = vmul.f32 %v1331, %v1335
        %v1368 = vadd.f32 %v1155, %v1336
        %v1369 = vadd.f32 %v1156, %v1337
        %v1370 = vadd.f32 %v1157, %v1338
        %v1371 = vadd.f32 %v1158, %v1339
        %v1372 = vadd.f32 %v1159, %v1340
        %v1373 = vadd.f32 %v1160, %v1341
        %v1374 = vadd.f32 %v1161, %v1342
        %v1375 = vadd.f32 %v1162, %v1343
        %v1376 = vadd.f32 %v1163, %v1344
        %v1377 = vadd.f32 %v1164, %v1345
        %v1378 = vadd.f32 %v1165, %v1346
        %v1379 = vadd.f32 %v1166, %v1347
        %v1380 = vadd.f32 %v1167, %v1348
        %v1381 = vadd.f32 %v1168, %v1349
        %v1382 = vadd.f32 %v1169, %v1350
        %v1383 = vadd.f32 %v1170, %v1351
        %v1384 = vadd.f32 %v1171, %v1352
        %v1385 = vadd.f32 %v1172, %v1353
        %v1386 = vadd.f32 %v1173, %v1354
        %v1387 = vadd.f32 %v1174, %v1355
        %v1388 = vadd.f32 %v1175, %v1356
        %v1389 = vadd.f32 %v1176, %v1357
        %v1390 = vadd.f32 %v1177, %v1358
        %v1391 = vadd.f32 %v1178, %v1359
        %v1392 = vadd.f32 %v1179, %v1360
        %v1393 = vadd.f32 %v1180, %v1361
        %v1394 = vadd.f32 %v1181, %v1362
        %v1395 = vadd.f32 %v1182, %v1363
        %v1396 = vadd.f32 %v1183, %v1364
        %v1397 = vadd.f32 %v1184, %v1365
        %v1398 = vadd.f32 %v1185, %v1366
        %v1399 = vadd.f32 %v1186, %v1367
        %v1400 = vsub.f32 0.0, %v1368
        %v1401 = vsub.f32 0.0, %v1369
        %v1402 = vsub.f32 0.0, %v1370
        %v1403 = vsub.f32 0.0, %v1371
        %v1404 = vsub.f32 0.0, %v1372
        %v1405 = vsub.f32 0.0, %v1373
        %v1406 = vsub.f32 0.0, %v1374
        %v1407 = vsub.f32 0.0, %v1375
        %v1408 = vsub.f32 0.0, %v1376
        %v1409 = vsub.f32 0.0, %v1377
        %v1410 = vsub.f32 0.0, %v1378
        %v1411 = vsub.f32 0.0, %v1379
        %v1412 = vsub.f32 0.0, %v1380
        %v1413 = vsub.f32 0.0, %v1381
        %v1414 = vsub.f32 0.0, %v1382
        %v1415 = vsub.f32 0.0, %v1383
        %v1416 = vsub.f32 0.0, %v1384
        %v1417 = vsub.f32 0.0, %v1385
        %v1418 = vsub.f32 0.0, %v1386
        %v1419 = vsub.f32 0.0, %v1387
        %v1420 = vsub.f32 0.0, %v1388
        %v1421 = vsub.f32 0.0, %v1389
        %v1422 = vsub.f32 0.0, %v1390
        %v1423 = vsub.f32 0.0, %v1391
        %v1424 = vsub.f32 0.0, %v1392
        %v1425 = vsub.f32 0.0, %v1393
        %v1426 = vsub.f32 0.0, %v1394
        %v1427 = vsub.f32 0.0, %v1395
        %v1428 = vsub.f32 0.0, %v1396
        %v1429 = vsub.f32 0.0, %v1397
        %v1430 = vsub.f32 0.0, %v1398
        %v1431 = vsub.f32 0.0, %v1399
        %v1432 = vmul.f32 %v1400, 1.442695
        %v1433 = vpow.pop %v1432
        %v1434 = vmul.f32 %v1401, 1.442695
        %v1435 = vpow.pop %v1434
        %v1436 = vmul.f32 %v1402, 1.442695
        %v1437 = vpow.pop %v1436
        %v1438 = vmul.f32 %v1403, 1.442695
        %v1439 = vpow.pop %v1438
        %v1440 = vmul.f32 %v1404, 1.442695
        %v1441 = vpow.pop %v1440
        %v1442 = vmul.f32 %v1405, 1.442695
        %v1443 = vpow.pop %v1442
        %v1444 = vmul.f32 %v1406, 1.442695
        %v1445 = vpow.pop %v1444
        %v1446 = vmul.f32 %v1407, 1.442695
        %v1447 = vpow.pop %v1446
        %v1448 = vmul.f32 %v1408, 1.442695
        %v1449 = vpow.pop %v1448
        %v1450 = vmul.f32 %v1409, 1.442695
        %v1451 = vpow.pop %v1450
        %v1452 = vmul.f32 %v1410, 1.442695
        %v1453 = vpow.pop %v1452
        %v1454 = vmul.f32 %v1411, 1.442695
        %v1455 = vpow.pop %v1454
        %v1456 = vmul.f32 %v1412, 1.442695
        %v1457 = vpow.pop %v1456
        %v1458 = vmul.f32 %v1413, 1.442695
        %v1459 = vpow.pop %v1458
        %v1460 = vmul.f32 %v1414, 1.442695
        %v1461 = vpow.pop %v1460
        %v1462 = vmul.f32 %v1415, 1.442695
        %v1463 = vpow.pop %v1462
        %v1464 = vmul.f32 %v1416, 1.442695
        %v1465 = vpow.pop %v1464
        %v1466 = vmul.f32 %v1417, 1.442695
        %v1467 = vpow.pop %v1466
        %v1468 = vmul.f32 %v1418, 1.442695
        %v1469 = vpow.pop %v1468
        %v1470 = vmul.f32 %v1419, 1.442695
        %v1471 = vpow.pop %v1470
        %v1472 = vmul.f32 %v1420, 1.442695
        %v1473 = vpow.pop %v1472
        %v1474 = vmul.f32 %v1421, 1.442695
        %v1475 = vpow.pop %v1474
        %v1476 = vmul.f32 %v1422, 1.442695
        %v1477 = vpow.pop %v1476
        %v1478 = vmul.f32 %v1423, 1.442695
        %v1479 = vpow.pop %v1478
        %v1480 = vmul.f32 %v1424, 1.442695
        %v1481 = vpow.pop %v1480
        %v1482 = vmul.f32 %v1425, 1.442695
        %v1483 = vpow.pop %v1482
        %v1484 = vmul.f32 %v1426, 1.442695
        %v1485 = vpow.pop %v1484
        %v1486 = vmul.f32 %v1427, 1.442695
        %v1487 = vpow.pop %v1486
        %v1488 = vmul.f32 %v1428, 1.442695
        %v1489 = vpow.pop %v1488
        %v1490 = vmul.f32 %v1429, 1.442695
        %v1491 = vpow.pop %v1490
        %v1492 = vmul.f32 %v1430, 1.442695
        %v1493 = vpow.pop %v1492
        %v1494 = vmul.f32 %v1431, 1.442695
        %v1495 = vpow.pop %v1494
        %v1496 = vadd.f32 %v1433, 1.0
        %v1497 = vadd.f32 %v1435, 1.0
        %v1498 = vadd.f32 %v1437, 1.0
        %v1499 = vadd.f32 %v1439, 1.0
        %v1500 = vadd.f32 %v1441, 1.0
        %v1501 = vadd.f32 %v1443, 1.0
        %v1502 = vadd.f32 %v1445, 1.0
        %v1503 = vadd.f32 %v1447, 1.0
        %v1504 = vadd.f32 %v1449, 1.0
        %v1505 = vadd.f32 %v1451, 1.0
        %v1506 = vadd.f32 %v1453, 1.0
        %v1507 = vadd.f32 %v1455, 1.0
        %v1508 = vadd.f32 %v1457, 1.0
        %v1509 = vadd.f32 %v1459, 1.0
        %v1510 = vadd.f32 %v1461, 1.0
        %v1511 = vadd.f32 %v1463, 1.0
        %v1512 = vadd.f32 %v1465, 1.0
        %v1513 = vadd.f32 %v1467, 1.0
        %v1514 = vadd.f32 %v1469, 1.0
        %v1515 = vadd.f32 %v1471, 1.0
        %v1516 = vadd.f32 %v1473, 1.0
        %v1517 = vadd.f32 %v1475, 1.0
        %v1518 = vadd.f32 %v1477, 1.0
        %v1519 = vadd.f32 %v1479, 1.0
        %v1520 = vadd.f32 %v1481, 1.0
        %v1521 = vadd.f32 %v1483, 1.0
        %v1522 = vadd.f32 %v1485, 1.0
        %v1523 = vadd.f32 %v1487, 1.0
        %v1524 = vadd.f32 %v1489, 1.0
        %v1525 = vadd.f32 %v1491, 1.0
        %v1526 = vadd.f32 %v1493, 1.0
        %v1527 = vadd.f32 %v1495, 1.0
        %v1528 = vrcp.pop %v1496
        %v1529 = vrcp.pop %v1497
        %v1530 = vrcp.pop %v1498
        %v1531 = vrcp.pop %v1499
        %v1532 = vrcp.pop %v1500
        %v1533 = vrcp.pop %v1501
        %v1534 = vrcp.pop %v1502
        %v1535 = vrcp.pop %v1503
        %v1536 = vrcp.pop %v1504
        %v1537 = vrcp.pop %v1505
        %v1538 = vrcp.pop %v1506
        %v1539 = vrcp.pop %v1507
        %v1540 = vrcp.pop %v1508
        %v1541 = vrcp.pop %v1509
        %v1542 = vrcp.pop %v1510
        %v1543 = vrcp.pop %v1511
        %v1544 = vrcp.pop %v1512
        %v1545 = vrcp.pop %v1513
        %v1546 = vrcp.pop %v1514
        %v1547 = vrcp.pop %v1515
        %v1548 = vrcp.pop %v1516
        %v1549 = vrcp.pop %v1517
        %v1550 = vrcp.pop %v1518
        %v1551 = vrcp.pop %v1519
        %v1552 = vrcp.pop %v1520
        %v1553 = vrcp.pop %v1521
        %v1554 = vrcp.pop %v1522
        %v1555 = vrcp.pop %v1523
        %v1556 = vrcp.pop %v1524
        %v1557 = vrcp.pop %v1525
        %v1558 = vrcp.pop %v1526
        %v1559 = vrcp.pop %v1527
        %v1560 = vmul.f32 %v1368, %v1528
        %v1561 = vmul.f32 %v1369, %v1529
        %v1562 = vmul.f32 %v1370, %v1530
        %v1563 = vmul.f32 %v1371, %v1531
        %v1564 = vmul.f32 %v1372, %v1532
        %v1565 = vmul.f32 %v1373, %v1533
        %v1566 = vmul.f32 %v1374, %v1534
        %v1567 = vmul.f32 %v1375, %v1535
        %v1568 = vmul.f32 %v1376, %v1536
        %v1569 = vmul.f32 %v1377, %v1537
        %v1570 = vmul.f32 %v1378, %v1538
        %v1571 = vmul.f32 %v1379, %v1539
        %v1572 = vmul.f32 %v1380, %v1540
        %v1573 = vmul.f32 %v1381, %v1541
        %v1574 = vmul.f32 %v1382, %v1542
        %v1575 = vmul.f32 %v1383, %v1543
        %v1576 = vmul.f32 %v1384, %v1544
        %v1577 = vmul.f32 %v1385, %v1545
        %v1578 = vmul.f32 %v1386, %v1546
        %v1579 = vmul.f32 %v1387, %v1547
        %v1580 = vmul.f32 %v1388, %v1548
        %v1581 = vmul.f32 %v1389, %v1549
        %v1582 = vmul.f32 %v1390, %v1550
        %v1583 = vmul.f32 %v1391, %v1551
        %v1584 = vmul.f32 %v1392, %v1552
        %v1585 = vmul.f32 %v1393, %v1553
        %v1586 = vmul.f32 %v1394, %v1554
        %v1587 = vmul.f32 %v1395, %v1555
        %v1588 = vmul.f32 %v1396, %v1556
        %v1589 = vmul.f32 %v1397, %v1557
        %v1590 = vmul.f32 %v1398, %v1558
        %v1591 = vmul.f32 %v1399, %v1559
        %v1592 = vpack.c.bf16 %v1561, %v1560
        %v1593 = vpack.c.bf16 %v1563, %v1562
        %v1594 = vpack.c.bf16 %v1565, %v1564
        %v1595 = vpack.c.bf16 %v1567, %v1566
        %v1596 = vpack.c.bf16 %v1569, %v1568
        %v1597 = vpack.c.bf16 %v1571, %v1570
        %v1598 = vpack.c.bf16 %v1573, %v1572
        %v1599 = vpack.c.bf16 %v1575, %v1574
        %v1600 = vpack.c.bf16 %v1577, %v1576
        %v1601 = vpack.c.bf16 %v1579, %v1578
        %v1602 = vpack.c.bf16 %v1581, %v1580
        %v1603 = vpack.c.bf16 %v1583, %v1582
        %v1604 = vpack.c.bf16 %v1585, %v1584
        %v1605 = vpack.c.bf16 %v1587, %v1586
        %v1606 = vpack.c.bf16 %v1589, %v1588
        %v1607 = vpack.c.bf16 %v1591, %v1590
        %v1608 = vld [vmem:[#allocation5] sm:$0xff]
        %v1609 = vld [vmem:[#allocation5 + $0x8] sm:$0xff]
        %v1610 = vld [vmem:[#allocation5 + $0x10] sm:$0xff]
        %v1611 = vld [vmem:[#allocation5 + $0x18] sm:$0xff]
        %v1612 = vld [vmem:[#allocation5 + $0x20] sm:$0xff]
        %v1613 = vld [vmem:[#allocation5 + $0x28] sm:$0xff]
        %v1614 = vld [vmem:[#allocation5 + $0x30] sm:$0xff]
        %v1615 = vld [vmem:[#allocation5 + $0x38] sm:$0xff]
        %v1616 = vld [vmem:[#allocation5 + $0x40] sm:$0xff]
        %v1617 = vld [vmem:[#allocation5 + $0x48] sm:$0xff]
        %v1618 = vld [vmem:[#allocation5 + $0x50] sm:$0xff]
        %v1619 = vld [vmem:[#allocation5 + $0x58] sm:$0xff]
        %v1620 = vld [vmem:[#allocation5 + $0x60] sm:$0xff]
        %v1621 = vld [vmem:[#allocation5 + $0x68] sm:$0xff]
        %v1622 = vld [vmem:[#allocation5 + $0x70] sm:$0xff]
        %v1623 = vld [vmem:[#allocation5 + $0x78] sm:$0xff]
        %v1624 = vld [vmem:[#allocation5 + $0x80] sm:$0xff]
        %v1625 = vld [vmem:[#allocation5 + $0x88] sm:$0xff]
        %v1626 = vld [vmem:[#allocation5 + $0x90] sm:$0xff]
        %v1627 = vld [vmem:[#allocation5 + $0x98] sm:$0xff]
        %v1628 = vld [vmem:[#allocation5 + $0xa0] sm:$0xff]
        %v1629 = vld [vmem:[#allocation5 + $0xa8] sm:$0xff]
        %v1630 = vld [vmem:[#allocation5 + $0xb0] sm:$0xff]
        %v1631 = vld [vmem:[#allocation5 + $0xb8] sm:$0xff]
        %v1632 = vld [vmem:[#allocation5 + $0xc0] sm:$0xff]
        %v1633 = vld [vmem:[#allocation5 + $0xc8] sm:$0xff]
        %v1634 = vld [vmem:[#allocation5 + $0xd0] sm:$0xff]
        %v1635 = vld [vmem:[#allocation5 + $0xd8] sm:$0xff]
        %v1636 = vld [vmem:[#allocation5 + $0xe0] sm:$0xff]
        %v1637 = vld [vmem:[#allocation5 + $0xe8] sm:$0xff]
        %v1638 = vld [vmem:[#allocation5 + $0xf0] sm:$0xff]
        %v1639 = vld [vmem:[#allocation5 + $0xf8] sm:$0xff]
        %v1640 = vld [vmem:[%s5] sm:$0xf]
        %v1642 = vlaneseq
        %v1643 = vshrl.u32 %v1642, 7
        %v1644 = vsub.s32 0, %v1643
        %v1645 = vrot.slane %v1640, %v1644
        %v1646 = vlaneseq
        %v1647 = vshrl.u32 %v1646, 7
        %v1648 = vsub.s32 1, %v1647
        %v1649 = vrot.slane %v1640, %v1648
        %v1650 = vlaneseq
        %v1651 = vshrl.u32 %v1650, 7
        %v1652 = vsub.s32 2, %v1651
        %v1653 = vrot.slane %v1640, %v1652
        %v1654 = vlaneseq
        %v1655 = vshrl.u32 %v1654, 7
        %v1656 = vsub.s32 3, %v1655
        %v1657 = vrot.slane %v1640, %v1656
        %v1694 = vunpack.c.l.b16 %v1608
        %v1695 = vunpack.c.h.b16 %v1608
        %v1696 = vunpack.c.l.b16 %v1609
        %v1697 = vunpack.c.h.b16 %v1609
        %v1698 = vunpack.c.l.b16 %v1610
        %v1699 = vunpack.c.h.b16 %v1610
        %v1700 = vunpack.c.l.b16 %v1611
        %v1701 = vunpack.c.h.b16 %v1611
        %v1702 = vunpack.c.l.b16 %v1612
        %v1703 = vunpack.c.h.b16 %v1612
        %v1704 = vunpack.c.l.b16 %v1613
        %v1705 = vunpack.c.h.b16 %v1613
        %v1706 = vunpack.c.l.b16 %v1614
        %v1707 = vunpack.c.h.b16 %v1614
        %v1708 = vunpack.c.l.b16 %v1615
        %v1709 = vunpack.c.h.b16 %v1615
        %v1710 = vunpack.c.l.b16 %v1616
        %v1711 = vunpack.c.h.b16 %v1616
        %v1712 = vunpack.c.l.b16 %v1617
        %v1713 = vunpack.c.h.b16 %v1617
        %v1714 = vunpack.c.l.b16 %v1618
        %v1715 = vunpack.c.h.b16 %v1618
        %v1716 = vunpack.c.l.b16 %v1619
        %v1717 = vunpack.c.h.b16 %v1619
        %v1718 = vunpack.c.l.b16 %v1620
        %v1719 = vunpack.c.h.b16 %v1620
        %v1720 = vunpack.c.l.b16 %v1621
        %v1721 = vunpack.c.h.b16 %v1621
        %v1722 = vunpack.c.l.b16 %v1622
        %v1723 = vunpack.c.h.b16 %v1622
        %v1724 = vunpack.c.l.b16 %v1623
        %v1725 = vunpack.c.h.b16 %v1623
        %v1726 = vunpack.c.l.b16 %v1624
        %v1727 = vunpack.c.h.b16 %v1624
        %v1728 = vunpack.c.l.b16 %v1625
        %v1729 = vunpack.c.h.b16 %v1625
        %v1730 = vunpack.c.l.b16 %v1626
        %v1731 = vunpack.c.h.b16 %v1626
        %v1732 = vunpack.c.l.b16 %v1627
        %v1733 = vunpack.c.h.b16 %v1627
        %v1734 = vunpack.c.l.b16 %v1628
        %v1735 = vunpack.c.h.b16 %v1628
        %v1736 = vunpack.c.l.b16 %v1629
        %v1737 = vunpack.c.h.b16 %v1629
        %v1738 = vunpack.c.l.b16 %v1630
        %v1739 = vunpack.c.h.b16 %v1630
        %v1740 = vunpack.c.l.b16 %v1631
        %v1741 = vunpack.c.h.b16 %v1631
        %v1742 = vunpack.c.l.b16 %v1632
        %v1743 = vunpack.c.h.b16 %v1632
        %v1744 = vunpack.c.l.b16 %v1633
        %v1745 = vunpack.c.h.b16 %v1633
        %v1746 = vunpack.c.l.b16 %v1634
        %v1747 = vunpack.c.h.b16 %v1634
        %v1748 = vunpack.c.l.b16 %v1635
        %v1749 = vunpack.c.h.b16 %v1635
        %v1750 = vunpack.c.l.b16 %v1636
        %v1751 = vunpack.c.h.b16 %v1636
        %v1752 = vunpack.c.l.b16 %v1637
        %v1753 = vunpack.c.h.b16 %v1637
        %v1754 = vunpack.c.l.b16 %v1638
        %v1755 = vunpack.c.h.b16 %v1638
        %v1756 = vunpack.c.l.b16 %v1639
        %v1757 = vunpack.c.h.b16 %v1639
        %v1758 = vpack.c.b16 %v1698, %v1694
        %v1759 = vpack.c.b16 %v1699, %v1695
        %v1760 = vpack.c.b16 %v1700, %v1696
        %v1761 = vpack.c.b16 %v1701, %v1697
        %v1762 = vpack.c.b16 %v1706, %v1702
        %v1763 = vpack.c.b16 %v1707, %v1703
        %v1764 = vpack.c.b16 %v1708, %v1704
        %v1765 = vpack.c.b16 %v1709, %v1705
        %v1766 = vpack.c.b16 %v1714, %v1710
        %v1767 = vpack.c.b16 %v1715, %v1711
        %v1768 = vpack.c.b16 %v1716, %v1712
        %v1769 = vpack.c.b16 %v1717, %v1713
        %v1770 = vpack.c.b16 %v1722, %v1718
        %v1771 = vpack.c.b16 %v1723, %v1719
        %v1772 = vpack.c.b16 %v1724, %v1720
        %v1773 = vpack.c.b16 %v1725, %v1721
        %v1774 = vpack.c.b16 %v1730, %v1726
        %v1775 = vpack.c.b16 %v1731, %v1727
        %v1776 = vpack.c.b16 %v1732, %v1728
        %v1777 = vpack.c.b16 %v1733, %v1729
        %v1778 = vpack.c.b16 %v1738, %v1734
        %v1779 = vpack.c.b16 %v1739, %v1735
        %v1780 = vpack.c.b16 %v1740, %v1736
        %v1781 = vpack.c.b16 %v1741, %v1737
        %v1782 = vpack.c.b16 %v1746, %v1742
        %v1783 = vpack.c.b16 %v1747, %v1743
        %v1784 = vpack.c.b16 %v1748, %v1744
        %v1785 = vpack.c.b16 %v1749, %v1745
        %v1786 = vpack.c.b16 %v1754, %v1750
        %v1787 = vpack.c.b16 %v1755, %v1751
        %v1788 = vpack.c.b16 %v1756, %v1752
        %v1789 = vpack.c.b16 %v1757, %v1753
        %1822 = vmatprep.subr.bf16.mxu0 %v1759
        %1823 = vmatpush1.bf16.msra.mxu0 %v1758
        %1824 = vmatprep.subr.bf16.mxu0 %v1763
        %1825 = vmatpush1.bf16.msra.mxu0 %v1762
        %1826 = vmatprep.subr.bf16.mxu0 %v1767
        %1827 = vmatpush1.bf16.msra.mxu0 %v1766
        %1828 = vmatprep.subr.bf16.mxu0 %v1771
        %1829 = vmatpush1.bf16.msra.mxu0 %v1770
        %1830 = vmatprep.subr.bf16.mxu0 %v1775
        %1831 = vmatpush1.bf16.msra.mxu0 %v1774
        %1832 = vmatprep.subr.bf16.mxu0 %v1779
        %1833 = vmatpush1.bf16.msra.mxu0 %v1778
        %1834 = vmatprep.subr.bf16.mxu0 %v1783
        %1835 = vmatpush1.bf16.msra.mxu0 %v1782
        %1836 = vmatprep.subr.bf16.mxu0 %v1787
        %1837 = vmatpush1.bf16.msra.mxu0 %v1786
        %1838 = vmatprep.subr.bf16.mxu0 0
        %1839 = vmatpush1.bf16.msra.mxu0 0
        %1840 = vmatprep.subr.bf16.mxu0 0
        %1841 = vmatpush1.bf16.msra.mxu0 0
        %1842 = vmatprep.subr.bf16.mxu0 0
        %1843 = vmatpush1.bf16.msra.mxu0 0
        %1844 = vmatprep.subr.bf16.mxu0 0
        %1845 = vmatpush1.bf16.msra.mxu0 0
        %1846 = vmatprep.subr.bf16.mxu0 0
        %1847 = vmatpush1.bf16.msra.mxu0 0
        %1848 = vmatprep.subr.bf16.mxu0 0
        %1849 = vmatpush1.bf16.msra.mxu0 0
        %1850 = vmatprep.subr.bf16.mxu0 0
        %1851 = vmatpush1.bf16.msra.mxu0 0
        %1852 = vmatprep.subr.bf16.mxu0 0
        %1853 = vmatpush1.bf16.msra.mxu0 0
        %1854 = vmatprep.mubr.bf16.mxu0 0
        %1855 = vmatmul.mubr.bf16.gmra.mrb[0].mxu0 %v1592
        %v1856 = vpop.f32.mrb[0].mxu0
        %v1857 = vadd.f32 %v1645, %v1856
        %v1858 = vpop.f32.mrb[0].mxu0
        %v1859 = vadd.f32 %v1649, %v1858
        %v1860 = vpop.f32.mrb[0].mxu0
        %v1861 = vadd.f32 %v1645, %v1860
        %v1862 = vpop.f32.mrb[0].mxu0
        %v1863 = vadd.f32 %v1649, %v1862
        %1864 = vmatprep.mubr.bf16.mxu0 0
        %1865 = vmatmul.mubr.bf16.gmra.mrb[0].mxu0 %v1593
        %v1866 = vpop.f32.mrb[0].mxu0
        %v1867 = vadd.f32 %v1645, %v1866
        %v1868 = vpop.f32.mrb[0].mxu0
        %v1869 = vadd.f32 %v1649, %v1868
        %v1870 = vpop.f32.mrb[0].mxu0
        %v1871 = vadd.f32 %v1645, %v1870
        %v1872 = vpop.f32.mrb[0].mxu0
        %v1873 = vadd.f32 %v1649, %v1872
        %1874 = vmatprep.mubr.bf16.mxu0 0
        %1875 = vmatmul.mubr.bf16.gmra.mrb[0].mxu0 %v1594
        %v1876 = vpop.f32.mrb[0].mxu0
        %v1877 = vadd.f32 %v1645, %v1876
        %v1878 = vpop.f32.mrb[0].mxu0
        %v1879 = vadd.f32 %v1649, %v1878
        %v1880 = vpop.f32.mrb[0].mxu0
        %v1881 = vadd.f32 %v1645, %v1880
        %v1882 = vpop.f32.mrb[0].mxu0
        %v1883 = vadd.f32 %v1649, %v1882
        %1884 = vmatprep.mubr.bf16.mxu0 0
        %1885 = vmatmul.mubr.bf16.gmra.mrb[0].mxu0 %v1595
        %v1886 = vpop.f32.mrb[0].mxu0
        %v1887 = vadd.f32 %v1645, %v1886
        %v1888 = vpop.f32.mrb[0].mxu0
        %v1889 = vadd.f32 %v1649, %v1888
        %v1890 = vpop.f32.mrb[0].mxu0
        %v1891 = vadd.f32 %v1645, %v1890
        %v1892 = vpop.f32.mrb[0].mxu0
        %v1893 = vadd.f32 %v1649, %v1892
        %1894 = vmatprep.mubr.bf16.mxu0 0
        %1895 = vmatmul.mubr.bf16.gmra.mrb[0].mxu0 %v1596
        %v1896 = vpop.f32.mrb[0].mxu0
        %v1897 = vadd.f32 %v1645, %v1896
        %v1898 = vpop.f32.mrb[0].mxu0
        %v1899 = vadd.f32 %v1649, %v1898
        %v1900 = vpop.f32.mrb[0].mxu0
        %v1901 = vadd.f32 %v1645, %v1900
        %v1902 = vpop.f32.mrb[0].mxu0
        %v1903 = vadd.f32 %v1649, %v1902
        %1904 = vmatprep.mubr.bf16.mxu0 0
        %1905 = vmatmul.mubr.bf16.gmra.mrb[0].mxu0 %v1597
        %v1906 = vpop.f32.mrb[0].mxu0
        %v1907 = vadd.f32 %v1645, %v1906
        %v1908 = vpop.f32.mrb[0].mxu0
        %v1909 = vadd.f32 %v1649, %v1908
        %v1910 = vpop.f32.mrb[0].mxu0
        %v1911 = vadd.f32 %v1645, %v1910
        %v1912 = vpop.f32.mrb[0].mxu0
        %v1913 = vadd.f32 %v1649, %v1912
        %1914 = vmatprep.mubr.bf16.mxu0 0
        %1915 = vmatmul.mubr.bf16.gmra.mrb[0].mxu0 %v1598
        %v1916 = vpop.f32.mrb[0].mxu0
        %v1917 = vadd.f32 %v1645, %v1916
        %v1918 = vpop.f32.mrb[0].mxu0
        %v1919 = vadd.f32 %v1649, %v1918
        %v1920 = vpop.f32.mrb[0].mxu0
        %v1921 = vadd.f32 %v1645, %v1920
        %v1922 = vpop.f32.mrb[0].mxu0
        %v1923 = vadd.f32 %v1649, %v1922
        %1924 = vmatprep.mubr.bf16.mxu0 0
        %1925 = vmatmul.mubr.bf16.gmra.mrb[0].mxu0 %v1599
        %v1926 = vpop.f32.mrb[0].mxu0
        %v1927 = vadd.f32 %v1645, %v1926
        %v1928 = vpop.f32.mrb[0].mxu0
        %v1929 = vadd.f32 %v1649, %v1928
        %v1930 = vpop.f32.mrb[0].mxu0
        %v1931 = vadd.f32 %v1645, %v1930
        %v1932 = vpop.f32.mrb[0].mxu0
        %v1933 = vadd.f32 %v1649, %v1932
        %1934 = vmatprep.mubr.bf16.mxu0 0
        %1935 = vmatmul.mubr.bf16.gmra.mrb[0].mxu0 %v1600
        %v1936 = vpop.f32.mrb[0].mxu0
        %v1937 = vadd.f32 %v1645, %v1936
        %v1938 = vpop.f32.mrb[0].mxu0
        %v1939 = vadd.f32 %v1649, %v1938
        %v1940 = vpop.f32.mrb[0].mxu0
        %v1941 = vadd.f32 %v1645, %v1940
        %v1942 = vpop.f32.mrb[0].mxu0
        %v1943 = vadd.f32 %v1649, %v1942
        %1944 = vmatprep.mubr.bf16.mxu0 0
        %1945 = vmatmul.mubr.bf16.gmra.mrb[0].mxu0 %v1601
        %v1946 = vpop.f32.mrb[0].mxu0
        %v1947 = vadd.f32 %v1645, %v1946
        %v1948 = vpop.f32.mrb[0].mxu0
        %v1949 = vadd.f32 %v1649, %v1948
        %v1950 = vpop.f32.mrb[0].mxu0
        %v1951 = vadd.f32 %v1645, %v1950
        %v1952 = vpop.f32.mrb[0].mxu0
        %v1953 = vadd.f32 %v1649, %v1952
        %1954 = vmatprep.mubr.bf16.mxu0 0
        %1955 = vmatmul.mubr.bf16.gmra.mrb[0].mxu0 %v1602
        %v1956 = vpop.f32.mrb[0].mxu0
        %v1957 = vadd.f32 %v1645, %v1956
        %v1958 = vpop.f32.mrb[0].mxu0
        %v1959 = vadd.f32 %v1649, %v1958
        %v1960 = vpop.f32.mrb[0].mxu0
        %v1961 = vadd.f32 %v1645, %v1960
        %v1962 = vpop.f32.mrb[0].mxu0
        %v1963 = vadd.f32 %v1649, %v1962
        %1964 = vmatprep.mubr.bf16.mxu0 0
        %1965 = vmatmul.mubr.bf16.gmra.mrb[0].mxu0 %v1603
        %v1966 = vpop.f32.mrb[0].mxu0
        %v1967 = vadd.f32 %v1645, %v1966
        %v1968 = vpop.f32.mrb[0].mxu0
        %v1969 = vadd.f32 %v1649, %v1968
        %v1970 = vpop.f32.mrb[0].mxu0
        %v1971 = vadd.f32 %v1645, %v1970
        %v1972 = vpop.f32.mrb[0].mxu0
        %v1973 = vadd.f32 %v1649, %v1972
        %1974 = vmatprep.mubr.bf16.mxu0 0
        %1975 = vmatmul.mubr.bf16.gmra.mrb[0].mxu0 %v1604
        %v1976 = vpop.f32.mrb[0].mxu0
        %v1977 = vadd.f32 %v1645, %v1976
        %v1978 = vpop.f32.mrb[0].mxu0
        %v1979 = vadd.f32 %v1649, %v1978
        %v1980 = vpop.f32.mrb[0].mxu0
        %v1981 = vadd.f32 %v1645, %v1980
        %v1982 = vpop.f32.mrb[0].mxu0
        %v1983 = vadd.f32 %v1649, %v1982
        %1984 = vmatprep.mubr.bf16.mxu0 0
        %1985 = vmatmul.mubr.bf16.gmra.mrb[0].mxu0 %v1605
        %v1986 = vpop.f32.mrb[0].mxu0
        %v1987 = vadd.f32 %v1645, %v1986
        %v1988 = vpop.f32.mrb[0].mxu0
        %v1989 = vadd.f32 %v1649, %v1988
        %v1990 = vpop.f32.mrb[0].mxu0
        %v1991 = vadd.f32 %v1645, %v1990
        %v1992 = vpop.f32.mrb[0].mxu0
        %v1993 = vadd.f32 %v1649, %v1992
        %1994 = vmatprep.mubr.bf16.mxu0 0
        %1995 = vmatmul.mubr.bf16.gmra.mrb[0].mxu0 %v1606
        %v1996 = vpop.f32.mrb[0].mxu0
        %v1997 = vadd.f32 %v1645, %v1996
        %v1998 = vpop.f32.mrb[0].mxu0
        %v1999 = vadd.f32 %v1649, %v1998
        %v2000 = vpop.f32.mrb[0].mxu0
        %v2001 = vadd.f32 %v1645, %v2000
        %v2002 = vpop.f32.mrb[0].mxu0
        %v2003 = vadd.f32 %v1649, %v2002
        %2004 = vmatprep.mubr.bf16.mxu0 0
        %2005 = vmatmul.mubr.bf16.gmra.mrb[0].mxu0 %v1607
        %v2006 = vpop.f32.mrb[0].mxu0
        %v2007 = vadd.f32 %v1645, %v2006
        %v2008 = vpop.f32.mrb[0].mxu0
        %v2009 = vadd.f32 %v1649, %v2008
        %v2010 = vpop.f32.mrb[0].mxu0
        %v2011 = vadd.f32 %v1645, %v2010
        %v2012 = vpop.f32.mrb[0].mxu0
        %v2013 = vadd.f32 %v1649, %v2012
        %2014 = vdwg.mxu0
        %2015 = vmatprep.subr.bf16.mxu0 %v1761
        %2016 = vmatpush1.bf16.msra.mxu0 %v1760
        %2017 = vmatprep.subr.bf16.mxu0 %v1765
        %2018 = vmatpush1.bf16.msra.mxu0 %v1764
        %2019 = vmatprep.subr.bf16.mxu0 %v1769
        %2020 = vmatpush1.bf16.msra.mxu0 %v1768
        %2021 = vmatprep.subr.bf16.mxu0 %v1773
        %2022 = vmatpush1.bf16.msra.mxu0 %v1772
        %2023 = vmatprep.subr.bf16.mxu0 %v1777
        %2024 = vmatpush1.bf16.msra.mxu0 %v1776
        %2025 = vmatprep.subr.bf16.mxu0 %v1781
        %2026 = vmatpush1.bf16.msra.mxu0 %v1780
        %2027 = vmatprep.subr.bf16.mxu0 %v1785
        %2028 = vmatpush1.bf16.msra.mxu0 %v1784
        %2029 = vmatprep.subr.bf16.mxu0 %v1789
        %2030 = vmatpush1.bf16.msra.mxu0 %v1788
        %2031 = vmatprep.subr.bf16.mxu0 0
        %2032 = vmatpush1.bf16.msra.mxu0 0
        %2033 = vmatprep.subr.bf16.mxu0 0
        %2034 = vmatpush1.bf16.msra.mxu0 0
        %2035 = vmatprep.subr.bf16.mxu0 0
        %2036 = vmatpush1.bf16.msra.mxu0 0
        %2037 = vmatprep.subr.bf16.mxu0 0
        %2038 = vmatpush1.bf16.msra.mxu0 0
        %2039 = vmatprep.subr.bf16.mxu0 0
        %2040 = vmatpush1.bf16.msra.mxu0 0
        %2041 = vmatprep.subr.bf16.mxu0 0
        %2042 = vmatpush1.bf16.msra.mxu0 0
        %2043 = vmatprep.subr.bf16.mxu0 0
        %2044 = vmatpush1.bf16.msra.mxu0 0
        %2045 = vmatprep.subr.bf16.mxu0 0
        %2046 = vmatpush1.bf16.msra.mxu0 0
        %2047 = vmatprep.mubr.bf16.mxu0 0
        %2048 = vmatmul.mubr.bf16.gmra.mrb[0].mxu0 %v1592
        %v2049 = vpop.f32.mrb[0].mxu0
        %v2050 = vadd.f32 %v1653, %v2049
        %v2051 = vpop.f32.mrb[0].mxu0
        %v2052 = vadd.f32 %v1657, %v2051
        %v2053 = vpop.f32.mrb[0].mxu0
        %v2054 = vadd.f32 %v1653, %v2053
        %v2055 = vpop.f32.mrb[0].mxu0
        %v2056 = vadd.f32 %v1657, %v2055
        %2057 = vmatprep.mubr.bf16.mxu0 0
        %2058 = vmatmul.mubr.bf16.gmra.mrb[0].mxu0 %v1593
        %v2059 = vpop.f32.mrb[0].mxu0
        %v2060 = vadd.f32 %v1653, %v2059
        %v2061 = vpop.f32.mrb[0].mxu0
        %v2062 = vadd.f32 %v1657, %v2061
        %v2063 = vpop.f32.mrb[0].mxu0
        %v2064 = vadd.f32 %v1653, %v2063
        %v2065 = vpop.f32.mrb[0].mxu0
        %v2066 = vadd.f32 %v1657, %v2065
        %2067 = vmatprep.mubr.bf16.mxu0 0
        %2068 = vmatmul.mubr.bf16.gmra.mrb[0].mxu0 %v1594
        %v2069 = vpop.f32.mrb[0].mxu0
        %v2070 = vadd.f32 %v1653, %v2069
        %v2071 = vpop.f32.mrb[0].mxu0
        %v2072 = vadd.f32 %v1657, %v2071
        %v2073 = vpop.f32.mrb[0].mxu0
        %v2074 = vadd.f32 %v1653, %v2073
        %v2075 = vpop.f32.mrb[0].mxu0
        %v2076 = vadd.f32 %v1657, %v2075
        %2077 = vmatprep.mubr.bf16.mxu0 0
        %2078 = vmatmul.mubr.bf16.gmra.mrb[0].mxu0 %v1595
        %v2079 = vpop.f32.mrb[0].mxu0
        %v2080 = vadd.f32 %v1653, %v2079
        %v2081 = vpop.f32.mrb[0].mxu0
        %v2082 = vadd.f32 %v1657, %v2081
        %v2083 = vpop.f32.mrb[0].mxu0
        %v2084 = vadd.f32 %v1653, %v2083
        %v2085 = vpop.f32.mrb[0].mxu0
        %v2086 = vadd.f32 %v1657, %v2085
        %2087 = vmatprep.mubr.bf16.mxu0 0
        %2088 = vmatmul.mubr.bf16.gmra.mrb[0].mxu0 %v1596
        %v2089 = vpop.f32.mrb[0].mxu0
        %v2090 = vadd.f32 %v1653, %v2089
        %v2091 = vpop.f32.mrb[0].mxu0
        %v2092 = vadd.f32 %v1657, %v2091
        %v2093 = vpop.f32.mrb[0].mxu0
        %v2094 = vadd.f32 %v1653, %v2093
        %v2095 = vpop.f32.mrb[0].mxu0
        %v2096 = vadd.f32 %v1657, %v2095
        %2097 = vmatprep.mubr.bf16.mxu0 0
        %2098 = vmatmul.mubr.bf16.gmra.mrb[0].mxu0 %v1597
        %v2099 = vpop.f32.mrb[0].mxu0
        %v2100 = vadd.f32 %v1653, %v2099
        %v2101 = vpop.f32.mrb[0].mxu0
        %v2102 = vadd.f32 %v1657, %v2101
        %v2103 = vpop.f32.mrb[0].mxu0
        %v2104 = vadd.f32 %v1653, %v2103
        %v2105 = vpop.f32.mrb[0].mxu0
        %v2106 = vadd.f32 %v1657, %v2105
        %2107 = vmatprep.mubr.bf16.mxu0 0
        %2108 = vmatmul.mubr.bf16.gmra.mrb[0].mxu0 %v1598
        %v2109 = vpop.f32.mrb[0].mxu0
        %v2110 = vadd.f32 %v1653, %v2109
        %v2111 = vpop.f32.mrb[0].mxu0
        %v2112 = vadd.f32 %v1657, %v2111
        %v2113 = vpop.f32.mrb[0].mxu0
        %v2114 = vadd.f32 %v1653, %v2113
        %v2115 = vpop.f32.mrb[0].mxu0
        %v2116 = vadd.f32 %v1657, %v2115
        %2117 = vmatprep.mubr.bf16.mxu0 0
        %2118 = vmatmul.mubr.bf16.gmra.mrb[0].mxu0 %v1599
        %v2119 = vpop.f32.mrb[0].mxu0
        %v2120 = vadd.f32 %v1653, %v2119
        %v2121 = vpop.f32.mrb[0].mxu0
        %v2122 = vadd.f32 %v1657, %v2121
        %v2123 = vpop.f32.mrb[0].mxu0
        %v2124 = vadd.f32 %v1653, %v2123
        %v2125 = vpop.f32.mrb[0].mxu0
        %v2126 = vadd.f32 %v1657, %v2125
        %2127 = vmatprep.mubr.bf16.mxu0 0
        %2128 = vmatmul.mubr.bf16.gmra.mrb[0].mxu0 %v1600
        %v2129 = vpop.f32.mrb[0].mxu0
        %v2130 = vadd.f32 %v1653, %v2129
        %v2131 = vpop.f32.mrb[0].mxu0
        %v2132 = vadd.f32 %v1657, %v2131
        %v2133 = vpop.f32.mrb[0].mxu0
        %v2134 = vadd.f32 %v1653, %v2133
        %v2135 = vpop.f32.mrb[0].mxu0
        %v2136 = vadd.f32 %v1657, %v2135
        %2137 = vmatprep.mubr.bf16.mxu0 0
        %2138 = vmatmul.mubr.bf16.gmra.mrb[0].mxu0 %v1601
        %v2139 = vpop.f32.mrb[0].mxu0
        %v2140 = vadd.f32 %v1653, %v2139
        %v2141 = vpop.f32.mrb[0].mxu0
        %v2142 = vadd.f32 %v1657, %v2141
        %v2143 = vpop.f32.mrb[0].mxu0
        %v2144 = vadd.f32 %v1653, %v2143
        %v2145 = vpop.f32.mrb[0].mxu0
        %v2146 = vadd.f32 %v1657, %v2145
        %2147 = vmatprep.mubr.bf16.mxu0 0
        %2148 = vmatmul.mubr.bf16.gmra.mrb[0].mxu0 %v1602
        %v2149 = vpop.f32.mrb[0].mxu0
        %v2150 = vadd.f32 %v1653, %v2149
        %v2151 = vpop.f32.mrb[0].mxu0
        %v2152 = vadd.f32 %v1657, %v2151
        %v2153 = vpop.f32.mrb[0].mxu0
        %v2154 = vadd.f32 %v1653, %v2153
        %v2155 = vpop.f32.mrb[0].mxu0
        %v2156 = vadd.f32 %v1657, %v2155
        %2157 = vmatprep.mubr.bf16.mxu0 0
        %2158 = vmatmul.mubr.bf16.gmra.mrb[0].mxu0 %v1603
        %v2159 = vpop.f32.mrb[0].mxu0
        %v2160 = vadd.f32 %v1653, %v2159
        %v2161 = vpop.f32.mrb[0].mxu0
        %v2162 = vadd.f32 %v1657, %v2161
        %v2163 = vpop.f32.mrb[0].mxu0
        %v2164 = vadd.f32 %v1653, %v2163
        %v2165 = vpop.f32.mrb[0].mxu0
        %v2166 = vadd.f32 %v1657, %v2165
        %2167 = vmatprep.mubr.bf16.mxu0 0
        %2168 = vmatmul.mubr.bf16.gmra.mrb[0].mxu0 %v1604
        %v2169 = vpop.f32.mrb[0].mxu0
        %v2170 = vadd.f32 %v1653, %v2169
        %v2171 = vpop.f32.mrb[0].mxu0
        %v2172 = vadd.f32 %v1657, %v2171
        %v2173 = vpop.f32.mrb[0].mxu0
        %v2174 = vadd.f32 %v1653, %v2173
        %v2175 = vpop.f32.mrb[0].mxu0
        %v2176 = vadd.f32 %v1657, %v2175
        %2177 = vmatprep.mubr.bf16.mxu0 0
        %2178 = vmatmul.mubr.bf16.gmra.mrb[0].mxu0 %v1605
        %v2179 = vpop.f32.mrb[0].mxu0
        %v2180 = vadd.f32 %v1653, %v2179
        %v2181 = vpop.f32.mrb[0].mxu0
        %v2182 = vadd.f32 %v1657, %v2181
        %v2183 = vpop.f32.mrb[0].mxu0
        %v2184 = vadd.f32 %v1653, %v2183
        %v2185 = vpop.f32.mrb[0].mxu0
        %v2186 = vadd.f32 %v1657, %v2185
        %2187 = vmatprep.mubr.bf16.mxu0 0
        %2188 = vmatmul.mubr.bf16.gmra.mrb[0].mxu0 %v1606
        %v2189 = vpop.f32.mrb[0].mxu0
        %v2190 = vadd.f32 %v1653, %v2189
        %v2191 = vpop.f32.mrb[0].mxu0
        %v2192 = vadd.f32 %v1657, %v2191
        %v2193 = vpop.f32.mrb[0].mxu0
        %v2194 = vadd.f32 %v1653, %v2193
        %v2195 = vpop.f32.mrb[0].mxu0
        %v2196 = vadd.f32 %v1657, %v2195
        %2197 = vmatprep.mubr.bf16.mxu0 0
        %2198 = vmatmul.mubr.bf16.gmra.mrb[0].mxu0 %v1607
        %v2199 = vpop.f32.mrb[0].mxu0
        %v2200 = vadd.f32 %v1653, %v2199
        %v2201 = vpop.f32.mrb[0].mxu0
        %v2202 = vadd.f32 %v1657, %v2201
        %v2203 = vpop.f32.mrb[0].mxu0
        %v2204 = vadd.f32 %v1653, %v2203
        %v2205 = vpop.f32.mrb[0].mxu0
        %v2206 = vadd.f32 %v1657, %v2205
        %2207 = vdwg.mxu0
        %v2208 = vand.u32 2147483647, %v2050
        %v2209 = vand.u32 2147483647, %v2052
        %v2210 = vand.u32 2147483647, %v2054
        %v2211 = vand.u32 2147483647, %v2056
        %v2212 = vand.u32 2147483647, %v2060
        %v2213 = vand.u32 2147483647, %v2062
        %v2214 = vand.u32 2147483647, %v2064
        %v2215 = vand.u32 2147483647, %v2066
        %v2216 = vand.u32 2147483647, %v2070
        %v2217 = vand.u32 2147483647, %v2072
        %v2218 = vand.u32 2147483647, %v2074
        %v2219 = vand.u32 2147483647, %v2076
        %v2220 = vand.u32 2147483647, %v2080
        %v2221 = vand.u32 2147483647, %v2082
        %v2222 = vand.u32 2147483647, %v2084
        %v2223 = vand.u32 2147483647, %v2086
        %v2224 = vand.u32 2147483647, %v2090
        %v2225 = vand.u32 2147483647, %v2092
        %v2226 = vand.u32 2147483647, %v2094
        %v2227 = vand.u32 2147483647, %v2096
        %v2228 = vand.u32 2147483647, %v2100
        %v2229 = vand.u32 2147483647, %v2102
        %v2230 = vand.u32 2147483647, %v2104
        %v2231 = vand.u32 2147483647, %v2106
        %v2232 = vand.u32 2147483647, %v2110
        %v2233 = vand.u32 2147483647, %v2112
        %v2234 = vand.u32 2147483647, %v2114
        %v2235 = vand.u32 2147483647, %v2116
        %v2236 = vand.u32 2147483647, %v2120
        %v2237 = vand.u32 2147483647, %v2122
        %v2238 = vand.u32 2147483647, %v2124
        %v2239 = vand.u32 2147483647, %v2126
        %v2240 = vand.u32 2147483647, %v2130
        %v2241 = vand.u32 2147483647, %v2132
        %v2242 = vand.u32 2147483647, %v2134
        %v2243 = vand.u32 2147483647, %v2136
        %v2244 = vand.u32 2147483647, %v2140
        %v2245 = vand.u32 2147483647, %v2142
        %v2246 = vand.u32 2147483647, %v2144
        %v2247 = vand.u32 2147483647, %v2146
        %v2248 = vand.u32 2147483647, %v2150
        %v2249 = vand.u32 2147483647, %v2152
        %v2250 = vand.u32 2147483647, %v2154
        %v2251 = vand.u32 2147483647, %v2156
        %v2252 = vand.u32 2147483647, %v2160
        %v2253 = vand.u32 2147483647, %v2162
        %v2254 = vand.u32 2147483647, %v2164
        %v2255 = vand.u32 2147483647, %v2166
        %v2256 = vand.u32 2147483647, %v2170
        %v2257 = vand.u32 2147483647, %v2172
        %v2258 = vand.u32 2147483647, %v2174
        %v2259 = vand.u32 2147483647, %v2176
        %v2260 = vand.u32 2147483647, %v2180
        %v2261 = vand.u32 2147483647, %v2182
        %v2262 = vand.u32 2147483647, %v2184
        %v2263 = vand.u32 2147483647, %v2186
        %v2264 = vand.u32 2147483647, %v2190
        %v2265 = vand.u32 2147483647, %v2192
        %v2266 = vand.u32 2147483647, %v2194
        %v2267 = vand.u32 2147483647, %v2196
        %v2268 = vand.u32 2147483647, %v2200
        %v2269 = vand.u32 2147483647, %v2202
        %v2270 = vand.u32 2147483647, %v2204
        %v2271 = vand.u32 2147483647, %v2206
        %v2272 = vsub.f32 0.0, %v2208
        %v2273 = vsub.f32 0.0, %v2209
        %v2274 = vsub.f32 0.0, %v2210
        %v2275 = vsub.f32 0.0, %v2211
        %v2276 = vsub.f32 0.0, %v2212
        %v2277 = vsub.f32 0.0, %v2213
        %v2278 = vsub.f32 0.0, %v2214
        %v2279 = vsub.f32 0.0, %v2215
        %v2280 = vsub.f32 0.0, %v2216
        %v2281 = vsub.f32 0.0, %v2217
        %v2282 = vsub.f32 0.0, %v2218
        %v2283 = vsub.f32 0.0, %v2219
        %v2284 = vsub.f32 0.0, %v2220
        %v2285 = vsub.f32 0.0, %v2221
        %v2286 = vsub.f32 0.0, %v2222
        %v2287 = vsub.f32 0.0, %v2223
        %v2288 = vsub.f32 0.0, %v2224
        %v2289 = vsub.f32 0.0, %v2225
        %v2290 = vsub.f32 0.0, %v2226
        %v2291 = vsub.f32 0.0, %v2227
        %v2292 = vsub.f32 0.0, %v2228
        %v2293 = vsub.f32 0.0, %v2229
        %v2294 = vsub.f32 0.0, %v2230
        %v2295 = vsub.f32 0.0, %v2231
        %v2296 = vsub.f32 0.0, %v2232
        %v2297 = vsub.f32 0.0, %v2233
        %v2298 = vsub.f32 0.0, %v2234
        %v2299 = vsub.f32 0.0, %v2235
        %v2300 = vsub.f32 0.0, %v2236
        %v2301 = vsub.f32 0.0, %v2237
        %v2302 = vsub.f32 0.0, %v2238
        %v2303 = vsub.f32 0.0, %v2239
        %v2304 = vsub.f32 0.0, %v2240
        %v2305 = vsub.f32 0.0, %v2241
        %v2306 = vsub.f32 0.0, %v2242
        %v2307 = vsub.f32 0.0, %v2243
        %v2308 = vsub.f32 0.0, %v2244
        %v2309 = vsub.f32 0.0, %v2245
        %v2310 = vsub.f32 0.0, %v2246
        %v2311 = vsub.f32 0.0, %v2247
        %v2312 = vsub.f32 0.0, %v2248
        %v2313 = vsub.f32 0.0, %v2249
        %v2314 = vsub.f32 0.0, %v2250
        %v2315 = vsub.f32 0.0, %v2251
        %v2316 = vsub.f32 0.0, %v2252
        %v2317 = vsub.f32 0.0, %v2253
        %v2318 = vsub.f32 0.0, %v2254
        %v2319 = vsub.f32 0.0, %v2255
        %v2320 = vsub.f32 0.0, %v2256
        %v2321 = vsub.f32 0.0, %v2257
        %v2322 = vsub.f32 0.0, %v2258
        %v2323 = vsub.f32 0.0, %v2259
        %v2324 = vsub.f32 0.0, %v2260
        %v2325 = vsub.f32 0.0, %v2261
        %v2326 = vsub.f32 0.0, %v2262
        %v2327 = vsub.f32 0.0, %v2263
        %v2328 = vsub.f32 0.0, %v2264
        %v2329 = vsub.f32 0.0, %v2265
        %v2330 = vsub.f32 0.0, %v2266
        %v2331 = vsub.f32 0.0, %v2267
        %v2332 = vsub.f32 0.0, %v2268
        %v2333 = vsub.f32 0.0, %v2269
        %v2334 = vsub.f32 0.0, %v2270
        %v2335 = vsub.f32 0.0, %v2271
        %v2336 = vmul.f32 %v2272, 1.442695
        %v2337 = vpow.pop %v2336
        %v2338 = vmul.f32 %v2273, 1.442695
        %v2339 = vpow.pop %v2338
        %v2340 = vmul.f32 %v2274, 1.442695
        %v2341 = vpow.pop %v2340
        %v2342 = vmul.f32 %v2275, 1.442695
        %v2343 = vpow.pop %v2342
        %v2344 = vmul.f32 %v2276, 1.442695
        %v2345 = vpow.pop %v2344
        %v2346 = vmul.f32 %v2277, 1.442695
        %v2347 = vpow.pop %v2346
        %v2348 = vmul.f32 %v2278, 1.442695
        %v2349 = vpow.pop %v2348
        %v2350 = vmul.f32 %v2279, 1.442695
        %v2351 = vpow.pop %v2350
        %v2352 = vmul.f32 %v2280, 1.442695
        %v2353 = vpow.pop %v2352
        %v2354 = vmul.f32 %v2281, 1.442695
        %v2355 = vpow.pop %v2354
        %v2356 = vmul.f32 %v2282, 1.442695
        %v2357 = vpow.pop %v2356
        %v2358 = vmul.f32 %v2283, 1.442695
        %v2359 = vpow.pop %v2358
        %v2360 = vmul.f32 %v2284, 1.442695
        %v2361 = vpow.pop %v2360
        %v2362 = vmul.f32 %v2285, 1.442695
        %v2363 = vpow.pop %v2362
        %v2364 = vmul.f32 %v2286, 1.442695
        %v2365 = vpow.pop %v2364
        %v2366 = vmul.f32 %v2287, 1.442695
        %v2367 = vpow.pop %v2366
        %v2368 = vmul.f32 %v2288, 1.442695
        %v2369 = vpow.pop %v2368
        %v2370 = vmul.f32 %v2289, 1.442695
        %v2371 = vpow.pop %v2370
        %v2372 = vmul.f32 %v2290, 1.442695
        %v2373 = vpow.pop %v2372
        %v2374 = vmul.f32 %v2291, 1.442695
        %v2375 = vpow.pop %v2374
        %v2376 = vmul.f32 %v2292, 1.442695
        %v2377 = vpow.pop %v2376
        %v2378 = vmul.f32 %v2293, 1.442695
        %v2379 = vpow.pop %v2378
        %v2380 = vmul.f32 %v2294, 1.442695
        %v2381 = vpow.pop %v2380
        %v2382 = vmul.f32 %v2295, 1.442695
        %v2383 = vpow.pop %v2382
        %v2384 = vmul.f32 %v2296, 1.442695
        %v2385 = vpow.pop %v2384
        %v2386 = vmul.f32 %v2297, 1.442695
        %v2387 = vpow.pop %v2386
        %v2388 = vmul.f32 %v2298, 1.442695
        %v2389 = vpow.pop %v2388
        %v2390 = vmul.f32 %v2299, 1.442695
        %v2391 = vpow.pop %v2390
        %v2392 = vmul.f32 %v2300, 1.442695
        %v2393 = vpow.pop %v2392
        %v2394 = vmul.f32 %v2301, 1.442695
        %v2395 = vpow.pop %v2394
        %v2396 = vmul.f32 %v2302, 1.442695
        %v2397 = vpow.pop %v2396
        %v2398 = vmul.f32 %v2303, 1.442695
        %v2399 = vpow.pop %v2398
        %v2400 = vmul.f32 %v2304, 1.442695
        %v2401 = vpow.pop %v2400
        %v2402 = vmul.f32 %v2305, 1.442695
        %v2403 = vpow.pop %v2402
        %v2404 = vmul.f32 %v2306, 1.442695
        %v2405 = vpow.pop %v2404
        %v2406 = vmul.f32 %v2307, 1.442695
        %v2407 = vpow.pop %v2406
        %v2408 = vmul.f32 %v2308, 1.442695
        %v2409 = vpow.pop %v2408
        %v2410 = vmul.f32 %v2309, 1.442695
        %v2411 = vpow.pop %v2410
        %v2412 = vmul.f32 %v2310, 1.442695
        %v2413 = vpow.pop %v2412
        %v2414 = vmul.f32 %v2311, 1.442695
        %v2415 = vpow.pop %v2414
        %v2416 = vmul.f32 %v2312, 1.442695
        %v2417 = vpow.pop %v2416
        %v2418 = vmul.f32 %v2313, 1.442695
        %v2419 = vpow.pop %v2418
        %v2420 = vmul.f32 %v2314, 1.442695
        %v2421 = vpow.pop %v2420
        %v2422 = vmul.f32 %v2315, 1.442695
        %v2423 = vpow.pop %v2422
        %v2424 = vmul.f32 %v2316, 1.442695
        %v2425 = vpow.pop %v2424
        %v2426 = vmul.f32 %v2317, 1.442695
        %v2427 = vpow.pop %v2426
        %v2428 = vmul.f32 %v2318, 1.442695
        %v2429 = vpow.pop %v2428
        %v2430 = vmul.f32 %v2319, 1.442695
        %v2431 = vpow.pop %v2430
        %v2432 = vmul.f32 %v2320, 1.442695
        %v2433 = vpow.pop %v2432
        %v2434 = vmul.f32 %v2321, 1.442695
        %v2435 = vpow.pop %v2434
        %v2436 = vmul.f32 %v2322, 1.442695
        %v2437 = vpow.pop %v2436
        %v2438 = vmul.f32 %v2323, 1.442695
        %v2439 = vpow.pop %v2438
        %v2440 = vmul.f32 %v2324, 1.442695
        %v2441 = vpow.pop %v2440
        %v2442 = vmul.f32 %v2325, 1.442695
        %v2443 = vpow.pop %v2442
        %v2444 = vmul.f32 %v2326, 1.442695
        %v2445 = vpow.pop %v2444
        %v2446 = vmul.f32 %v2327, 1.442695
        %v2447 = vpow.pop %v2446
        %v2448 = vmul.f32 %v2328, 1.442695
        %v2449 = vpow.pop %v2448
        %v2450 = vmul.f32 %v2329, 1.442695
        %v2451 = vpow.pop %v2450
        %v2452 = vmul.f32 %v2330, 1.442695
        %v2453 = vpow.pop %v2452
        %v2454 = vmul.f32 %v2331, 1.442695
        %v2455 = vpow.pop %v2454
        %v2456 = vmul.f32 %v2332, 1.442695
        %v2457 = vpow.pop %v2456
        %v2458 = vmul.f32 %v2333, 1.442695
        %v2459 = vpow.pop %v2458
        %v2460 = vmul.f32 %v2334, 1.442695
        %v2461 = vpow.pop %v2460
        %v2462 = vmul.f32 %v2335, 1.442695
        %v2463 = vpow.pop %v2462
        %v2464 = vadd.f32 %v2337, 1.0
        %v2465 = vadd.f32 %v2339, 1.0
        %v2466 = vadd.f32 %v2341, 1.0
        %v2467 = vadd.f32 %v2343, 1.0
        %v2468 = vadd.f32 %v2345, 1.0
        %v2469 = vadd.f32 %v2347, 1.0
        %v2470 = vadd.f32 %v2349, 1.0
        %v2471 = vadd.f32 %v2351, 1.0
        %v2472 = vadd.f32 %v2353, 1.0
        %v2473 = vadd.f32 %v2355, 1.0
        %v2474 = vadd.f32 %v2357, 1.0
        %v2475 = vadd.f32 %v2359, 1.0
        %v2476 = vadd.f32 %v2361, 1.0
        %v2477 = vadd.f32 %v2363, 1.0
        %v2478 = vadd.f32 %v2365, 1.0
        %v2479 = vadd.f32 %v2367, 1.0
        %v2480 = vadd.f32 %v2369, 1.0
        %v2481 = vadd.f32 %v2371, 1.0
        %v2482 = vadd.f32 %v2373, 1.0
        %v2483 = vadd.f32 %v2375, 1.0
        %v2484 = vadd.f32 %v2377, 1.0
        %v2485 = vadd.f32 %v2379, 1.0
        %v2486 = vadd.f32 %v2381, 1.0
        %v2487 = vadd.f32 %v2383, 1.0
        %v2488 = vadd.f32 %v2385, 1.0
        %v2489 = vadd.f32 %v2387, 1.0
        %v2490 = vadd.f32 %v2389, 1.0
        %v2491 = vadd.f32 %v2391, 1.0
        %v2492 = vadd.f32 %v2393, 1.0
        %v2493 = vadd.f32 %v2395, 1.0
        %v2494 = vadd.f32 %v2397, 1.0
        %v2495 = vadd.f32 %v2399, 1.0
        %v2496 = vadd.f32 %v2401, 1.0
        %v2497 = vadd.f32 %v2403, 1.0
        %v2498 = vadd.f32 %v2405, 1.0
        %v2499 = vadd.f32 %v2407, 1.0
        %v2500 = vadd.f32 %v2409, 1.0
        %v2501 = vadd.f32 %v2411, 1.0
        %v2502 = vadd.f32 %v2413, 1.0
        %v2503 = vadd.f32 %v2415, 1.0
        %v2504 = vadd.f32 %v2417, 1.0
        %v2505 = vadd.f32 %v2419, 1.0
        %v2506 = vadd.f32 %v2421, 1.0
        %v2507 = vadd.f32 %v2423, 1.0
        %v2508 = vadd.f32 %v2425, 1.0
        %v2509 = vadd.f32 %v2427, 1.0
        %v2510 = vadd.f32 %v2429, 1.0
        %v2511 = vadd.f32 %v2431, 1.0
        %v2512 = vadd.f32 %v2433, 1.0
        %v2513 = vadd.f32 %v2435, 1.0
        %v2514 = vadd.f32 %v2437, 1.0
        %v2515 = vadd.f32 %v2439, 1.0
        %v2516 = vadd.f32 %v2441, 1.0
        %v2517 = vadd.f32 %v2443, 1.0
        %v2518 = vadd.f32 %v2445, 1.0
        %v2519 = vadd.f32 %v2447, 1.0
        %v2520 = vadd.f32 %v2449, 1.0
        %v2521 = vadd.f32 %v2451, 1.0
        %v2522 = vadd.f32 %v2453, 1.0
        %v2523 = vadd.f32 %v2455, 1.0
        %v2524 = vadd.f32 %v2457, 1.0
        %v2525 = vadd.f32 %v2459, 1.0
        %v2526 = vadd.f32 %v2461, 1.0
        %v2527 = vadd.f32 %v2463, 1.0
        %v2528 = vlog2.pop %v2464
        %v2529 = vmul.f32 %v2528, 0.6931472
        %v2530 = vlog2.pop %v2465
        %v2531 = vmul.f32 %v2530, 0.6931472
        %v2532 = vlog2.pop %v2466
        %v2533 = vmul.f32 %v2532, 0.6931472
        %v2534 = vlog2.pop %v2467
        %v2535 = vmul.f32 %v2534, 0.6931472
        %v2536 = vlog2.pop %v2468
        %v2537 = vmul.f32 %v2536, 0.6931472
        %v2538 = vlog2.pop %v2469
        %v2539 = vmul.f32 %v2538, 0.6931472
        %v2540 = vlog2.pop %v2470
        %v2541 = vmul.f32 %v2540, 0.6931472
        %v2542 = vlog2.pop %v2471
        %v2543 = vmul.f32 %v2542, 0.6931472
        %v2544 = vlog2.pop %v2472
        %v2545 = vmul.f32 %v2544, 0.6931472
        %v2546 = vlog2.pop %v2473
        %v2547 = vmul.f32 %v2546, 0.6931472
        %v2548 = vlog2.pop %v2474
        %v2549 = vmul.f32 %v2548, 0.6931472
        %v2550 = vlog2.pop %v2475
        %v2551 = vmul.f32 %v2550, 0.6931472
        %v2552 = vlog2.pop %v2476
        %v2553 = vmul.f32 %v2552, 0.6931472
        %v2554 = vlog2.pop %v2477
        %v2555 = vmul.f32 %v2554, 0.6931472
        %v2556 = vlog2.pop %v2478
        %v2557 = vmul.f32 %v2556, 0.6931472
        %v2558 = vlog2.pop %v2479
        %v2559 = vmul.f32 %v2558, 0.6931472
        %v2560 = vlog2.pop %v2480
        %v2561 = vmul.f32 %v2560, 0.6931472
        %v2562 = vlog2.pop %v2481
        %v2563 = vmul.f32 %v2562, 0.6931472
        %v2564 = vlog2.pop %v2482
        %v2565 = vmul.f32 %v2564, 0.6931472
        %v2566 = vlog2.pop %v2483
        %v2567 = vmul.f32 %v2566, 0.6931472
        %v2568 = vlog2.pop %v2484
        %v2569 = vmul.f32 %v2568, 0.6931472
        %v2570 = vlog2.pop %v2485
        %v2571 = vmul.f32 %v2570, 0.6931472
        %v2572 = vlog2.pop %v2486
        %v2573 = vmul.f32 %v2572, 0.6931472
        %v2574 = vlog2.pop %v2487
        %v2575 = vmul.f32 %v2574, 0.6931472
        %v2576 = vlog2.pop %v2488
        %v2577 = vmul.f32 %v2576, 0.6931472
        %v2578 = vlog2.pop %v2489
        %v2579 = vmul.f32 %v2578, 0.6931472
        %v2580 = vlog2.pop %v2490
        %v2581 = vmul.f32 %v2580, 0.6931472
        %v2582 = vlog2.pop %v2491
        %v2583 = vmul.f32 %v2582, 0.6931472
        %v2584 = vlog2.pop %v2492
        %v2585 = vmul.f32 %v2584, 0.6931472
        %v2586 = vlog2.pop %v2493
        %v2587 = vmul.f32 %v2586, 0.6931472
        %v2588 = vlog2.pop %v2494
        %v2589 = vmul.f32 %v2588, 0.6931472
        %v2590 = vlog2.pop %v2495
        %v2591 = vmul.f32 %v2590, 0.6931472
        %v2592 = vlog2.pop %v2496
        %v2593 = vmul.f32 %v2592, 0.6931472
        %v2594 = vlog2.pop %v2497
        %v2595 = vmul.f32 %v2594, 0.6931472
        %v2596 = vlog2.pop %v2498
        %v2597 = vmul.f32 %v2596, 0.6931472
        %v2598 = vlog2.pop %v2499
        %v2599 = vmul.f32 %v2598, 0.6931472
        %v2600 = vlog2.pop %v2500
        %v2601 = vmul.f32 %v2600, 0.6931472
        %v2602 = vlog2.pop %v2501
        %v2603 = vmul.f32 %v2602, 0.6931472
        %v2604 = vlog2.pop %v2502
        %v2605 = vmul.f32 %v2604, 0.6931472
        %v2606 = vlog2.pop %v2503
        %v2607 = vmul.f32 %v2606, 0.6931472
        %v2608 = vlog2.pop %v2504
        %v2609 = vmul.f32 %v2608, 0.6931472
        %v2610 = vlog2.pop %v2505
        %v2611 = vmul.f32 %v2610, 0.6931472
        %v2612 = vlog2.pop %v2506
        %v2613 = vmul.f32 %v2612, 0.6931472
        %v2614 = vlog2.pop %v2507
        %v2615 = vmul.f32 %v2614, 0.6931472
        %v2616 = vlog2.pop %v2508
        %v2617 = vmul.f32 %v2616, 0.6931472
        %v2618 = vlog2.pop %v2509
        %v2619 = vmul.f32 %v2618, 0.6931472
        %v2620 = vlog2.pop %v2510
        %v2621 = vmul.f32 %v2620, 0.6931472
        %v2622 = vlog2.pop %v2511
        %v2623 = vmul.f32 %v2622, 0.6931472
        %v2624 = vlog2.pop %v2512
        %v2625 = vmul.f32 %v2624, 0.6931472
        %v2626 = vlog2.pop %v2513
        %v2627 = vmul.f32 %v2626, 0.6931472
        %v2628 = vlog2.pop %v2514
        %v2629 = vmul.f32 %v2628, 0.6931472
        %v2630 = vlog2.pop %v2515
        %v2631 = vmul.f32 %v2630, 0.6931472
        %v2632 = vlog2.pop %v2516
        %v2633 = vmul.f32 %v2632, 0.6931472
        %v2634 = vlog2.pop %v2517
        %v2635 = vmul.f32 %v2634, 0.6931472
        %v2636 = vlog2.pop %v2518
        %v2637 = vmul.f32 %v2636, 0.6931472
        %v2638 = vlog2.pop %v2519
        %v2639 = vmul.f32 %v2638, 0.6931472
        %v2640 = vlog2.pop %v2520
        %v2641 = vmul.f32 %v2640, 0.6931472
        %v2642 = vlog2.pop %v2521
        %v2643 = vmul.f32 %v2642, 0.6931472
        %v2644 = vlog2.pop %v2522
        %v2645 = vmul.f32 %v2644, 0.6931472
        %v2646 = vlog2.pop %v2523
        %v2647 = vmul.f32 %v2646, 0.6931472
        %v2648 = vlog2.pop %v2524
        %v2649 = vmul.f32 %v2648, 0.6931472
        %v2650 = vlog2.pop %v2525
        %v2651 = vmul.f32 %v2650, 0.6931472
        %v2652 = vlog2.pop %v2526
        %v2653 = vmul.f32 %v2652, 0.6931472
        %v2654 = vlog2.pop %v2527
        %v2655 = vmul.f32 %v2654, 0.6931472
        %v2656 = vmax.f32 %v2050, 0.0
        %v2657 = vmax.f32 %v2052, 0.0
        %v2658 = vmax.f32 %v2054, 0.0
        %v2659 = vmax.f32 %v2056, 0.0
        %v2660 = vmax.f32 %v2060, 0.0
        %v2661 = vmax.f32 %v2062, 0.0
        %v2662 = vmax.f32 %v2064, 0.0
        %v2663 = vmax.f32 %v2066, 0.0
        %v2664 = vmax.f32 %v2070, 0.0
        %v2665 = vmax.f32 %v2072, 0.0
        %v2666 = vmax.f32 %v2074, 0.0
        %v2667 = vmax.f32 %v2076, 0.0
        %v2668 = vmax.f32 %v2080, 0.0
        %v2669 = vmax.f32 %v2082, 0.0
        %v2670 = vmax.f32 %v2084, 0.0
        %v2671 = vmax.f32 %v2086, 0.0
        %v2672 = vmax.f32 %v2090, 0.0
        %v2673 = vmax.f32 %v2092, 0.0
        %v2674 = vmax.f32 %v2094, 0.0
        %v2675 = vmax.f32 %v2096, 0.0
        %v2676 = vmax.f32 %v2100, 0.0
        %v2677 = vmax.f32 %v2102, 0.0
        %v2678 = vmax.f32 %v2104, 0.0
        %v2679 = vmax.f32 %v2106, 0.0
        %v2680 = vmax.f32 %v2110, 0.0
        %v2681 = vmax.f32 %v2112, 0.0
        %v2682 = vmax.f32 %v2114, 0.0
        %v2683 = vmax.f32 %v2116, 0.0
        %v2684 = vmax.f32 %v2120, 0.0
        %v2685 = vmax.f32 %v2122, 0.0
        %v2686 = vmax.f32 %v2124, 0.0
        %v2687 = vmax.f32 %v2126, 0.0
        %v2688 = vmax.f32 %v2130, 0.0
        %v2689 = vmax.f32 %v2132, 0.0
        %v2690 = vmax.f32 %v2134, 0.0
        %v2691 = vmax.f32 %v2136, 0.0
        %v2692 = vmax.f32 %v2140, 0.0
        %v2693 = vmax.f32 %v2142, 0.0
        %v2694 = vmax.f32 %v2144, 0.0
        %v2695 = vmax.f32 %v2146, 0.0
        %v2696 = vmax.f32 %v2150, 0.0
        %v2697 = vmax.f32 %v2152, 0.0
        %v2698 = vmax.f32 %v2154, 0.0
        %v2699 = vmax.f32 %v2156, 0.0
        %v2700 = vmax.f32 %v2160, 0.0
        %v2701 = vmax.f32 %v2162, 0.0
        %v2702 = vmax.f32 %v2164, 0.0
        %v2703 = vmax.f32 %v2166, 0.0
        %v2704 = vmax.f32 %v2170, 0.0
        %v2705 = vmax.f32 %v2172, 0.0
        %v2706 = vmax.f32 %v2174, 0.0
        %v2707 = vmax.f32 %v2176, 0.0
        %v2708 = vmax.f32 %v2180, 0.0
        %v2709 = vmax.f32 %v2182, 0.0
        %v2710 = vmax.f32 %v2184, 0.0
        %v2711 = vmax.f32 %v2186, 0.0
        %v2712 = vmax.f32 %v2190, 0.0
        %v2713 = vmax.f32 %v2192, 0.0
        %v2714 = vmax.f32 %v2194, 0.0
        %v2715 = vmax.f32 %v2196, 0.0
        %v2716 = vmax.f32 %v2200, 0.0
        %v2717 = vmax.f32 %v2202, 0.0
        %v2718 = vmax.f32 %v2204, 0.0
        %v2719 = vmax.f32 %v2206, 0.0
        %v2720 = vadd.f32 %v2656, %v2529
        %v2721 = vadd.f32 %v2657, %v2531
        %v2722 = vadd.f32 %v2658, %v2533
        %v2723 = vadd.f32 %v2659, %v2535
        %v2724 = vadd.f32 %v2660, %v2537
        %v2725 = vadd.f32 %v2661, %v2539
        %v2726 = vadd.f32 %v2662, %v2541
        %v2727 = vadd.f32 %v2663, %v2543
        %v2728 = vadd.f32 %v2664, %v2545
        %v2729 = vadd.f32 %v2665, %v2547
        %v2730 = vadd.f32 %v2666, %v2549
        %v2731 = vadd.f32 %v2667, %v2551
        %v2732 = vadd.f32 %v2668, %v2553
        %v2733 = vadd.f32 %v2669, %v2555
        %v2734 = vadd.f32 %v2670, %v2557
        %v2735 = vadd.f32 %v2671, %v2559
        %v2736 = vadd.f32 %v2672, %v2561
        %v2737 = vadd.f32 %v2673, %v2563
        %v2738 = vadd.f32 %v2674, %v2565
        %v2739 = vadd.f32 %v2675, %v2567
        %v2740 = vadd.f32 %v2676, %v2569
        %v2741 = vadd.f32 %v2677, %v2571
        %v2742 = vadd.f32 %v2678, %v2573
        %v2743 = vadd.f32 %v2679, %v2575
        %v2744 = vadd.f32 %v2680, %v2577
        %v2745 = vadd.f32 %v2681, %v2579
        %v2746 = vadd.f32 %v2682, %v2581
        %v2747 = vadd.f32 %v2683, %v2583
        %v2748 = vadd.f32 %v2684, %v2585
        %v2749 = vadd.f32 %v2685, %v2587
        %v2750 = vadd.f32 %v2686, %v2589
        %v2751 = vadd.f32 %v2687, %v2591
        %v2752 = vadd.f32 %v2688, %v2593
        %v2753 = vadd.f32 %v2689, %v2595
        %v2754 = vadd.f32 %v2690, %v2597
        %v2755 = vadd.f32 %v2691, %v2599
        %v2756 = vadd.f32 %v2692, %v2601
        %v2757 = vadd.f32 %v2693, %v2603
        %v2758 = vadd.f32 %v2694, %v2605
        %v2759 = vadd.f32 %v2695, %v2607
        %v2760 = vadd.f32 %v2696, %v2609
        %v2761 = vadd.f32 %v2697, %v2611
        %v2762 = vadd.f32 %v2698, %v2613
        %v2763 = vadd.f32 %v2699, %v2615
        %v2764 = vadd.f32 %v2700, %v2617
        %v2765 = vadd.f32 %v2701, %v2619
        %v2766 = vadd.f32 %v2702, %v2621
        %v2767 = vadd.f32 %v2703, %v2623
        %v2768 = vadd.f32 %v2704, %v2625
        %v2769 = vadd.f32 %v2705, %v2627
        %v2770 = vadd.f32 %v2706, %v2629
        %v2771 = vadd.f32 %v2707, %v2631
        %v2772 = vadd.f32 %v2708, %v2633
        %v2773 = vadd.f32 %v2709, %v2635
        %v2774 = vadd.f32 %v2710, %v2637
        %v2775 = vadd.f32 %v2711, %v2639
        %v2776 = vadd.f32 %v2712, %v2641
        %v2777 = vadd.f32 %v2713, %v2643
        %v2778 = vadd.f32 %v2714, %v2645
        %v2779 = vadd.f32 %v2715, %v2647
        %v2780 = vadd.f32 %v2716, %v2649
        %v2781 = vadd.f32 %v2717, %v2651
        %v2782 = vadd.f32 %v2718, %v2653
        %v2783 = vadd.f32 %v2719, %v2655
        %v2784 = vsub.f32 0.0, %v2720
        %v2785 = vsub.f32 0.0, %v2721
        %v2786 = vsub.f32 0.0, %v2722
        %v2787 = vsub.f32 0.0, %v2723
        %v2788 = vsub.f32 0.0, %v2724
        %v2789 = vsub.f32 0.0, %v2725
        %v2790 = vsub.f32 0.0, %v2726
        %v2791 = vsub.f32 0.0, %v2727
        %v2792 = vsub.f32 0.0, %v2728
        %v2793 = vsub.f32 0.0, %v2729
        %v2794 = vsub.f32 0.0, %v2730
        %v2795 = vsub.f32 0.0, %v2731
        %v2796 = vsub.f32 0.0, %v2732
        %v2797 = vsub.f32 0.0, %v2733
        %v2798 = vsub.f32 0.0, %v2734
        %v2799 = vsub.f32 0.0, %v2735
        %v2800 = vsub.f32 0.0, %v2736
        %v2801 = vsub.f32 0.0, %v2737
        %v2802 = vsub.f32 0.0, %v2738
        %v2803 = vsub.f32 0.0, %v2739
        %v2804 = vsub.f32 0.0, %v2740
        %v2805 = vsub.f32 0.0, %v2741
        %v2806 = vsub.f32 0.0, %v2742
        %v2807 = vsub.f32 0.0, %v2743
        %v2808 = vsub.f32 0.0, %v2744
        %v2809 = vsub.f32 0.0, %v2745
        %v2810 = vsub.f32 0.0, %v2746
        %v2811 = vsub.f32 0.0, %v2747
        %v2812 = vsub.f32 0.0, %v2748
        %v2813 = vsub.f32 0.0, %v2749
        %v2814 = vsub.f32 0.0, %v2750
        %v2815 = vsub.f32 0.0, %v2751
        %v2816 = vsub.f32 0.0, %v2752
        %v2817 = vsub.f32 0.0, %v2753
        %v2818 = vsub.f32 0.0, %v2754
        %v2819 = vsub.f32 0.0, %v2755
        %v2820 = vsub.f32 0.0, %v2756
        %v2821 = vsub.f32 0.0, %v2757
        %v2822 = vsub.f32 0.0, %v2758
        %v2823 = vsub.f32 0.0, %v2759
        %v2824 = vsub.f32 0.0, %v2760
        %v2825 = vsub.f32 0.0, %v2761
        %v2826 = vsub.f32 0.0, %v2762
        %v2827 = vsub.f32 0.0, %v2763
        %v2828 = vsub.f32 0.0, %v2764
        %v2829 = vsub.f32 0.0, %v2765
        %v2830 = vsub.f32 0.0, %v2766
        %v2831 = vsub.f32 0.0, %v2767
        %v2832 = vsub.f32 0.0, %v2768
        %v2833 = vsub.f32 0.0, %v2769
        %v2834 = vsub.f32 0.0, %v2770
        %v2835 = vsub.f32 0.0, %v2771
        %v2836 = vsub.f32 0.0, %v2772
        %v2837 = vsub.f32 0.0, %v2773
        %v2838 = vsub.f32 0.0, %v2774
        %v2839 = vsub.f32 0.0, %v2775
        %v2840 = vsub.f32 0.0, %v2776
        %v2841 = vsub.f32 0.0, %v2777
        %v2842 = vsub.f32 0.0, %v2778
        %v2843 = vsub.f32 0.0, %v2779
        %v2844 = vsub.f32 0.0, %v2780
        %v2845 = vsub.f32 0.0, %v2781
        %v2846 = vsub.f32 0.0, %v2782
        %v2847 = vsub.f32 0.0, %v2783
        %v2848 = vsub.f32 0.0, %v2050
        %v2849 = vsub.f32 0.0, %v2052
        %v2850 = vsub.f32 0.0, %v2054
        %v2851 = vsub.f32 0.0, %v2056
        %v2852 = vsub.f32 0.0, %v2060
        %v2853 = vsub.f32 0.0, %v2062
        %v2854 = vsub.f32 0.0, %v2064
        %v2855 = vsub.f32 0.0, %v2066
        %v2856 = vsub.f32 0.0, %v2070
        %v2857 = vsub.f32 0.0, %v2072
        %v2858 = vsub.f32 0.0, %v2074
        %v2859 = vsub.f32 0.0, %v2076
        %v2860 = vsub.f32 0.0, %v2080
        %v2861 = vsub.f32 0.0, %v2082
        %v2862 = vsub.f32 0.0, %v2084
        %v2863 = vsub.f32 0.0, %v2086
        %v2864 = vsub.f32 0.0, %v2090
        %v2865 = vsub.f32 0.0, %v2092
        %v2866 = vsub.f32 0.0, %v2094
        %v2867 = vsub.f32 0.0, %v2096
        %v2868 = vsub.f32 0.0, %v2100
        %v2869 = vsub.f32 0.0, %v2102
        %v2870 = vsub.f32 0.0, %v2104
        %v2871 = vsub.f32 0.0, %v2106
        %v2872 = vsub.f32 0.0, %v2110
        %v2873 = vsub.f32 0.0, %v2112
        %v2874 = vsub.f32 0.0, %v2114
        %v2875 = vsub.f32 0.0, %v2116
        %v2876 = vsub.f32 0.0, %v2120
        %v2877 = vsub.f32 0.0, %v2122
        %v2878 = vsub.f32 0.0, %v2124
        %v2879 = vsub.f32 0.0, %v2126
        %v2880 = vsub.f32 0.0, %v2130
        %v2881 = vsub.f32 0.0, %v2132
        %v2882 = vsub.f32 0.0, %v2134
        %v2883 = vsub.f32 0.0, %v2136
        %v2884 = vsub.f32 0.0, %v2140
        %v2885 = vsub.f32 0.0, %v2142
        %v2886 = vsub.f32 0.0, %v2144
        %v2887 = vsub.f32 0.0, %v2146
        %v2888 = vsub.f32 0.0, %v2150
        %v2889 = vsub.f32 0.0, %v2152
        %v2890 = vsub.f32 0.0, %v2154
        %v2891 = vsub.f32 0.0, %v2156
        %v2892 = vsub.f32 0.0, %v2160
        %v2893 = vsub.f32 0.0, %v2162
        %v2894 = vsub.f32 0.0, %v2164
        %v2895 = vsub.f32 0.0, %v2166
        %v2896 = vsub.f32 0.0, %v2170
        %v2897 = vsub.f32 0.0, %v2172
        %v2898 = vsub.f32 0.0, %v2174
        %v2899 = vsub.f32 0.0, %v2176
        %v2900 = vsub.f32 0.0, %v2180
        %v2901 = vsub.f32 0.0, %v2182
        %v2902 = vsub.f32 0.0, %v2184
        %v2903 = vsub.f32 0.0, %v2186
        %v2904 = vsub.f32 0.0, %v2190
        %v2905 = vsub.f32 0.0, %v2192
        %v2906 = vsub.f32 0.0, %v2194
        %v2907 = vsub.f32 0.0, %v2196
        %v2908 = vsub.f32 0.0, %v2200
        %v2909 = vsub.f32 0.0, %v2202
        %v2910 = vsub.f32 0.0, %v2204
        %v2911 = vsub.f32 0.0, %v2206
        %v2912 = vmax.f32 %v2848, 0.0
        %v2913 = vmax.f32 %v2849, 0.0
        %v2914 = vmax.f32 %v2850, 0.0
        %v2915 = vmax.f32 %v2851, 0.0
        %v2916 = vmax.f32 %v2852, 0.0
        %v2917 = vmax.f32 %v2853, 0.0
        %v2918 = vmax.f32 %v2854, 0.0
        %v2919 = vmax.f32 %v2855, 0.0
        %v2920 = vmax.f32 %v2856, 0.0
        %v2921 = vmax.f32 %v2857, 0.0
        %v2922 = vmax.f32 %v2858, 0.0
        %v2923 = vmax.f32 %v2859, 0.0
        %v2924 = vmax.f32 %v2860, 0.0
        %v2925 = vmax.f32 %v2861, 0.0
        %v2926 = vmax.f32 %v2862, 0.0
        %v2927 = vmax.f32 %v2863, 0.0
        %v2928 = vmax.f32 %v2864, 0.0
        %v2929 = vmax.f32 %v2865, 0.0
        %v2930 = vmax.f32 %v2866, 0.0
        %v2931 = vmax.f32 %v2867, 0.0
        %v2932 = vmax.f32 %v2868, 0.0
        %v2933 = vmax.f32 %v2869, 0.0
        %v2934 = vmax.f32 %v2870, 0.0
        %v2935 = vmax.f32 %v2871, 0.0
        %v2936 = vmax.f32 %v2872, 0.0
        %v2937 = vmax.f32 %v2873, 0.0
        %v2938 = vmax.f32 %v2874, 0.0
        %v2939 = vmax.f32 %v2875, 0.0
        %v2940 = vmax.f32 %v2876, 0.0
        %v2941 = vmax.f32 %v2877, 0.0
        %v2942 = vmax.f32 %v2878, 0.0
        %v2943 = vmax.f32 %v2879, 0.0
        %v2944 = vmax.f32 %v2880, 0.0
        %v2945 = vmax.f32 %v2881, 0.0
        %v2946 = vmax.f32 %v2882, 0.0
        %v2947 = vmax.f32 %v2883, 0.0
        %v2948 = vmax.f32 %v2884, 0.0
        %v2949 = vmax.f32 %v2885, 0.0
        %v2950 = vmax.f32 %v2886, 0.0
        %v2951 = vmax.f32 %v2887, 0.0
        %v2952 = vmax.f32 %v2888, 0.0
        %v2953 = vmax.f32 %v2889, 0.0
        %v2954 = vmax.f32 %v2890, 0.0
        %v2955 = vmax.f32 %v2891, 0.0
        %v2956 = vmax.f32 %v2892, 0.0
        %v2957 = vmax.f32 %v2893, 0.0
        %v2958 = vmax.f32 %v2894, 0.0
        %v2959 = vmax.f32 %v2895, 0.0
        %v2960 = vmax.f32 %v2896, 0.0
        %v2961 = vmax.f32 %v2897, 0.0
        %v2962 = vmax.f32 %v2898, 0.0
        %v2963 = vmax.f32 %v2899, 0.0
        %v2964 = vmax.f32 %v2900, 0.0
        %v2965 = vmax.f32 %v2901, 0.0
        %v2966 = vmax.f32 %v2902, 0.0
        %v2967 = vmax.f32 %v2903, 0.0
        %v2968 = vmax.f32 %v2904, 0.0
        %v2969 = vmax.f32 %v2905, 0.0
        %v2970 = vmax.f32 %v2906, 0.0
        %v2971 = vmax.f32 %v2907, 0.0
        %v2972 = vmax.f32 %v2908, 0.0
        %v2973 = vmax.f32 %v2909, 0.0
        %v2974 = vmax.f32 %v2910, 0.0
        %v2975 = vmax.f32 %v2911, 0.0
        %v2976 = vadd.f32 %v2912, %v2529
        %v2977 = vadd.f32 %v2913, %v2531
        %v2978 = vadd.f32 %v2914, %v2533
        %v2979 = vadd.f32 %v2915, %v2535
        %v2980 = vadd.f32 %v2916, %v2537
        %v2981 = vadd.f32 %v2917, %v2539
        %v2982 = vadd.f32 %v2918, %v2541
        %v2983 = vadd.f32 %v2919, %v2543
        %v2984 = vadd.f32 %v2920, %v2545
        %v2985 = vadd.f32 %v2921, %v2547
        %v2986 = vadd.f32 %v2922, %v2549
        %v2987 = vadd.f32 %v2923, %v2551
        %v2988 = vadd.f32 %v2924, %v2553
        %v2989 = vadd.f32 %v2925, %v2555
        %v2990 = vadd.f32 %v2926, %v2557
        %v2991 = vadd.f32 %v2927, %v2559
        %v2992 = vadd.f32 %v2928, %v2561
        %v2993 = vadd.f32 %v2929, %v2563
        %v2994 = vadd.f32 %v2930, %v2565
        %v2995 = vadd.f32 %v2931, %v2567
        %v2996 = vadd.f32 %v2932, %v2569
        %v2997 = vadd.f32 %v2933, %v2571
        %v2998 = vadd.f32 %v2934, %v2573
        %v2999 = vadd.f32 %v2935, %v2575
        %v3000 = vadd.f32 %v2936, %v2577
        %v3001 = vadd.f32 %v2937, %v2579
        %v3002 = vadd.f32 %v2938, %v2581
        %v3003 = vadd.f32 %v2939, %v2583
        %v3004 = vadd.f32 %v2940, %v2585
        %v3005 = vadd.f32 %v2941, %v2587
        %v3006 = vadd.f32 %v2942, %v2589
        %v3007 = vadd.f32 %v2943, %v2591
        %v3008 = vadd.f32 %v2944, %v2593
        %v3009 = vadd.f32 %v2945, %v2595
        %v3010 = vadd.f32 %v2946, %v2597
        %v3011 = vadd.f32 %v2947, %v2599
        %v3012 = vadd.f32 %v2948, %v2601
        %v3013 = vadd.f32 %v2949, %v2603
        %v3014 = vadd.f32 %v2950, %v2605
        %v3015 = vadd.f32 %v2951, %v2607
        %v3016 = vadd.f32 %v2952, %v2609
        %v3017 = vadd.f32 %v2953, %v2611
        %v3018 = vadd.f32 %v2954, %v2613
        %v3019 = vadd.f32 %v2955, %v2615
        %v3020 = vadd.f32 %v2956, %v2617
        %v3021 = vadd.f32 %v2957, %v2619
        %v3022 = vadd.f32 %v2958, %v2621
        %v3023 = vadd.f32 %v2959, %v2623
        %v3024 = vadd.f32 %v2960, %v2625
        %v3025 = vadd.f32 %v2961, %v2627
        %v3026 = vadd.f32 %v2962, %v2629
        %v3027 = vadd.f32 %v2963, %v2631
        %v3028 = vadd.f32 %v2964, %v2633
        %v3029 = vadd.f32 %v2965, %v2635
        %v3030 = vadd.f32 %v2966, %v2637
        %v3031 = vadd.f32 %v2967, %v2639
        %v3032 = vadd.f32 %v2968, %v2641
        %v3033 = vadd.f32 %v2969, %v2643
        %v3034 = vadd.f32 %v2970, %v2645
        %v3035 = vadd.f32 %v2971, %v2647
        %v3036 = vadd.f32 %v2972, %v2649
        %v3037 = vadd.f32 %v2973, %v2651
        %v3038 = vadd.f32 %v2974, %v2653
        %v3039 = vadd.f32 %v2975, %v2655
        %v3040 = vsub.f32 0.0, %v2976
        %v3041 = vsub.f32 0.0, %v2977
        %v3042 = vsub.f32 0.0, %v2978
        %v3043 = vsub.f32 0.0, %v2979
        %v3044 = vsub.f32 0.0, %v2980
        %v3045 = vsub.f32 0.0, %v2981
        %v3046 = vsub.f32 0.0, %v2982
        %v3047 = vsub.f32 0.0, %v2983
        %v3048 = vsub.f32 0.0, %v2984
        %v3049 = vsub.f32 0.0, %v2985
        %v3050 = vsub.f32 0.0, %v2986
        %v3051 = vsub.f32 0.0, %v2987
        %v3052 = vsub.f32 0.0, %v2988
        %v3053 = vsub.f32 0.0, %v2989
        %v3054 = vsub.f32 0.0, %v2990
        %v3055 = vsub.f32 0.0, %v2991
        %v3056 = vsub.f32 0.0, %v2992
        %v3057 = vsub.f32 0.0, %v2993
        %v3058 = vsub.f32 0.0, %v2994
        %v3059 = vsub.f32 0.0, %v2995
        %v3060 = vsub.f32 0.0, %v2996
        %v3061 = vsub.f32 0.0, %v2997
        %v3062 = vsub.f32 0.0, %v2998
        %v3063 = vsub.f32 0.0, %v2999
        %v3064 = vsub.f32 0.0, %v3000
        %v3065 = vsub.f32 0.0, %v3001
        %v3066 = vsub.f32 0.0, %v3002
        %v3067 = vsub.f32 0.0, %v3003
        %v3068 = vsub.f32 0.0, %v3004
        %v3069 = vsub.f32 0.0, %v3005
        %v3070 = vsub.f32 0.0, %v3006
        %v3071 = vsub.f32 0.0, %v3007
        %v3072 = vsub.f32 0.0, %v3008
        %v3073 = vsub.f32 0.0, %v3009
        %v3074 = vsub.f32 0.0, %v3010
        %v3075 = vsub.f32 0.0, %v3011
        %v3076 = vsub.f32 0.0, %v3012
        %v3077 = vsub.f32 0.0, %v3013
        %v3078 = vsub.f32 0.0, %v3014
        %v3079 = vsub.f32 0.0, %v3015
        %v3080 = vsub.f32 0.0, %v3016
        %v3081 = vsub.f32 0.0, %v3017
        %v3082 = vsub.f32 0.0, %v3018
        %v3083 = vsub.f32 0.0, %v3019
        %v3084 = vsub.f32 0.0, %v3020
        %v3085 = vsub.f32 0.0, %v3021
        %v3086 = vsub.f32 0.0, %v3022
        %v3087 = vsub.f32 0.0, %v3023
        %v3088 = vsub.f32 0.0, %v3024
        %v3089 = vsub.f32 0.0, %v3025
        %v3090 = vsub.f32 0.0, %v3026
        %v3091 = vsub.f32 0.0, %v3027
        %v3092 = vsub.f32 0.0, %v3028
        %v3093 = vsub.f32 0.0, %v3029
        %v3094 = vsub.f32 0.0, %v3030
        %v3095 = vsub.f32 0.0, %v3031
        %v3096 = vsub.f32 0.0, %v3032
        %v3097 = vsub.f32 0.0, %v3033
        %v3098 = vsub.f32 0.0, %v3034
        %v3099 = vsub.f32 0.0, %v3035
        %v3100 = vsub.f32 0.0, %v3036
        %v3101 = vsub.f32 0.0, %v3037
        %v3102 = vsub.f32 0.0, %v3038
        %v3103 = vsub.f32 0.0, %v3039
        %v3104 = vand.u32 2147483647, %v1857
        %v3105 = vand.u32 2147483647, %v1859
        %v3106 = vand.u32 2147483647, %v1861
        %v3107 = vand.u32 2147483647, %v1863
        %v3108 = vand.u32 2147483647, %v1867
        %v3109 = vand.u32 2147483647, %v1869
        %v3110 = vand.u32 2147483647, %v1871
        %v3111 = vand.u32 2147483647, %v1873
        %v3112 = vand.u32 2147483647, %v1877
        %v3113 = vand.u32 2147483647, %v1879
        %v3114 = vand.u32 2147483647, %v1881
        %v3115 = vand.u32 2147483647, %v1883
        %v3116 = vand.u32 2147483647, %v1887
        %v3117 = vand.u32 2147483647, %v1889
        %v3118 = vand.u32 2147483647, %v1891
        %v3119 = vand.u32 2147483647, %v1893
        %v3120 = vand.u32 2147483647, %v1897
        %v3121 = vand.u32 2147483647, %v1899
        %v3122 = vand.u32 2147483647, %v1901
        %v3123 = vand.u32 2147483647, %v1903
        %v3124 = vand.u32 2147483647, %v1907
        %v3125 = vand.u32 2147483647, %v1909
        %v3126 = vand.u32 2147483647, %v1911
        %v3127 = vand.u32 2147483647, %v1913
        %v3128 = vand.u32 2147483647, %v1917
        %v3129 = vand.u32 2147483647, %v1919
        %v3130 = vand.u32 2147483647, %v1921
        %v3131 = vand.u32 2147483647, %v1923
        %v3132 = vand.u32 2147483647, %v1927
        %v3133 = vand.u32 2147483647, %v1929
        %v3134 = vand.u32 2147483647, %v1931
        %v3135 = vand.u32 2147483647, %v1933
        %v3136 = vand.u32 2147483647, %v1937
        %v3137 = vand.u32 2147483647, %v1939
        %v3138 = vand.u32 2147483647, %v1941
        %v3139 = vand.u32 2147483647, %v1943
        %v3140 = vand.u32 2147483647, %v1947
        %v3141 = vand.u32 2147483647, %v1949
        %v3142 = vand.u32 2147483647, %v1951
        %v3143 = vand.u32 2147483647, %v1953
        %v3144 = vand.u32 2147483647, %v1957
        %v3145 = vand.u32 2147483647, %v1959
        %v3146 = vand.u32 2147483647, %v1961
        %v3147 = vand.u32 2147483647, %v1963
        %v3148 = vand.u32 2147483647, %v1967
        %v3149 = vand.u32 2147483647, %v1969
        %v3150 = vand.u32 2147483647, %v1971
        %v3151 = vand.u32 2147483647, %v1973
        %v3152 = vand.u32 2147483647, %v1977
        %v3153 = vand.u32 2147483647, %v1979
        %v3154 = vand.u32 2147483647, %v1981
        %v3155 = vand.u32 2147483647, %v1983
        %v3156 = vand.u32 2147483647, %v1987
        %v3157 = vand.u32 2147483647, %v1989
        %v3158 = vand.u32 2147483647, %v1991
        %v3159 = vand.u32 2147483647, %v1993
        %v3160 = vand.u32 2147483647, %v1997
        %v3161 = vand.u32 2147483647, %v1999
        %v3162 = vand.u32 2147483647, %v2001
        %v3163 = vand.u32 2147483647, %v2003
        %v3164 = vand.u32 2147483647, %v2007
        %v3165 = vand.u32 2147483647, %v2009
        %v3166 = vand.u32 2147483647, %v2011
        %v3167 = vand.u32 2147483647, %v2013
        %v3168 = vsub.f32 0.0, %v3104
        %v3169 = vsub.f32 0.0, %v3105
        %v3170 = vsub.f32 0.0, %v3106
        %v3171 = vsub.f32 0.0, %v3107
        %v3172 = vsub.f32 0.0, %v3108
        %v3173 = vsub.f32 0.0, %v3109
        %v3174 = vsub.f32 0.0, %v3110
        %v3175 = vsub.f32 0.0, %v3111
        %v3176 = vsub.f32 0.0, %v3112
        %v3177 = vsub.f32 0.0, %v3113
        %v3178 = vsub.f32 0.0, %v3114
        %v3179 = vsub.f32 0.0, %v3115
        %v3180 = vsub.f32 0.0, %v3116
        %v3181 = vsub.f32 0.0, %v3117
        %v3182 = vsub.f32 0.0, %v3118
        %v3183 = vsub.f32 0.0, %v3119
        %v3184 = vsub.f32 0.0, %v3120
        %v3185 = vsub.f32 0.0, %v3121
        %v3186 = vsub.f32 0.0, %v3122
        %v3187 = vsub.f32 0.0, %v3123
        %v3188 = vsub.f32 0.0, %v3124
        %v3189 = vsub.f32 0.0, %v3125
        %v3190 = vsub.f32 0.0, %v3126
        %v3191 = vsub.f32 0.0, %v3127
        %v3192 = vsub.f32 0.0, %v3128
        %v3193 = vsub.f32 0.0, %v3129
        %v3194 = vsub.f32 0.0, %v3130
        %v3195 = vsub.f32 0.0, %v3131
        %v3196 = vsub.f32 0.0, %v3132
        %v3197 = vsub.f32 0.0, %v3133
        %v3198 = vsub.f32 0.0, %v3134
        %v3199 = vsub.f32 0.0, %v3135
        %v3200 = vsub.f32 0.0, %v3136
        %v3201 = vsub.f32 0.0, %v3137
        %v3202 = vsub.f32 0.0, %v3138
        %v3203 = vsub.f32 0.0, %v3139
        %v3204 = vsub.f32 0.0, %v3140
        %v3205 = vsub.f32 0.0, %v3141
        %v3206 = vsub.f32 0.0, %v3142
        %v3207 = vsub.f32 0.0, %v3143
        %v3208 = vsub.f32 0.0, %v3144
        %v3209 = vsub.f32 0.0, %v3145
        %v3210 = vsub.f32 0.0, %v3146
        %v3211 = vsub.f32 0.0, %v3147
        %v3212 = vsub.f32 0.0, %v3148
        %v3213 = vsub.f32 0.0, %v3149
        %v3214 = vsub.f32 0.0, %v3150
        %v3215 = vsub.f32 0.0, %v3151
        %v3216 = vsub.f32 0.0, %v3152
        %v3217 = vsub.f32 0.0, %v3153
        %v3218 = vsub.f32 0.0, %v3154
        %v3219 = vsub.f32 0.0, %v3155
        %v3220 = vsub.f32 0.0, %v3156
        %v3221 = vsub.f32 0.0, %v3157
        %v3222 = vsub.f32 0.0, %v3158
        %v3223 = vsub.f32 0.0, %v3159
        %v3224 = vsub.f32 0.0, %v3160
        %v3225 = vsub.f32 0.0, %v3161
        %v3226 = vsub.f32 0.0, %v3162
        %v3227 = vsub.f32 0.0, %v3163
        %v3228 = vsub.f32 0.0, %v3164
        %v3229 = vsub.f32 0.0, %v3165
        %v3230 = vsub.f32 0.0, %v3166
        %v3231 = vsub.f32 0.0, %v3167
        %v3232 = vmul.f32 %v3168, 1.442695
        %v3233 = vpow.pop %v3232
        %v3234 = vmul.f32 %v3169, 1.442695
        %v3235 = vpow.pop %v3234
        %v3236 = vmul.f32 %v3170, 1.442695
        %v3237 = vpow.pop %v3236
        %v3238 = vmul.f32 %v3171, 1.442695
        %v3239 = vpow.pop %v3238
        %v3240 = vmul.f32 %v3172, 1.442695
        %v3241 = vpow.pop %v3240
        %v3242 = vmul.f32 %v3173, 1.442695
        %v3243 = vpow.pop %v3242
        %v3244 = vmul.f32 %v3174, 1.442695
        %v3245 = vpow.pop %v3244
        %v3246 = vmul.f32 %v3175, 1.442695
        %v3247 = vpow.pop %v3246
        %v3248 = vmul.f32 %v3176, 1.442695
        %v3249 = vpow.pop %v3248
        %v3250 = vmul.f32 %v3177, 1.442695
        %v3251 = vpow.pop %v3250
        %v3252 = vmul.f32 %v3178, 1.442695
        %v3253 = vpow.pop %v3252
        %v3254 = vmul.f32 %v3179, 1.442695
        %v3255 = vpow.pop %v3254
        %v3256 = vmul.f32 %v3180, 1.442695
        %v3257 = vpow.pop %v3256
        %v3258 = vmul.f32 %v3181, 1.442695
        %v3259 = vpow.pop %v3258
        %v3260 = vmul.f32 %v3182, 1.442695
        %v3261 = vpow.pop %v3260
        %v3262 = vmul.f32 %v3183, 1.442695
        %v3263 = vpow.pop %v3262
        %v3264 = vmul.f32 %v3184, 1.442695
        %v3265 = vpow.pop %v3264
        %v3266 = vmul.f32 %v3185, 1.442695
        %v3267 = vpow.pop %v3266
        %v3268 = vmul.f32 %v3186, 1.442695
        %v3269 = vpow.pop %v3268
        %v3270 = vmul.f32 %v3187, 1.442695
        %v3271 = vpow.pop %v3270
        %v3272 = vmul.f32 %v3188, 1.442695
        %v3273 = vpow.pop %v3272
        %v3274 = vmul.f32 %v3189, 1.442695
        %v3275 = vpow.pop %v3274
        %v3276 = vmul.f32 %v3190, 1.442695
        %v3277 = vpow.pop %v3276
        %v3278 = vmul.f32 %v3191, 1.442695
        %v3279 = vpow.pop %v3278
        %v3280 = vmul.f32 %v3192, 1.442695
        %v3281 = vpow.pop %v3280
        %v3282 = vmul.f32 %v3193, 1.442695
        %v3283 = vpow.pop %v3282
        %v3284 = vmul.f32 %v3194, 1.442695
        %v3285 = vpow.pop %v3284
        %v3286 = vmul.f32 %v3195, 1.442695
        %v3287 = vpow.pop %v3286
        %v3288 = vmul.f32 %v3196, 1.442695
        %v3289 = vpow.pop %v3288
        %v3290 = vmul.f32 %v3197, 1.442695
        %v3291 = vpow.pop %v3290
        %v3292 = vmul.f32 %v3198, 1.442695
        %v3293 = vpow.pop %v3292
        %v3294 = vmul.f32 %v3199, 1.442695
        %v3295 = vpow.pop %v3294
        %v3296 = vmul.f32 %v3200, 1.442695
        %v3297 = vpow.pop %v3296
        %v3298 = vmul.f32 %v3201, 1.442695
        %v3299 = vpow.pop %v3298
        %v3300 = vmul.f32 %v3202, 1.442695
        %v3301 = vpow.pop %v3300
        %v3302 = vmul.f32 %v3203, 1.442695
        %v3303 = vpow.pop %v3302
        %v3304 = vmul.f32 %v3204, 1.442695
        %v3305 = vpow.pop %v3304
        %v3306 = vmul.f32 %v3205, 1.442695
        %v3307 = vpow.pop %v3306
        %v3308 = vmul.f32 %v3206, 1.442695
        %v3309 = vpow.pop %v3308
        %v3310 = vmul.f32 %v3207, 1.442695
        %v3311 = vpow.pop %v3310
        %v3312 = vmul.f32 %v3208, 1.442695
        %v3313 = vpow.pop %v3312
        %v3314 = vmul.f32 %v3209, 1.442695
        %v3315 = vpow.pop %v3314
        %v3316 = vmul.f32 %v3210, 1.442695
        %v3317 = vpow.pop %v3316
        %v3318 = vmul.f32 %v3211, 1.442695
        %v3319 = vpow.pop %v3318
        %v3320 = vmul.f32 %v3212, 1.442695
        %v3321 = vpow.pop %v3320
        %v3322 = vmul.f32 %v3213, 1.442695
        %v3323 = vpow.pop %v3322
        %v3324 = vmul.f32 %v3214, 1.442695
        %v3325 = vpow.pop %v3324
        %v3326 = vmul.f32 %v3215, 1.442695
        %v3327 = vpow.pop %v3326
        %v3328 = vmul.f32 %v3216, 1.442695
        %v3329 = vpow.pop %v3328
        %v3330 = vmul.f32 %v3217, 1.442695
        %v3331 = vpow.pop %v3330
        %v3332 = vmul.f32 %v3218, 1.442695
        %v3333 = vpow.pop %v3332
        %v3334 = vmul.f32 %v3219, 1.442695
        %v3335 = vpow.pop %v3334
        %v3336 = vmul.f32 %v3220, 1.442695
        %v3337 = vpow.pop %v3336
        %v3338 = vmul.f32 %v3221, 1.442695
        %v3339 = vpow.pop %v3338
        %v3340 = vmul.f32 %v3222, 1.442695
        %v3341 = vpow.pop %v3340
        %v3342 = vmul.f32 %v3223, 1.442695
        %v3343 = vpow.pop %v3342
        %v3344 = vmul.f32 %v3224, 1.442695
        %v3345 = vpow.pop %v3344
        %v3346 = vmul.f32 %v3225, 1.442695
        %v3347 = vpow.pop %v3346
        %v3348 = vmul.f32 %v3226, 1.442695
        %v3349 = vpow.pop %v3348
        %v3350 = vmul.f32 %v3227, 1.442695
        %v3351 = vpow.pop %v3350
        %v3352 = vmul.f32 %v3228, 1.442695
        %v3353 = vpow.pop %v3352
        %v3354 = vmul.f32 %v3229, 1.442695
        %v3355 = vpow.pop %v3354
        %v3356 = vmul.f32 %v3230, 1.442695
        %v3357 = vpow.pop %v3356
        %v3358 = vmul.f32 %v3231, 1.442695
        %v3359 = vpow.pop %v3358
        %v3360 = vadd.f32 %v3233, 1.0
        %v3361 = vadd.f32 %v3235, 1.0
        %v3362 = vadd.f32 %v3237, 1.0
        %v3363 = vadd.f32 %v3239, 1.0
        %v3364 = vadd.f32 %v3241, 1.0
        %v3365 = vadd.f32 %v3243, 1.0
        %v3366 = vadd.f32 %v3245, 1.0
        %v3367 = vadd.f32 %v3247, 1.0
        %v3368 = vadd.f32 %v3249, 1.0
        %v3369 = vadd.f32 %v3251, 1.0
        %v3370 = vadd.f32 %v3253, 1.0
        %v3371 = vadd.f32 %v3255, 1.0
        %v3372 = vadd.f32 %v3257, 1.0
        %v3373 = vadd.f32 %v3259, 1.0
        %v3374 = vadd.f32 %v3261, 1.0
        %v3375 = vadd.f32 %v3263, 1.0
        %v3376 = vadd.f32 %v3265, 1.0
        %v3377 = vadd.f32 %v3267, 1.0
        %v3378 = vadd.f32 %v3269, 1.0
        %v3379 = vadd.f32 %v3271, 1.0
        %v3380 = vadd.f32 %v3273, 1.0
        %v3381 = vadd.f32 %v3275, 1.0
        %v3382 = vadd.f32 %v3277, 1.0
        %v3383 = vadd.f32 %v3279, 1.0
        %v3384 = vadd.f32 %v3281, 1.0
        %v3385 = vadd.f32 %v3283, 1.0
        %v3386 = vadd.f32 %v3285, 1.0
        %v3387 = vadd.f32 %v3287, 1.0
        %v3388 = vadd.f32 %v3289, 1.0
        %v3389 = vadd.f32 %v3291, 1.0
        %v3390 = vadd.f32 %v3293, 1.0
        %v3391 = vadd.f32 %v3295, 1.0
        %v3392 = vadd.f32 %v3297, 1.0
        %v3393 = vadd.f32 %v3299, 1.0
        %v3394 = vadd.f32 %v3301, 1.0
        %v3395 = vadd.f32 %v3303, 1.0
        %v3396 = vadd.f32 %v3305, 1.0
        %v3397 = vadd.f32 %v3307, 1.0
        %v3398 = vadd.f32 %v3309, 1.0
        %v3399 = vadd.f32 %v3311, 1.0
        %v3400 = vadd.f32 %v3313, 1.0
        %v3401 = vadd.f32 %v3315, 1.0
        %v3402 = vadd.f32 %v3317, 1.0
        %v3403 = vadd.f32 %v3319, 1.0
        %v3404 = vadd.f32 %v3321, 1.0
        %v3405 = vadd.f32 %v3323, 1.0
        %v3406 = vadd.f32 %v3325, 1.0
        %v3407 = vadd.f32 %v3327, 1.0
        %v3408 = vadd.f32 %v3329, 1.0
        %v3409 = vadd.f32 %v3331, 1.0
        %v3410 = vadd.f32 %v3333, 1.0
        %v3411 = vadd.f32 %v3335, 1.0
        %v3412 = vadd.f32 %v3337, 1.0
        %v3413 = vadd.f32 %v3339, 1.0
        %v3414 = vadd.f32 %v3341, 1.0
        %v3415 = vadd.f32 %v3343, 1.0
        %v3416 = vadd.f32 %v3345, 1.0
        %v3417 = vadd.f32 %v3347, 1.0
        %v3418 = vadd.f32 %v3349, 1.0
        %v3419 = vadd.f32 %v3351, 1.0
        %v3420 = vadd.f32 %v3353, 1.0
        %v3421 = vadd.f32 %v3355, 1.0
        %v3422 = vadd.f32 %v3357, 1.0
        %v3423 = vadd.f32 %v3359, 1.0
        %v3424 = vlog2.pop %v3360
        %v3425 = vmul.f32 %v3424, 0.6931472
        %v3426 = vlog2.pop %v3361
        %v3427 = vmul.f32 %v3426, 0.6931472
        %v3428 = vlog2.pop %v3362
        %v3429 = vmul.f32 %v3428, 0.6931472
        %v3430 = vlog2.pop %v3363
        %v3431 = vmul.f32 %v3430, 0.6931472
        %v3432 = vlog2.pop %v3364
        %v3433 = vmul.f32 %v3432, 0.6931472
        %v3434 = vlog2.pop %v3365
        %v3435 = vmul.f32 %v3434, 0.6931472
        %v3436 = vlog2.pop %v3366
        %v3437 = vmul.f32 %v3436, 0.6931472
        %v3438 = vlog2.pop %v3367
        %v3439 = vmul.f32 %v3438, 0.6931472
        %v3440 = vlog2.pop %v3368
        %v3441 = vmul.f32 %v3440, 0.6931472
        %v3442 = vlog2.pop %v3369
        %v3443 = vmul.f32 %v3442, 0.6931472
        %v3444 = vlog2.pop %v3370
        %v3445 = vmul.f32 %v3444, 0.6931472
        %v3446 = vlog2.pop %v3371
        %v3447 = vmul.f32 %v3446, 0.6931472
        %v3448 = vlog2.pop %v3372
        %v3449 = vmul.f32 %v3448, 0.6931472
        %v3450 = vlog2.pop %v3373
        %v3451 = vmul.f32 %v3450, 0.6931472
        %v3452 = vlog2.pop %v3374
        %v3453 = vmul.f32 %v3452, 0.6931472
        %v3454 = vlog2.pop %v3375
        %v3455 = vmul.f32 %v3454, 0.6931472
        %v3456 = vlog2.pop %v3376
        %v3457 = vmul.f32 %v3456, 0.6931472
        %v3458 = vlog2.pop %v3377
        %v3459 = vmul.f32 %v3458, 0.6931472
        %v3460 = vlog2.pop %v3378
        %v3461 = vmul.f32 %v3460, 0.6931472
        %v3462 = vlog2.pop %v3379
        %v3463 = vmul.f32 %v3462, 0.6931472
        %v3464 = vlog2.pop %v3380
        %v3465 = vmul.f32 %v3464, 0.6931472
        %v3466 = vlog2.pop %v3381
        %v3467 = vmul.f32 %v3466, 0.6931472
        %v3468 = vlog2.pop %v3382
        %v3469 = vmul.f32 %v3468, 0.6931472
        %v3470 = vlog2.pop %v3383
        %v3471 = vmul.f32 %v3470, 0.6931472
        %v3472 = vlog2.pop %v3384
        %v3473 = vmul.f32 %v3472, 0.6931472
        %v3474 = vlog2.pop %v3385
        %v3475 = vmul.f32 %v3474, 0.6931472
        %v3476 = vlog2.pop %v3386
        %v3477 = vmul.f32 %v3476, 0.6931472
        %v3478 = vlog2.pop %v3387
        %v3479 = vmul.f32 %v3478, 0.6931472
        %v3480 = vlog2.pop %v3388
        %v3481 = vmul.f32 %v3480, 0.6931472
        %v3482 = vlog2.pop %v3389
        %v3483 = vmul.f32 %v3482, 0.6931472
        %v3484 = vlog2.pop %v3390
        %v3485 = vmul.f32 %v3484, 0.6931472
        %v3486 = vlog2.pop %v3391
        %v3487 = vmul.f32 %v3486, 0.6931472
        %v3488 = vlog2.pop %v3392
        %v3489 = vmul.f32 %v3488, 0.6931472
        %v3490 = vlog2.pop %v3393
        %v3491 = vmul.f32 %v3490, 0.6931472
        %v3492 = vlog2.pop %v3394
        %v3493 = vmul.f32 %v3492, 0.6931472
        %v3494 = vlog2.pop %v3395
        %v3495 = vmul.f32 %v3494, 0.6931472
        %v3496 = vlog2.pop %v3396
        %v3497 = vmul.f32 %v3496, 0.6931472
        %v3498 = vlog2.pop %v3397
        %v3499 = vmul.f32 %v3498, 0.6931472
        %v3500 = vlog2.pop %v3398
        %v3501 = vmul.f32 %v3500, 0.6931472
        %v3502 = vlog2.pop %v3399
        %v3503 = vmul.f32 %v3502, 0.6931472
        %v3504 = vlog2.pop %v3400
        %v3505 = vmul.f32 %v3504, 0.6931472
        %v3506 = vlog2.pop %v3401
        %v3507 = vmul.f32 %v3506, 0.6931472
        %v3508 = vlog2.pop %v3402
        %v3509 = vmul.f32 %v3508, 0.6931472
        %v3510 = vlog2.pop %v3403
        %v3511 = vmul.f32 %v3510, 0.6931472
        %v3512 = vlog2.pop %v3404
        %v3513 = vmul.f32 %v3512, 0.6931472
        %v3514 = vlog2.pop %v3405
        %v3515 = vmul.f32 %v3514, 0.6931472
        %v3516 = vlog2.pop %v3406
        %v3517 = vmul.f32 %v3516, 0.6931472
        %v3518 = vlog2.pop %v3407
        %v3519 = vmul.f32 %v3518, 0.6931472
        %v3520 = vlog2.pop %v3408
        %v3521 = vmul.f32 %v3520, 0.6931472
        %v3522 = vlog2.pop %v3409
        %v3523 = vmul.f32 %v3522, 0.6931472
        %v3524 = vlog2.pop %v3410
        %v3525 = vmul.f32 %v3524, 0.6931472
        %v3526 = vlog2.pop %v3411
        %v3527 = vmul.f32 %v3526, 0.6931472
        %v3528 = vlog2.pop %v3412
        %v3529 = vmul.f32 %v3528, 0.6931472
        %v3530 = vlog2.pop %v3413
        %v3531 = vmul.f32 %v3530, 0.6931472
        %v3532 = vlog2.pop %v3414
        %v3533 = vmul.f32 %v3532, 0.6931472
        %v3534 = vlog2.pop %v3415
        %v3535 = vmul.f32 %v3534, 0.6931472
        %v3536 = vlog2.pop %v3416
        %v3537 = vmul.f32 %v3536, 0.6931472
        %v3538 = vlog2.pop %v3417
        %v3539 = vmul.f32 %v3538, 0.6931472
        %v3540 = vlog2.pop %v3418
        %v3541 = vmul.f32 %v3540, 0.6931472
        %v3542 = vlog2.pop %v3419
        %v3543 = vmul.f32 %v3542, 0.6931472
        %v3544 = vlog2.pop %v3420
        %v3545 = vmul.f32 %v3544, 0.6931472
        %v3546 = vlog2.pop %v3421
        %v3547 = vmul.f32 %v3546, 0.6931472
        %v3548 = vlog2.pop %v3422
        %v3549 = vmul.f32 %v3548, 0.6931472
        %v3550 = vlog2.pop %v3423
        %v3551 = vmul.f32 %v3550, 0.6931472
        %vm3552 = vcmp.ge.f32.partialorder %v1857, 0.0
        %vm3553 = vcmp.ge.f32.partialorder %v1859, 0.0
        %vm3554 = vcmp.ge.f32.partialorder %v1861, 0.0
        %vm3555 = vcmp.ge.f32.partialorder %v1863, 0.0
        %vm3556 = vcmp.ge.f32.partialorder %v1867, 0.0
        %vm3557 = vcmp.ge.f32.partialorder %v1869, 0.0
        %vm3558 = vcmp.ge.f32.partialorder %v1871, 0.0
        %vm3559 = vcmp.ge.f32.partialorder %v1873, 0.0
        %vm3560 = vcmp.ge.f32.partialorder %v1877, 0.0
        %vm3561 = vcmp.ge.f32.partialorder %v1879, 0.0
        %vm3562 = vcmp.ge.f32.partialorder %v1881, 0.0
        %vm3563 = vcmp.ge.f32.partialorder %v1883, 0.0
        %vm3564 = vcmp.ge.f32.partialorder %v1887, 0.0
        %vm3565 = vcmp.ge.f32.partialorder %v1889, 0.0
        %vm3566 = vcmp.ge.f32.partialorder %v1891, 0.0
        %vm3567 = vcmp.ge.f32.partialorder %v1893, 0.0
        %vm3568 = vcmp.ge.f32.partialorder %v1897, 0.0
        %vm3569 = vcmp.ge.f32.partialorder %v1899, 0.0
        %vm3570 = vcmp.ge.f32.partialorder %v1901, 0.0
        %vm3571 = vcmp.ge.f32.partialorder %v1903, 0.0
        %vm3572 = vcmp.ge.f32.partialorder %v1907, 0.0
        %vm3573 = vcmp.ge.f32.partialorder %v1909, 0.0
        %vm3574 = vcmp.ge.f32.partialorder %v1911, 0.0
        %vm3575 = vcmp.ge.f32.partialorder %v1913, 0.0
        %vm3576 = vcmp.ge.f32.partialorder %v1917, 0.0
        %vm3577 = vcmp.ge.f32.partialorder %v1919, 0.0
        %vm3578 = vcmp.ge.f32.partialorder %v1921, 0.0
        %vm3579 = vcmp.ge.f32.partialorder %v1923, 0.0
        %vm3580 = vcmp.ge.f32.partialorder %v1927, 0.0
        %vm3581 = vcmp.ge.f32.partialorder %v1929, 0.0
        %vm3582 = vcmp.ge.f32.partialorder %v1931, 0.0
        %vm3583 = vcmp.ge.f32.partialorder %v1933, 0.0
        %vm3584 = vcmp.ge.f32.partialorder %v1937, 0.0
        %vm3585 = vcmp.ge.f32.partialorder %v1939, 0.0
        %vm3586 = vcmp.ge.f32.partialorder %v1941, 0.0
        %vm3587 = vcmp.ge.f32.partialorder %v1943, 0.0
        %vm3588 = vcmp.ge.f32.partialorder %v1947, 0.0
        %vm3589 = vcmp.ge.f32.partialorder %v1949, 0.0
        %vm3590 = vcmp.ge.f32.partialorder %v1951, 0.0
        %vm3591 = vcmp.ge.f32.partialorder %v1953, 0.0
        %vm3592 = vcmp.ge.f32.partialorder %v1957, 0.0
        %vm3593 = vcmp.ge.f32.partialorder %v1959, 0.0
        %vm3594 = vcmp.ge.f32.partialorder %v1961, 0.0
        %vm3595 = vcmp.ge.f32.partialorder %v1963, 0.0
        %vm3596 = vcmp.ge.f32.partialorder %v1967, 0.0
        %vm3597 = vcmp.ge.f32.partialorder %v1969, 0.0
        %vm3598 = vcmp.ge.f32.partialorder %v1971, 0.0
        %vm3599 = vcmp.ge.f32.partialorder %v1973, 0.0
        %vm3600 = vcmp.ge.f32.partialorder %v1977, 0.0
        %vm3601 = vcmp.ge.f32.partialorder %v1979, 0.0
        %vm3602 = vcmp.ge.f32.partialorder %v1981, 0.0
        %vm3603 = vcmp.ge.f32.partialorder %v1983, 0.0
        %vm3604 = vcmp.ge.f32.partialorder %v1987, 0.0
        %vm3605 = vcmp.ge.f32.partialorder %v1989, 0.0
        %vm3606 = vcmp.ge.f32.partialorder %v1991, 0.0
        %vm3607 = vcmp.ge.f32.partialorder %v1993, 0.0
        %vm3608 = vcmp.ge.f32.partialorder %v1997, 0.0
        %vm3609 = vcmp.ge.f32.partialorder %v1999, 0.0
        %vm3610 = vcmp.ge.f32.partialorder %v2001, 0.0
        %vm3611 = vcmp.ge.f32.partialorder %v2003, 0.0
        %vm3612 = vcmp.ge.f32.partialorder %v2007, 0.0
        %vm3613 = vcmp.ge.f32.partialorder %v2009, 0.0
        %vm3614 = vcmp.ge.f32.partialorder %v2011, 0.0
        %vm3615 = vcmp.ge.f32.partialorder %v2013, 0.0
        %v3616 = vmax.f32 %v1857, 0.0
        %v3617 = vmax.f32 %v1859, 0.0
        %v3618 = vmax.f32 %v1861, 0.0
        %v3619 = vmax.f32 %v1863, 0.0
        %v3620 = vmax.f32 %v1867, 0.0
        %v3621 = vmax.f32 %v1869, 0.0
        %v3622 = vmax.f32 %v1871, 0.0
        %v3623 = vmax.f32 %v1873, 0.0
        %v3624 = vmax.f32 %v1877, 0.0
        %v3625 = vmax.f32 %v1879, 0.0
        %v3626 = vmax.f32 %v1881, 0.0
        %v3627 = vmax.f32 %v1883, 0.0
        %v3628 = vmax.f32 %v1887, 0.0
        %v3629 = vmax.f32 %v1889, 0.0
        %v3630 = vmax.f32 %v1891, 0.0
        %v3631 = vmax.f32 %v1893, 0.0
        %v3632 = vmax.f32 %v1897, 0.0
        %v3633 = vmax.f32 %v1899, 0.0
        %v3634 = vmax.f32 %v1901, 0.0
        %v3635 = vmax.f32 %v1903, 0.0
        %v3636 = vmax.f32 %v1907, 0.0
        %v3637 = vmax.f32 %v1909, 0.0
        %v3638 = vmax.f32 %v1911, 0.0
        %v3639 = vmax.f32 %v1913, 0.0
        %v3640 = vmax.f32 %v1917, 0.0
        %v3641 = vmax.f32 %v1919, 0.0
        %v3642 = vmax.f32 %v1921, 0.0
        %v3643 = vmax.f32 %v1923, 0.0
        %v3644 = vmax.f32 %v1927, 0.0
        %v3645 = vmax.f32 %v1929, 0.0
        %v3646 = vmax.f32 %v1931, 0.0
        %v3647 = vmax.f32 %v1933, 0.0
        %v3648 = vmax.f32 %v1937, 0.0
        %v3649 = vmax.f32 %v1939, 0.0
        %v3650 = vmax.f32 %v1941, 0.0
        %v3651 = vmax.f32 %v1943, 0.0
        %v3652 = vmax.f32 %v1947, 0.0
        %v3653 = vmax.f32 %v1949, 0.0
        %v3654 = vmax.f32 %v1951, 0.0
        %v3655 = vmax.f32 %v1953, 0.0
        %v3656 = vmax.f32 %v1957, 0.0
        %v3657 = vmax.f32 %v1959, 0.0
        %v3658 = vmax.f32 %v1961, 0.0
        %v3659 = vmax.f32 %v1963, 0.0
        %v3660 = vmax.f32 %v1967, 0.0
        %v3661 = vmax.f32 %v1969, 0.0
        %v3662 = vmax.f32 %v1971, 0.0
        %v3663 = vmax.f32 %v1973, 0.0
        %v3664 = vmax.f32 %v1977, 0.0
        %v3665 = vmax.f32 %v1979, 0.0
        %v3666 = vmax.f32 %v1981, 0.0
        %v3667 = vmax.f32 %v1983, 0.0
        %v3668 = vmax.f32 %v1987, 0.0
        %v3669 = vmax.f32 %v1989, 0.0
        %v3670 = vmax.f32 %v1991, 0.0
        %v3671 = vmax.f32 %v1993, 0.0
        %v3672 = vmax.f32 %v1997, 0.0
        %v3673 = vmax.f32 %v1999, 0.0
        %v3674 = vmax.f32 %v2001, 0.0
        %v3675 = vmax.f32 %v2003, 0.0
        %v3676 = vmax.f32 %v2007, 0.0
        %v3677 = vmax.f32 %v2009, 0.0
        %v3678 = vmax.f32 %v2011, 0.0
        %v3679 = vmax.f32 %v2013, 0.0
        %v3680 = vadd.f32 %v3616, 0.5
        %v3681 = vadd.f32 %v3617, 0.5
        %v3682 = vadd.f32 %v3618, 0.5
        %v3683 = vadd.f32 %v3619, 0.5
        %v3684 = vadd.f32 %v3620, 0.5
        %v3685 = vadd.f32 %v3621, 0.5
        %v3686 = vadd.f32 %v3622, 0.5
        %v3687 = vadd.f32 %v3623, 0.5
        %v3688 = vadd.f32 %v3624, 0.5
        %v3689 = vadd.f32 %v3625, 0.5
        %v3690 = vadd.f32 %v3626, 0.5
        %v3691 = vadd.f32 %v3627, 0.5
        %v3692 = vadd.f32 %v3628, 0.5
        %v3693 = vadd.f32 %v3629, 0.5
        %v3694 = vadd.f32 %v3630, 0.5
        %v3695 = vadd.f32 %v3631, 0.5
        %v3696 = vadd.f32 %v3632, 0.5
        %v3697 = vadd.f32 %v3633, 0.5
        %v3698 = vadd.f32 %v3634, 0.5
        %v3699 = vadd.f32 %v3635, 0.5
        %v3700 = vadd.f32 %v3636, 0.5
        %v3701 = vadd.f32 %v3637, 0.5
        %v3702 = vadd.f32 %v3638, 0.5
        %v3703 = vadd.f32 %v3639, 0.5
        %v3704 = vadd.f32 %v3640, 0.5
        %v3705 = vadd.f32 %v3641, 0.5
        %v3706 = vadd.f32 %v3642, 0.5
        %v3707 = vadd.f32 %v3643, 0.5
        %v3708 = vadd.f32 %v3644, 0.5
        %v3709 = vadd.f32 %v3645, 0.5
        %v3710 = vadd.f32 %v3646, 0.5
        %v3711 = vadd.f32 %v3647, 0.5
        %v3712 = vadd.f32 %v3648, 0.5
        %v3713 = vadd.f32 %v3649, 0.5
        %v3714 = vadd.f32 %v3650, 0.5
        %v3715 = vadd.f32 %v3651, 0.5
        %v3716 = vadd.f32 %v3652, 0.5
        %v3717 = vadd.f32 %v3653, 0.5
        %v3718 = vadd.f32 %v3654, 0.5
        %v3719 = vadd.f32 %v3655, 0.5
        %v3720 = vadd.f32 %v3656, 0.5
        %v3721 = vadd.f32 %v3657, 0.5
        %v3722 = vadd.f32 %v3658, 0.5
        %v3723 = vadd.f32 %v3659, 0.5
        %v3724 = vadd.f32 %v3660, 0.5
        %v3725 = vadd.f32 %v3661, 0.5
        %v3726 = vadd.f32 %v3662, 0.5
        %v3727 = vadd.f32 %v3663, 0.5
        %v3728 = vadd.f32 %v3664, 0.5
        %v3729 = vadd.f32 %v3665, 0.5
        %v3730 = vadd.f32 %v3666, 0.5
        %v3731 = vadd.f32 %v3667, 0.5
        %v3732 = vadd.f32 %v3668, 0.5
        %v3733 = vadd.f32 %v3669, 0.5
        %v3734 = vadd.f32 %v3670, 0.5
        %v3735 = vadd.f32 %v3671, 0.5
        %v3736 = vadd.f32 %v3672, 0.5
        %v3737 = vadd.f32 %v3673, 0.5
        %v3738 = vadd.f32 %v3674, 0.5
        %v3739 = vadd.f32 %v3675, 0.5
        %v3740 = vadd.f32 %v3676, 0.5
        %v3741 = vadd.f32 %v3677, 0.5
        %v3742 = vadd.f32 %v3678, 0.5
        %v3743 = vadd.f32 %v3679, 0.5
        %v3744 = vlog2.pop %v3680
        %v3745 = vmul.f32 %v3744, 0.6931472
        %v3746 = vlog2.pop %v3681
        %v3747 = vmul.f32 %v3746, 0.6931472
        %v3748 = vlog2.pop %v3682
        %v3749 = vmul.f32 %v3748, 0.6931472
        %v3750 = vlog2.pop %v3683
        %v3751 = vmul.f32 %v3750, 0.6931472
        %v3752 = vlog2.pop %v3684
        %v3753 = vmul.f32 %v3752, 0.6931472
        %v3754 = vlog2.pop %v3685
        %v3755 = vmul.f32 %v3754, 0.6931472
        %v3756 = vlog2.pop %v3686
        %v3757 = vmul.f32 %v3756, 0.6931472
        %v3758 = vlog2.pop %v3687
        %v3759 = vmul.f32 %v3758, 0.6931472
        %v3760 = vlog2.pop %v3688
        %v3761 = vmul.f32 %v3760, 0.6931472
        %v3762 = vlog2.pop %v3689
        %v3763 = vmul.f32 %v3762, 0.6931472
        %v3764 = vlog2.pop %v3690
        %v3765 = vmul.f32 %v3764, 0.6931472
        %v3766 = vlog2.pop %v3691
        %v3767 = vmul.f32 %v3766, 0.6931472
        %v3768 = vlog2.pop %v3692
        %v3769 = vmul.f32 %v3768, 0.6931472
        %v3770 = vlog2.pop %v3693
        %v3771 = vmul.f32 %v3770, 0.6931472
        %v3772 = vlog2.pop %v3694
        %v3773 = vmul.f32 %v3772, 0.6931472
        %v3774 = vlog2.pop %v3695
        %v3775 = vmul.f32 %v3774, 0.6931472
        %v3776 = vlog2.pop %v3696
        %v3777 = vmul.f32 %v3776, 0.6931472
        %v3778 = vlog2.pop %v3697
        %v3779 = vmul.f32 %v3778, 0.6931472
        %v3780 = vlog2.pop %v3698
        %v3781 = vmul.f32 %v3780, 0.6931472
        %v3782 = vlog2.pop %v3699
        %v3783 = vmul.f32 %v3782, 0.6931472
        %v3784 = vlog2.pop %v3700
        %v3785 = vmul.f32 %v3784, 0.6931472
        %v3786 = vlog2.pop %v3701
        %v3787 = vmul.f32 %v3786, 0.6931472
        %v3788 = vlog2.pop %v3702
        %v3789 = vmul.f32 %v3788, 0.6931472
        %v3790 = vlog2.pop %v3703
        %v3791 = vmul.f32 %v3790, 0.6931472
        %v3792 = vlog2.pop %v3704
        %v3793 = vmul.f32 %v3792, 0.6931472
        %v3794 = vlog2.pop %v3705
        %v3795 = vmul.f32 %v3794, 0.6931472
        %v3796 = vlog2.pop %v3706
        %v3797 = vmul.f32 %v3796, 0.6931472
        %v3798 = vlog2.pop %v3707
        %v3799 = vmul.f32 %v3798, 0.6931472
        %v3800 = vlog2.pop %v3708
        %v3801 = vmul.f32 %v3800, 0.6931472
        %v3802 = vlog2.pop %v3709
        %v3803 = vmul.f32 %v3802, 0.6931472
        %v3804 = vlog2.pop %v3710
        %v3805 = vmul.f32 %v3804, 0.6931472
        %v3806 = vlog2.pop %v3711
        %v3807 = vmul.f32 %v3806, 0.6931472
        %v3808 = vlog2.pop %v3712
        %v3809 = vmul.f32 %v3808, 0.6931472
        %v3810 = vlog2.pop %v3713
        %v3811 = vmul.f32 %v3810, 0.6931472
        %v3812 = vlog2.pop %v3714
        %v3813 = vmul.f32 %v3812, 0.6931472
        %v3814 = vlog2.pop %v3715
        %v3815 = vmul.f32 %v3814, 0.6931472
        %v3816 = vlog2.pop %v3716
        %v3817 = vmul.f32 %v3816, 0.6931472
        %v3818 = vlog2.pop %v3717
        %v3819 = vmul.f32 %v3818, 0.6931472
        %v3820 = vlog2.pop %v3718
        %v3821 = vmul.f32 %v3820, 0.6931472
        %v3822 = vlog2.pop %v3719
        %v3823 = vmul.f32 %v3822, 0.6931472
        %v3824 = vlog2.pop %v3720
        %v3825 = vmul.f32 %v3824, 0.6931472
        %v3826 = vlog2.pop %v3721
        %v3827 = vmul.f32 %v3826, 0.6931472
        %v3828 = vlog2.pop %v3722
        %v3829 = vmul.f32 %v3828, 0.6931472
        %v3830 = vlog2.pop %v3723
        %v3831 = vmul.f32 %v3830, 0.6931472
        %v3832 = vlog2.pop %v3724
        %v3833 = vmul.f32 %v3832, 0.6931472
        %v3834 = vlog2.pop %v3725
        %v3835 = vmul.f32 %v3834, 0.6931472
        %v3836 = vlog2.pop %v3726
        %v3837 = vmul.f32 %v3836, 0.6931472
        %v3838 = vlog2.pop %v3727
        %v3839 = vmul.f32 %v3838, 0.6931472
        %v3840 = vlog2.pop %v3728
        %v3841 = vmul.f32 %v3840, 0.6931472
        %v3842 = vlog2.pop %v3729
        %v3843 = vmul.f32 %v3842, 0.6931472
        %v3844 = vlog2.pop %v3730
        %v3845 = vmul.f32 %v3844, 0.6931472
        %v3846 = vlog2.pop %v3731
        %v3847 = vmul.f32 %v3846, 0.6931472
        %v3848 = vlog2.pop %v3732
        %v3849 = vmul.f32 %v3848, 0.6931472
        %v3850 = vlog2.pop %v3733
        %v3851 = vmul.f32 %v3850, 0.6931472
        %v3852 = vlog2.pop %v3734
        %v3853 = vmul.f32 %v3852, 0.6931472
        %v3854 = vlog2.pop %v3735
        %v3855 = vmul.f32 %v3854, 0.6931472
        %v3856 = vlog2.pop %v3736
        %v3857 = vmul.f32 %v3856, 0.6931472
        %v3858 = vlog2.pop %v3737
        %v3859 = vmul.f32 %v3858, 0.6931472
        %v3860 = vlog2.pop %v3738
        %v3861 = vmul.f32 %v3860, 0.6931472
        %v3862 = vlog2.pop %v3739
        %v3863 = vmul.f32 %v3862, 0.6931472
        %v3864 = vlog2.pop %v3740
        %v3865 = vmul.f32 %v3864, 0.6931472
        %v3866 = vlog2.pop %v3741
        %v3867 = vmul.f32 %v3866, 0.6931472
        %v3868 = vlog2.pop %v3742
        %v3869 = vmul.f32 %v3868, 0.6931472
        %v3870 = vlog2.pop %v3743
        %v3871 = vmul.f32 %v3870, 0.6931472
        %v3872 = vsub.f32 %v1857, %v3425
        %v3873 = vsub.f32 %v1859, %v3427
        %v3874 = vsub.f32 %v1861, %v3429
        %v3875 = vsub.f32 %v1863, %v3431
        %v3876 = vsub.f32 %v1867, %v3433
        %v3877 = vsub.f32 %v1869, %v3435
        %v3878 = vsub.f32 %v1871, %v3437
        %v3879 = vsub.f32 %v1873, %v3439
        %v3880 = vsub.f32 %v1877, %v3441
        %v3881 = vsub.f32 %v1879, %v3443
        %v3882 = vsub.f32 %v1881, %v3445
        %v3883 = vsub.f32 %v1883, %v3447
        %v3884 = vsub.f32 %v1887, %v3449
        %v3885 = vsub.f32 %v1889, %v3451
        %v3886 = vsub.f32 %v1891, %v3453
        %v3887 = vsub.f32 %v1893, %v3455
        %v3888 = vsub.f32 %v1897, %v3457
        %v3889 = vsub.f32 %v1899, %v3459
        %v3890 = vsub.f32 %v1901, %v3461
        %v3891 = vsub.f32 %v1903, %v3463
        %v3892 = vsub.f32 %v1907, %v3465
        %v3893 = vsub.f32 %v1909, %v3467
        %v3894 = vsub.f32 %v1911, %v3469
        %v3895 = vsub.f32 %v1913, %v3471
        %v3896 = vsub.f32 %v1917, %v3473
        %v3897 = vsub.f32 %v1919, %v3475
        %v3898 = vsub.f32 %v1921, %v3477
        %v3899 = vsub.f32 %v1923, %v3479
        %v3900 = vsub.f32 %v1927, %v3481
        %v3901 = vsub.f32 %v1929, %v3483
        %v3902 = vsub.f32 %v1931, %v3485
        %v3903 = vsub.f32 %v1933, %v3487
        %v3904 = vsub.f32 %v1937, %v3489
        %v3905 = vsub.f32 %v1939, %v3491
        %v3906 = vsub.f32 %v1941, %v3493
        %v3907 = vsub.f32 %v1943, %v3495
        %v3908 = vsub.f32 %v1947, %v3497
        %v3909 = vsub.f32 %v1949, %v3499
        %v3910 = vsub.f32 %v1951, %v3501
        %v3911 = vsub.f32 %v1953, %v3503
        %v3912 = vsub.f32 %v1957, %v3505
        %v3913 = vsub.f32 %v1959, %v3507
        %v3914 = vsub.f32 %v1961, %v3509
        %v3915 = vsub.f32 %v1963, %v3511
        %v3916 = vsub.f32 %v1967, %v3513
        %v3917 = vsub.f32 %v1969, %v3515
        %v3918 = vsub.f32 %v1971, %v3517
        %v3919 = vsub.f32 %v1973, %v3519
        %v3920 = vsub.f32 %v1977, %v3521
        %v3921 = vsub.f32 %v1979, %v3523
        %v3922 = vsub.f32 %v1981, %v3525
        %v3923 = vsub.f32 %v1983, %v3527
        %v3924 = vsub.f32 %v1987, %v3529
        %v3925 = vsub.f32 %v1989, %v3531
        %v3926 = vsub.f32 %v1991, %v3533
        %v3927 = vsub.f32 %v1993, %v3535
        %v3928 = vsub.f32 %v1997, %v3537
        %v3929 = vsub.f32 %v1999, %v3539
        %v3930 = vsub.f32 %v2001, %v3541
        %v3931 = vsub.f32 %v2003, %v3543
        %v3932 = vsub.f32 %v2007, %v3545
        %v3933 = vsub.f32 %v2009, %v3547
        %v3934 = vsub.f32 %v2011, %v3549
        %v3935 = vsub.f32 %v2013, %v3551
        %v3936 = vsel %vm3552, %v3745, %v3872
        %v3937 = vsel %vm3553, %v3747, %v3873
        %v3938 = vsel %vm3554, %v3749, %v3874
        %v3939 = vsel %vm3555, %v3751, %v3875
        %v3940 = vsel %vm3556, %v3753, %v3876
        %v3941 = vsel %vm3557, %v3755, %v3877
        %v3942 = vsel %vm3558, %v3757, %v3878
        %v3943 = vsel %vm3559, %v3759, %v3879
        %v3944 = vsel %vm3560, %v3761, %v3880
        %v3945 = vsel %vm3561, %v3763, %v3881
        %v3946 = vsel %vm3562, %v3765, %v3882
        %v3947 = vsel %vm3563, %v3767, %v3883
        %v3948 = vsel %vm3564, %v3769, %v3884
        %v3949 = vsel %vm3565, %v3771, %v3885
        %v3950 = vsel %vm3566, %v3773, %v3886
        %v3951 = vsel %vm3567, %v3775, %v3887
        %v3952 = vsel %vm3568, %v3777, %v3888
        %v3953 = vsel %vm3569, %v3779, %v3889
        %v3954 = vsel %vm3570, %v3781, %v3890
        %v3955 = vsel %vm3571, %v3783, %v3891
        %v3956 = vsel %vm3572, %v3785, %v3892
        %v3957 = vsel %vm3573, %v3787, %v3893
        %v3958 = vsel %vm3574, %v3789, %v3894
        %v3959 = vsel %vm3575, %v3791, %v3895
        %v3960 = vsel %vm3576, %v3793, %v3896
        %v3961 = vsel %vm3577, %v3795, %v3897
        %v3962 = vsel %vm3578, %v3797, %v3898
        %v3963 = vsel %vm3579, %v3799, %v3899
        %v3964 = vsel %vm3580, %v3801, %v3900
        %v3965 = vsel %vm3581, %v3803, %v3901
        %v3966 = vsel %vm3582, %v3805, %v3902
        %v3967 = vsel %vm3583, %v3807, %v3903
        %v3968 = vsel %vm3584, %v3809, %v3904
        %v3969 = vsel %vm3585, %v3811, %v3905
        %v3970 = vsel %vm3586, %v3813, %v3906
        %v3971 = vsel %vm3587, %v3815, %v3907
        %v3972 = vsel %vm3588, %v3817, %v3908
        %v3973 = vsel %vm3589, %v3819, %v3909
        %v3974 = vsel %vm3590, %v3821, %v3910
        %v3975 = vsel %vm3591, %v3823, %v3911
        %v3976 = vsel %vm3592, %v3825, %v3912
        %v3977 = vsel %vm3593, %v3827, %v3913
        %v3978 = vsel %vm3594, %v3829, %v3914
        %v3979 = vsel %vm3595, %v3831, %v3915
        %v3980 = vsel %vm3596, %v3833, %v3916
        %v3981 = vsel %vm3597, %v3835, %v3917
        %v3982 = vsel %vm3598, %v3837, %v3918
        %v3983 = vsel %vm3599, %v3839, %v3919
        %v3984 = vsel %vm3600, %v3841, %v3920
        %v3985 = vsel %vm3601, %v3843, %v3921
        %v3986 = vsel %vm3602, %v3845, %v3922
        %v3987 = vsel %vm3603, %v3847, %v3923
        %v3988 = vsel %vm3604, %v3849, %v3924
        %v3989 = vsel %vm3605, %v3851, %v3925
        %v3990 = vsel %vm3606, %v3853, %v3926
        %v3991 = vsel %vm3607, %v3855, %v3927
        %v3992 = vsel %vm3608, %v3857, %v3928
        %v3993 = vsel %vm3609, %v3859, %v3929
        %v3994 = vsel %vm3610, %v3861, %v3930
        %v3995 = vsel %vm3611, %v3863, %v3931
        %v3996 = vsel %vm3612, %v3865, %v3932
        %v3997 = vsel %vm3613, %v3867, %v3933
        %v3998 = vsel %vm3614, %v3869, %v3934
        %v3999 = vsel %vm3615, %v3871, %v3935
        %v4000 = vadd.f32 %v3040, %v3936
        %v4001 = vadd.f32 %v3041, %v3937
        %v4002 = vadd.f32 %v3042, %v3938
        %v4003 = vadd.f32 %v3043, %v3939
        %v4004 = vadd.f32 %v3044, %v3940
        %v4005 = vadd.f32 %v3045, %v3941
        %v4006 = vadd.f32 %v3046, %v3942
        %v4007 = vadd.f32 %v3047, %v3943
        %v4008 = vadd.f32 %v3048, %v3944
        %v4009 = vadd.f32 %v3049, %v3945
        %v4010 = vadd.f32 %v3050, %v3946
        %v4011 = vadd.f32 %v3051, %v3947
        %v4012 = vadd.f32 %v3052, %v3948
        %v4013 = vadd.f32 %v3053, %v3949
        %v4014 = vadd.f32 %v3054, %v3950
        %v4015 = vadd.f32 %v3055, %v3951
        %v4016 = vadd.f32 %v3056, %v3952
        %v4017 = vadd.f32 %v3057, %v3953
        %v4018 = vadd.f32 %v3058, %v3954
        %v4019 = vadd.f32 %v3059, %v3955
        %v4020 = vadd.f32 %v3060, %v3956
        %v4021 = vadd.f32 %v3061, %v3957
        %v4022 = vadd.f32 %v3062, %v3958
        %v4023 = vadd.f32 %v3063, %v3959
        %v4024 = vadd.f32 %v3064, %v3960
        %v4025 = vadd.f32 %v3065, %v3961
        %v4026 = vadd.f32 %v3066, %v3962
        %v4027 = vadd.f32 %v3067, %v3963
        %v4028 = vadd.f32 %v3068, %v3964
        %v4029 = vadd.f32 %v3069, %v3965
        %v4030 = vadd.f32 %v3070, %v3966
        %v4031 = vadd.f32 %v3071, %v3967
        %v4032 = vadd.f32 %v3072, %v3968
        %v4033 = vadd.f32 %v3073, %v3969
        %v4034 = vadd.f32 %v3074, %v3970
        %v4035 = vadd.f32 %v3075, %v3971
        %v4036 = vadd.f32 %v3076, %v3972
        %v4037 = vadd.f32 %v3077, %v3973
        %v4038 = vadd.f32 %v3078, %v3974
        %v4039 = vadd.f32 %v3079, %v3975
        %v4040 = vadd.f32 %v3080, %v3976
        %v4041 = vadd.f32 %v3081, %v3977
        %v4042 = vadd.f32 %v3082, %v3978
        %v4043 = vadd.f32 %v3083, %v3979
        %v4044 = vadd.f32 %v3084, %v3980
        %v4045 = vadd.f32 %v3085, %v3981
        %v4046 = vadd.f32 %v3086, %v3982
        %v4047 = vadd.f32 %v3087, %v3983
        %v4048 = vadd.f32 %v3088, %v3984
        %v4049 = vadd.f32 %v3089, %v3985
        %v4050 = vadd.f32 %v3090, %v3986
        %v4051 = vadd.f32 %v3091, %v3987
        %v4052 = vadd.f32 %v3092, %v3988
        %v4053 = vadd.f32 %v3093, %v3989
        %v4054 = vadd.f32 %v3094, %v3990
        %v4055 = vadd.f32 %v3095, %v3991
        %v4056 = vadd.f32 %v3096, %v3992
        %v4057 = vadd.f32 %v3097, %v3993
        %v4058 = vadd.f32 %v3098, %v3994
        %v4059 = vadd.f32 %v3099, %v3995
        %v4060 = vadd.f32 %v3100, %v3996
        %v4061 = vadd.f32 %v3101, %v3997
        %v4062 = vadd.f32 %v3102, %v3998
        %v4063 = vadd.f32 %v3103, %v3999
        %v4064 = vld [vmem:[#allocation8] sm:$0xff]
        %v4065 = vld [vmem:[#allocation8 + $0x8] sm:$0xff]
        %v4066 = vld [vmem:[#allocation8 + $0x10] sm:$0xff]
        %v4067 = vld [vmem:[#allocation8 + $0x18] sm:$0xff]
        %v4068 = vld [vmem:[#allocation8 + $0x20] sm:$0xff]
        %v4069 = vld [vmem:[#allocation8 + $0x28] sm:$0xff]
        %v4070 = vld [vmem:[#allocation8 + $0x30] sm:$0xff]
        %v4071 = vld [vmem:[#allocation8 + $0x38] sm:$0xff]
        %v4072 = vld [vmem:[#allocation8 + $0x40] sm:$0xff]
        %v4073 = vld [vmem:[#allocation8 + $0x48] sm:$0xff]
        %v4074 = vld [vmem:[#allocation8 + $0x50] sm:$0xff]
        %v4075 = vld [vmem:[#allocation8 + $0x58] sm:$0xff]
        %v4076 = vld [vmem:[#allocation8 + $0x60] sm:$0xff]
        %v4077 = vld [vmem:[#allocation8 + $0x68] sm:$0xff]
        %v4078 = vld [vmem:[#allocation8 + $0x70] sm:$0xff]
        %v4079 = vld [vmem:[#allocation8 + $0x78] sm:$0xff]
        %v4080 = vld [vmem:[#allocation7] sm:$0xf]
        %v4081 = vld [vmem:[#allocation7 + $0x4] sm:$0xf]
        %v4082 = vld [vmem:[#allocation7 + $0x8] sm:$0xf]
        %v4083 = vld [vmem:[#allocation7 + $0xc] sm:$0xf]
        %v4084 = vld [vmem:[#allocation7 + $0x10] sm:$0xf]
        %v4085 = vld [vmem:[#allocation7 + $0x14] sm:$0xf]
        %v4086 = vld [vmem:[#allocation7 + $0x18] sm:$0xf]
        %v4087 = vld [vmem:[#allocation7 + $0x1c] sm:$0xf]
        %v4088 = vld [vmem:[#allocation7 + $0x20] sm:$0xf]
        %v4089 = vld [vmem:[#allocation7 + $0x24] sm:$0xf]
        %v4090 = vld [vmem:[#allocation7 + $0x28] sm:$0xf]
        %v4091 = vld [vmem:[#allocation7 + $0x2c] sm:$0xf]
        %v4092 = vld [vmem:[#allocation7 + $0x30] sm:$0xf]
        %v4093 = vld [vmem:[#allocation7 + $0x34] sm:$0xf]
        %v4094 = vld [vmem:[#allocation7 + $0x38] sm:$0xf]
        %v4095 = vld [vmem:[#allocation7 + $0x3c] sm:$0xf]
        %v4096 = vld [vmem:[#allocation7 + $0x40] sm:$0xf]
        %v4097 = vld [vmem:[#allocation7 + $0x44] sm:$0xf]
        %v4098 = vld [vmem:[#allocation7 + $0x48] sm:$0xf]
        %v4099 = vld [vmem:[#allocation7 + $0x4c] sm:$0xf]
        %v4100 = vld [vmem:[#allocation7 + $0x50] sm:$0xf]
        %v4101 = vld [vmem:[#allocation7 + $0x54] sm:$0xf]
        %v4102 = vld [vmem:[#allocation7 + $0x58] sm:$0xf]
        %v4103 = vld [vmem:[#allocation7 + $0x5c] sm:$0xf]
        %v4104 = vld [vmem:[#allocation7 + $0x60] sm:$0xf]
        %v4105 = vld [vmem:[#allocation7 + $0x64] sm:$0xf]
        %v4106 = vld [vmem:[#allocation7 + $0x68] sm:$0xf]
        %v4107 = vld [vmem:[#allocation7 + $0x6c] sm:$0xf]
        %v4108 = vld [vmem:[#allocation7 + $0x70] sm:$0xf]
        %v4109 = vld [vmem:[#allocation7 + $0x74] sm:$0xf]
        %v4110 = vld [vmem:[#allocation7 + $0x78] sm:$0xf]
        %v4111 = vld [vmem:[#allocation7 + $0x7c] sm:$0xf]
        %4112 = vmatprep.subr.mxu0 %v2785
        %4113 = vmatpush1.msra.mxu0 %v2784
        %4114 = vmatprep.subr.mxu0 %v2787
        %4115 = vmatpush1.msra.mxu0 %v2786
        %4116 = vmatprep.subr.mxu0 %v2789
        %4117 = vmatpush1.msra.mxu0 %v2788
        %4118 = vmatprep.subr.mxu0 %v2791
        %4119 = vmatpush1.msra.mxu0 %v2790
        %4120 = vmatprep.subr.mxu0 %v2793
        %4121 = vmatpush1.msra.mxu0 %v2792
        %4122 = vmatprep.subr.mxu0 %v2795
        %4123 = vmatpush1.msra.mxu0 %v2794
        %4124 = vmatprep.subr.mxu0 %v2797
        %4125 = vmatpush1.msra.mxu0 %v2796
        %4126 = vmatprep.subr.mxu0 %v2799
        %4127 = vmatpush1.msra.mxu0 %v2798
        %4128 = vmatprep.subr.mxu0 %v2817
        %4129 = vmatpush1.msra.mxu0 %v2816
        %4130 = vmatprep.subr.mxu0 %v2819
        %4131 = vmatpush1.msra.mxu0 %v2818
        %4132 = vmatprep.subr.mxu0 %v2821
        %4133 = vmatpush1.msra.mxu0 %v2820
        %4134 = vmatprep.subr.mxu0 %v2823
        %4135 = vmatpush1.msra.mxu0 %v2822
        %4136 = vmatprep.subr.mxu0 %v2825
        %4137 = vmatpush1.msra.mxu0 %v2824
        %4138 = vmatprep.subr.mxu0 %v2827
        %4139 = vmatpush1.msra.mxu0 %v2826
        %4140 = vmatprep.subr.mxu0 %v2829
        %4141 = vmatpush1.msra.mxu0 %v2828
        %4142 = vmatprep.subr.mxu0 %v2831
        %4143 = vmatpush1.msra.mxu0 %v2830
        %4144 = vmatprep.subr.mxu0 0.0
        %4145 = vmatpush1.msra.mxu0 0.0
        %4146 = vmatprep.subr.mxu0 0.0
        %4147 = vmatpush1.msra.mxu0 0.0
        %4148 = vmatprep.subr.mxu0 0.0
        %4149 = vmatpush1.msra.mxu0 0.0
        %4150 = vmatprep.subr.mxu0 0.0
        %4151 = vmatpush1.msra.mxu0 0.0
        %4152 = vmatprep.subr.mxu0 0.0
        %4153 = vmatpush1.msra.mxu0 0.0
        %4154 = vmatprep.subr.mxu0 0.0
        %4155 = vmatpush1.msra.mxu0 0.0
        %4156 = vmatprep.subr.mxu0 0.0
        %4157 = vmatpush1.msra.mxu0 0.0
        %4158 = vmatprep.subr.mxu0 0.0
        %4159 = vmatpush1.msra.mxu0 0.0
        %4160 = vmatprep.subr.mxu0 0.0
        %4161 = vmatpush1.msra.mxu0 0.0
        %4162 = vmatprep.subr.mxu0 0.0
        %4163 = vmatpush1.msra.mxu0 0.0
        %4164 = vmatprep.subr.mxu0 0.0
        %4165 = vmatpush1.msra.mxu0 0.0
        %4166 = vmatprep.subr.mxu0 0.0
        %4167 = vmatpush1.msra.mxu0 0.0
        %4168 = vmatprep.subr.mxu0 0.0
        %4169 = vmatpush1.msra.mxu0 0.0
        %4170 = vmatprep.subr.mxu0 0.0
        %4171 = vmatpush1.msra.mxu0 0.0
        %4172 = vmatprep.subr.mxu0 0.0
        %4173 = vmatpush1.msra.mxu0 0.0
        %4174 = vmatprep.subr.mxu0 0.0
        %4175 = vmatpush1.msra.mxu0 0.0
        %4176 = vmatprep.mubr.f32.mxu0 0.0
        %4177 = vmatmul.mubr.f32.gmra.mrb[0].mxu0 %v4064
        %v4178 = vpop.f32.mrb[0].mxu0
        %v4179 = vadd.f32 0.0, %v4178
        %v4180 = vpop.f32.mrb[0].mxu0
        %v4181 = vadd.f32 0.0, %v4180
        %4182 = vmatprep.mubr.f32.mxu0 0.0
        %4183 = vmatmul.mubr.f32.gmra.mrb[0].mxu0 %v4065
        %v4184 = vpop.f32.mrb[0].mxu0
        %v4185 = vadd.f32 0.0, %v4184
        %v4186 = vpop.f32.mrb[0].mxu0
        %v4187 = vadd.f32 0.0, %v4186
        %4188 = vmatprep.mubr.f32.mxu0 0.0
        %4189 = vmatmul.mubr.f32.gmra.mrb[0].mxu0 %v4066
        %v4190 = vpop.f32.mrb[0].mxu0
        %v4191 = vadd.f32 0.0, %v4190
        %v4192 = vpop.f32.mrb[0].mxu0
        %v4193 = vadd.f32 0.0, %v4192
        %4194 = vmatprep.mubr.f32.mxu0 0.0
        %4195 = vmatmul.mubr.f32.gmra.mrb[0].mxu0 %v4067
        %v4196 = vpop.f32.mrb[0].mxu0
        %v4197 = vadd.f32 0.0, %v4196
        %v4198 = vpop.f32.mrb[0].mxu0
        %v4199 = vadd.f32 0.0, %v4198
        %4200 = vmatprep.mubr.f32.mxu0 0.0
        %4201 = vmatmul.mubr.f32.gmra.mrb[0].mxu0 %v4068
        %v4202 = vpop.f32.mrb[0].mxu0
        %v4203 = vadd.f32 0.0, %v4202
        %v4204 = vpop.f32.mrb[0].mxu0
        %v4205 = vadd.f32 0.0, %v4204
        %4206 = vmatprep.mubr.f32.mxu0 0.0
        %4207 = vmatmul.mubr.f32.gmra.mrb[0].mxu0 %v4069
        %v4208 = vpop.f32.mrb[0].mxu0
        %v4209 = vadd.f32 0.0, %v4208
        %v4210 = vpop.f32.mrb[0].mxu0
        %v4211 = vadd.f32 0.0, %v4210
        %4212 = vmatprep.mubr.f32.mxu0 0.0
        %4213 = vmatmul.mubr.f32.gmra.mrb[0].mxu0 %v4070
        %v4214 = vpop.f32.mrb[0].mxu0
        %v4215 = vadd.f32 0.0, %v4214
        %v4216 = vpop.f32.mrb[0].mxu0
        %v4217 = vadd.f32 0.0, %v4216
        %4218 = vmatprep.mubr.f32.mxu0 0.0
        %4219 = vmatmul.mubr.f32.gmra.mrb[0].mxu0 %v4071
        %v4220 = vpop.f32.mrb[0].mxu0
        %v4221 = vadd.f32 0.0, %v4220
        %v4222 = vpop.f32.mrb[0].mxu0
        %v4223 = vadd.f32 0.0, %v4222
        %4224 = vmatprep.mubr.f32.mxu0 0.0
        %4225 = vmatmul.mubr.f32.gmra.mrb[0].mxu0 %v4072
        %v4226 = vpop.f32.mrb[0].mxu0
        %v4227 = vadd.f32 0.0, %v4226
        %v4228 = vpop.f32.mrb[0].mxu0
        %v4229 = vadd.f32 0.0, %v4228
        %4230 = vmatprep.mubr.f32.mxu0 0.0
        %4231 = vmatmul.mubr.f32.gmra.mrb[0].mxu0 %v4073
        %v4232 = vpop.f32.mrb[0].mxu0
        %v4233 = vadd.f32 0.0, %v4232
        %v4234 = vpop.f32.mrb[0].mxu0
        %v4235 = vadd.f32 0.0, %v4234
        %4236 = vmatprep.mubr.f32.mxu0 0.0
        %4237 = vmatmul.mubr.f32.gmra.mrb[0].mxu0 %v4074
        %v4238 = vpop.f32.mrb[0].mxu0
        %v4239 = vadd.f32 0.0, %v4238
        %v4240 = vpop.f32.mrb[0].mxu0
        %v4241 = vadd.f32 0.0, %v4240
        %4242 = vmatprep.mubr.f32.mxu0 0.0
        %4243 = vmatmul.mubr.f32.gmra.mrb[0].mxu0 %v4075
        %v4244 = vpop.f32.mrb[0].mxu0
        %v4245 = vadd.f32 0.0, %v4244
        %v4246 = vpop.f32.mrb[0].mxu0
        %v4247 = vadd.f32 0.0, %v4246
        %4248 = vmatprep.mubr.f32.mxu0 0.0
        %4249 = vmatmul.mubr.f32.gmra.mrb[0].mxu0 %v4076
        %v4250 = vpop.f32.mrb[0].mxu0
        %v4251 = vadd.f32 0.0, %v4250
        %v4252 = vpop.f32.mrb[0].mxu0
        %v4253 = vadd.f32 0.0, %v4252
        %4254 = vmatprep.mubr.f32.mxu0 0.0
        %4255 = vmatmul.mubr.f32.gmra.mrb[0].mxu0 %v4077
        %v4256 = vpop.f32.mrb[0].mxu0
        %v4257 = vadd.f32 0.0, %v4256
        %v4258 = vpop.f32.mrb[0].mxu0
        %v4259 = vadd.f32 0.0, %v4258
        %4260 = vmatprep.mubr.f32.mxu0 0.0
        %4261 = vmatmul.mubr.f32.gmra.mrb[0].mxu0 %v4078
        %v4262 = vpop.f32.mrb[0].mxu0
        %v4263 = vadd.f32 0.0, %v4262
        %v4264 = vpop.f32.mrb[0].mxu0
        %v4265 = vadd.f32 0.0, %v4264
        %4266 = vmatprep.mubr.f32.mxu0 0.0
        %4267 = vmatmul.mubr.f32.gmra.mrb[0].mxu0 %v4079
        %v4268 = vpop.f32.mrb[0].mxu0
        %v4269 = vadd.f32 0.0, %v4268
        %v4270 = vpop.f32.mrb[0].mxu0
        %v4271 = vadd.f32 0.0, %v4270
        %4272 = vdwg.mxu0
        %v4273 = vadd.f32 %v4179, 0.0
        %v4274 = vadd.f32 %v4181, 0.0
        %v4275 = vadd.f32 %v4185, 0.0
        %v4276 = vadd.f32 %v4187, 0.0
        %v4277 = vadd.f32 %v4191, 0.0
        %v4278 = vadd.f32 %v4193, 0.0
        %v4279 = vadd.f32 %v4197, 0.0
        %v4280 = vadd.f32 %v4199, 0.0
        %v4281 = vadd.f32 %v4203, 0.0
        %v4282 = vadd.f32 %v4205, 0.0
        %v4283 = vadd.f32 %v4209, 0.0
        %v4284 = vadd.f32 %v4211, 0.0
        %v4285 = vadd.f32 %v4215, 0.0
        %v4286 = vadd.f32 %v4217, 0.0
        %v4287 = vadd.f32 %v4221, 0.0
        %v4288 = vadd.f32 %v4223, 0.0
        %v4289 = vadd.f32 %v4227, 0.0
        %v4290 = vadd.f32 %v4229, 0.0
        %v4291 = vadd.f32 %v4233, 0.0
        %v4292 = vadd.f32 %v4235, 0.0
        %v4293 = vadd.f32 %v4239, 0.0
        %v4294 = vadd.f32 %v4241, 0.0
        %v4295 = vadd.f32 %v4245, 0.0
        %v4296 = vadd.f32 %v4247, 0.0
        %v4297 = vadd.f32 %v4251, 0.0
        %v4298 = vadd.f32 %v4253, 0.0
        %v4299 = vadd.f32 %v4257, 0.0
        %v4300 = vadd.f32 %v4259, 0.0
        %v4301 = vadd.f32 %v4263, 0.0
        %v4302 = vadd.f32 %v4265, 0.0
        %v4303 = vadd.f32 %v4269, 0.0
        %v4304 = vadd.f32 %v4271, 0.0
        %v4305 = vsub.f32 %v4000, %v4273
        %v4306 = vsub.f32 %v4001, %v4274
        %v4307 = vsub.f32 %v4002, %v4275
        %v4308 = vsub.f32 %v4003, %v4276
        %v4309 = vsub.f32 %v4004, %v4277
        %v4310 = vsub.f32 %v4005, %v4278
        %v4311 = vsub.f32 %v4006, %v4279
        %v4312 = vsub.f32 %v4007, %v4280
        %v4313 = vsub.f32 %v4008, %v4281
        %v4314 = vsub.f32 %v4009, %v4282
        %v4315 = vsub.f32 %v4010, %v4283
        %v4316 = vsub.f32 %v4011, %v4284
        %v4317 = vsub.f32 %v4012, %v4285
        %v4318 = vsub.f32 %v4013, %v4286
        %v4319 = vsub.f32 %v4014, %v4287
        %v4320 = vsub.f32 %v4015, %v4288
        %v4321 = vsub.f32 %v4032, %v4289
        %v4322 = vsub.f32 %v4033, %v4290
        %v4323 = vsub.f32 %v4034, %v4291
        %v4324 = vsub.f32 %v4035, %v4292
        %v4325 = vsub.f32 %v4036, %v4293
        %v4326 = vsub.f32 %v4037, %v4294
        %v4327 = vsub.f32 %v4038, %v4295
        %v4328 = vsub.f32 %v4039, %v4296
        %v4329 = vsub.f32 %v4040, %v4297
        %v4330 = vsub.f32 %v4041, %v4298
        %v4331 = vsub.f32 %v4042, %v4299
        %v4332 = vsub.f32 %v4043, %v4300
        %v4333 = vsub.f32 %v4044, %v4301
        %v4334 = vsub.f32 %v4045, %v4302
        %v4335 = vsub.f32 %v4046, %v4303
        %v4336 = vsub.f32 %v4047, %v4304
        %v4337 = vmax.f32 %v4305, %v4307
        %v4338 = vmax.f32 %v4337, %v4309
        %v4339 = vmax.f32 %v4338, %v4311
        %v4340 = vmax.f32 %v4339, %v4313
        %v4341 = vmax.f32 %v4340, %v4315
        %v4342 = vmax.f32 %v4341, %v4317
        %v4343 = vmax.f32 %v4342, %v4319
        %v4344 = vrot.slane %v4343, 4
        %v4345 = vmax.f32 %v4343, %v4344
        %v4346 = vrot.slane %v4345, 2
        %v4347 = vmax.f32 %v4345, %v4346
        %v4348 = vrot.slane %v4347, 1
        %v4349 = vmax.f32 %v4347, %v4348
        %v4350 = vmax.f32 %v4306, %v4308
        %v4351 = vmax.f32 %v4350, %v4310
        %v4352 = vmax.f32 %v4351, %v4312
        %v4353 = vmax.f32 %v4352, %v4314
        %v4354 = vmax.f32 %v4353, %v4316
        %v4355 = vmax.f32 %v4354, %v4318
        %v4356 = vmax.f32 %v4355, %v4320
        %v4357 = vrot.slane %v4356, 4
        %v4358 = vmax.f32 %v4356, %v4357
        %v4359 = vrot.slane %v4358, 2
        %v4360 = vmax.f32 %v4358, %v4359
        %v4361 = vrot.slane %v4360, 1
        %v4362 = vmax.f32 %v4360, %v4361
        %v4363 = vmax.f32 %v4321, %v4323
        %v4364 = vmax.f32 %v4363, %v4325
        %v4365 = vmax.f32 %v4364, %v4327
        %v4366 = vmax.f32 %v4365, %v4329
        %v4367 = vmax.f32 %v4366, %v4331
        %v4368 = vmax.f32 %v4367, %v4333
        %v4369 = vmax.f32 %v4368, %v4335
        %v4370 = vrot.slane %v4369, 4
        %v4371 = vmax.f32 %v4369, %v4370
        %v4372 = vrot.slane %v4371, 2
        %v4373 = vmax.f32 %v4371, %v4372
        %v4374 = vrot.slane %v4373, 1
        %v4375 = vmax.f32 %v4373, %v4374
        %v4376 = vmax.f32 %v4322, %v4324
        %v4377 = vmax.f32 %v4376, %v4326
        %v4378 = vmax.f32 %v4377, %v4328
        %v4379 = vmax.f32 %v4378, %v4330
        %v4380 = vmax.f32 %v4379, %v4332
        %v4381 = vmax.f32 %v4380, %v4334
        %v4382 = vmax.f32 %v4381, %v4336
        %v4383 = vrot.slane %v4382, 4
        %v4384 = vmax.f32 %v4382, %v4383
        %v4385 = vrot.slane %v4384, 2
        %v4386 = vmax.f32 %v4384, %v4385
        %v4387 = vrot.slane %v4386, 1
        %v4388 = vmax.f32 %v4386, %v4387
        %v4389 = vmax.f32 %v4349, -1e+30
        %v4390 = vmax.f32 %v4362, -1e+30
        %v4391 = vmax.f32 %v4375, -1e+30
        %v4392 = vmax.f32 %v4388, -1e+30
        %v4393 = vsub.f32 %v4305, %v4389
        %v4394 = vsub.f32 %v4306, %v4390
        %v4395 = vsub.f32 %v4307, %v4389
        %v4396 = vsub.f32 %v4308, %v4390
        %v4397 = vsub.f32 %v4309, %v4389
        %v4398 = vsub.f32 %v4310, %v4390
        %v4399 = vsub.f32 %v4311, %v4389
        %v4400 = vsub.f32 %v4312, %v4390
        %v4401 = vsub.f32 %v4313, %v4389
        %v4402 = vsub.f32 %v4314, %v4390
        %v4403 = vsub.f32 %v4315, %v4389
        %v4404 = vsub.f32 %v4316, %v4390
        %v4405 = vsub.f32 %v4317, %v4389
        %v4406 = vsub.f32 %v4318, %v4390
        %v4407 = vsub.f32 %v4319, %v4389
        %v4408 = vsub.f32 %v4320, %v4390
        %v4409 = vsub.f32 %v4321, %v4391
        %v4410 = vsub.f32 %v4322, %v4392
        %v4411 = vsub.f32 %v4323, %v4391
        %v4412 = vsub.f32 %v4324, %v4392
        %v4413 = vsub.f32 %v4325, %v4391
        %v4414 = vsub.f32 %v4326, %v4392
        %v4415 = vsub.f32 %v4327, %v4391
        %v4416 = vsub.f32 %v4328, %v4392
        %v4417 = vsub.f32 %v4329, %v4391
        %v4418 = vsub.f32 %v4330, %v4392
        %v4419 = vsub.f32 %v4331, %v4391
        %v4420 = vsub.f32 %v4332, %v4392
        %v4421 = vsub.f32 %v4333, %v4391
        %v4422 = vsub.f32 %v4334, %v4392
        %v4423 = vsub.f32 %v4335, %v4391
        %v4424 = vsub.f32 %v4336, %v4392
        %v4425 = vmul.f32 %v4393, 1.442695
        %v4426 = vpow.pop %v4425
        %v4427 = vmul.f32 %v4394, 1.442695
        %v4428 = vpow.pop %v4427
        %v4429 = vmul.f32 %v4395, 1.442695
        %v4430 = vpow.pop %v4429
        %v4431 = vmul.f32 %v4396, 1.442695
        %v4432 = vpow.pop %v4431
        %v4433 = vmul.f32 %v4397, 1.442695
        %v4434 = vpow.pop %v4433
        %v4435 = vmul.f32 %v4398, 1.442695
        %v4436 = vpow.pop %v4435
        %v4437 = vmul.f32 %v4399, 1.442695
        %v4438 = vpow.pop %v4437
        %v4439 = vmul.f32 %v4400, 1.442695
        %v4440 = vpow.pop %v4439
        %v4441 = vmul.f32 %v4401, 1.442695
        %v4442 = vpow.pop %v4441
        %v4443 = vmul.f32 %v4402, 1.442695
        %v4444 = vpow.pop %v4443
        %v4445 = vmul.f32 %v4403, 1.442695
        %v4446 = vpow.pop %v4445
        %v4447 = vmul.f32 %v4404, 1.442695
        %v4448 = vpow.pop %v4447
        %v4449 = vmul.f32 %v4405, 1.442695
        %v4450 = vpow.pop %v4449
        %v4451 = vmul.f32 %v4406, 1.442695
        %v4452 = vpow.pop %v4451
        %v4453 = vmul.f32 %v4407, 1.442695
        %v4454 = vpow.pop %v4453
        %v4455 = vmul.f32 %v4408, 1.442695
        %v4456 = vpow.pop %v4455
        %v4457 = vmul.f32 %v4409, 1.442695
        %v4458 = vpow.pop %v4457
        %v4459 = vmul.f32 %v4410, 1.442695
        %v4460 = vpow.pop %v4459
        %v4461 = vmul.f32 %v4411, 1.442695
        %v4462 = vpow.pop %v4461
        %v4463 = vmul.f32 %v4412, 1.442695
        %v4464 = vpow.pop %v4463
        %v4465 = vmul.f32 %v4413, 1.442695
        %v4466 = vpow.pop %v4465
        %v4467 = vmul.f32 %v4414, 1.442695
        %v4468 = vpow.pop %v4467
        %v4469 = vmul.f32 %v4415, 1.442695
        %v4470 = vpow.pop %v4469
        %v4471 = vmul.f32 %v4416, 1.442695
        %v4472 = vpow.pop %v4471
        %v4473 = vmul.f32 %v4417, 1.442695
        %v4474 = vpow.pop %v4473
        %v4475 = vmul.f32 %v4418, 1.442695
        %v4476 = vpow.pop %v4475
        %v4477 = vmul.f32 %v4419, 1.442695
        %v4478 = vpow.pop %v4477
        %v4479 = vmul.f32 %v4420, 1.442695
        %v4480 = vpow.pop %v4479
        %v4481 = vmul.f32 %v4421, 1.442695
        %v4482 = vpow.pop %v4481
        %v4483 = vmul.f32 %v4422, 1.442695
        %v4484 = vpow.pop %v4483
        %v4485 = vmul.f32 %v4423, 1.442695
        %v4486 = vpow.pop %v4485
        %v4487 = vmul.f32 %v4424, 1.442695
        %v4488 = vpow.pop %v4487
        %v4489 = vsub.f32 -1e+30, %v4389
        %v4490 = vsub.f32 -1e+30, %v4390
        %v4491 = vsub.f32 -1e+30, %v4391
        %v4492 = vsub.f32 -1e+30, %v4392
        %v4493 = vmul.f32 %v4489, 1.442695
        %v4494 = vpow.pop %v4493
        %v4495 = vmul.f32 %v4490, 1.442695
        %v4496 = vpow.pop %v4495
        %v4497 = vmul.f32 %v4491, 1.442695
        %v4498 = vpow.pop %v4497
        %v4499 = vmul.f32 %v4492, 1.442695
        %v4500 = vpow.pop %v4499
        %v4501 = vmul.f32 %v4494, 0.0
        %v4502 = vmul.f32 %v4496, 0.0
        %v4503 = vmul.f32 %v4498, 0.0
        %v4504 = vmul.f32 %v4500, 0.0
        %4505 = vmatprep.subr.mxu0 %v4428
        %4506 = vmatpush1.msra.mxu0 %v4426
        %4507 = vmatprep.subr.mxu0 %v4432
        %4508 = vmatpush1.msra.mxu0 %v4430
        %4509 = vmatprep.subr.mxu0 %v4436
        %4510 = vmatpush1.msra.mxu0 %v4434
        %4511 = vmatprep.subr.mxu0 %v4440
        %4512 = vmatpush1.msra.mxu0 %v4438
        %4513 = vmatprep.subr.mxu0 %v4444
        %4514 = vmatpush1.msra.mxu0 %v4442
        %4515 = vmatprep.subr.mxu0 %v4448
        %4516 = vmatpush1.msra.mxu0 %v4446
        %4517 = vmatprep.subr.mxu0 %v4452
        %4518 = vmatpush1.msra.mxu0 %v4450
        %4519 = vmatprep.subr.mxu0 %v4456
        %4520 = vmatpush1.msra.mxu0 %v4454
        %4521 = vmatprep.subr.mxu0 %v4460
        %4522 = vmatpush1.msra.mxu0 %v4458
        %4523 = vmatprep.subr.mxu0 %v4464
        %4524 = vmatpush1.msra.mxu0 %v4462
        %4525 = vmatprep.subr.mxu0 %v4468
        %4526 = vmatpush1.msra.mxu0 %v4466
        %4527 = vmatprep.subr.mxu0 %v4472
        %4528 = vmatpush1.msra.mxu0 %v4470
        %4529 = vmatprep.subr.mxu0 %v4476
        %4530 = vmatpush1.msra.mxu0 %v4474
        %4531 = vmatprep.subr.mxu0 %v4480
        %4532 = vmatpush1.msra.mxu0 %v4478
        %4533 = vmatprep.subr.mxu0 %v4484
        %4534 = vmatpush1.msra.mxu0 %v4482
        %4535 = vmatprep.subr.mxu0 %v4488
        %4536 = vmatpush1.msra.mxu0 %v4486
        %4537 = vmatprep.subr.mxu0 0.0
        %4538 = vmatpush1.msra.mxu0 0.0
        %4539 = vmatprep.subr.mxu0 0.0
        %4540 = vmatpush1.msra.mxu0 0.0
        %4541 = vmatprep.subr.mxu0 0.0
        %4542 = vmatpush1.msra.mxu0 0.0
        %4543 = vmatprep.subr.mxu0 0.0
        %4544 = vmatpush1.msra.mxu0 0.0
        %4545 = vmatprep.subr.mxu0 0.0
        %4546 = vmatpush1.msra.mxu0 0.0
        %4547 = vmatprep.subr.mxu0 0.0
        %4548 = vmatpush1.msra.mxu0 0.0
        %4549 = vmatprep.subr.mxu0 0.0
        %4550 = vmatpush1.msra.mxu0 0.0
        %4551 = vmatprep.subr.mxu0 0.0
        %4552 = vmatpush1.msra.mxu0 0.0
        %4553 = vmatprep.subr.mxu0 0.0
        %4554 = vmatpush1.msra.mxu0 0.0
        %4555 = vmatprep.subr.mxu0 0.0
        %4556 = vmatpush1.msra.mxu0 0.0
        %4557 = vmatprep.subr.mxu0 0.0
        %4558 = vmatpush1.msra.mxu0 0.0
        %4559 = vmatprep.subr.mxu0 0.0
        %4560 = vmatpush1.msra.mxu0 0.0
        %4561 = vmatprep.subr.mxu0 0.0
        %4562 = vmatpush1.msra.mxu0 0.0
        %4563 = vmatprep.subr.mxu0 0.0
        %4564 = vmatpush1.msra.mxu0 0.0
        %4565 = vmatprep.subr.mxu0 0.0
        %4566 = vmatpush1.msra.mxu0 0.0
        %4567 = vmatprep.subr.mxu0 0.0
        %4568 = vmatpush1.msra.mxu0 0.0
        %4569 = vmatprep.mubr.f32.mxu0 0.0
        %4570 = vmatmul.mubr.f32.gmra.mrb[0].mxu0 %v4064
        %v4571 = vpop.f32.mrb[0].mxu0
        %v4572 = vadd.f32 0.0, %v4571
        %v4573 = vpop.f32.mrb[0].mxu0
        %v4574 = vadd.f32 0.0, %v4573
        %4575 = vmatprep.mubr.f32.mxu0 0.0
        %4576 = vmatmul.mubr.f32.gmra.mrb[0].mxu0 %v4065
        %v4577 = vpop.f32.mrb[0].mxu0
        %v4578 = vadd.f32 0.0, %v4577
        %v4579 = vpop.f32.mrb[0].mxu0
        %v4580 = vadd.f32 0.0, %v4579
        %4581 = vmatprep.mubr.f32.mxu0 0.0
        %4582 = vmatmul.mubr.f32.gmra.mrb[0].mxu0 %v4066
        %v4583 = vpop.f32.mrb[0].mxu0
        %v4584 = vadd.f32 0.0, %v4583
        %v4585 = vpop.f32.mrb[0].mxu0
        %v4586 = vadd.f32 0.0, %v4585
        %4587 = vmatprep.mubr.f32.mxu0 0.0
        %4588 = vmatmul.mubr.f32.gmra.mrb[0].mxu0 %v4067
        %v4589 = vpop.f32.mrb[0].mxu0
        %v4590 = vadd.f32 0.0, %v4589
        %v4591 = vpop.f32.mrb[0].mxu0
        %v4592 = vadd.f32 0.0, %v4591
        %4593 = vmatprep.mubr.f32.mxu0 0.0
        %4594 = vmatmul.mubr.f32.gmra.mrb[0].mxu0 %v4068
        %v4595 = vpop.f32.mrb[0].mxu0
        %v4596 = vadd.f32 0.0, %v4595
        %v4597 = vpop.f32.mrb[0].mxu0
        %v4598 = vadd.f32 0.0, %v4597
        %4599 = vmatprep.mubr.f32.mxu0 0.0
        %4600 = vmatmul.mubr.f32.gmra.mrb[0].mxu0 %v4069
        %v4601 = vpop.f32.mrb[0].mxu0
        %v4602 = vadd.f32 0.0, %v4601
        %v4603 = vpop.f32.mrb[0].mxu0
        %v4604 = vadd.f32 0.0, %v4603
        %4605 = vmatprep.mubr.f32.mxu0 0.0
        %4606 = vmatmul.mubr.f32.gmra.mrb[0].mxu0 %v4070
        %v4607 = vpop.f32.mrb[0].mxu0
        %v4608 = vadd.f32 0.0, %v4607
        %v4609 = vpop.f32.mrb[0].mxu0
        %v4610 = vadd.f32 0.0, %v4609
        %4611 = vmatprep.mubr.f32.mxu0 0.0
        %4612 = vmatmul.mubr.f32.gmra.mrb[0].mxu0 %v4071
        %v4613 = vpop.f32.mrb[0].mxu0
        %v4614 = vadd.f32 0.0, %v4613
        %v4615 = vpop.f32.mrb[0].mxu0
        %v4616 = vadd.f32 0.0, %v4615
        %4617 = vmatprep.mubr.f32.mxu0 0.0
        %4618 = vmatmul.mubr.f32.gmra.mrb[0].mxu0 %v4072
        %v4619 = vpop.f32.mrb[0].mxu0
        %v4620 = vadd.f32 0.0, %v4619
        %v4621 = vpop.f32.mrb[0].mxu0
        %v4622 = vadd.f32 0.0, %v4621
        %4623 = vmatprep.mubr.f32.mxu0 0.0
        %4624 = vmatmul.mubr.f32.gmra.mrb[0].mxu0 %v4073
        %v4625 = vpop.f32.mrb[0].mxu0
        %v4626 = vadd.f32 0.0, %v4625
        %v4627 = vpop.f32.mrb[0].mxu0
        %v4628 = vadd.f32 0.0, %v4627
        %4629 = vmatprep.mubr.f32.mxu0 0.0
        %4630 = vmatmul.mubr.f32.gmra.mrb[0].mxu0 %v4074
        %v4631 = vpop.f32.mrb[0].mxu0
        %v4632 = vadd.f32 0.0, %v4631
        %v4633 = vpop.f32.mrb[0].mxu0
        %v4634 = vadd.f32 0.0, %v4633
        %4635 = vmatprep.mubr.f32.mxu0 0.0
        %4636 = vmatmul.mubr.f32.gmra.mrb[0].mxu0 %v4075
        %v4637 = vpop.f32.mrb[0].mxu0
        %v4638 = vadd.f32 0.0, %v4637
        %v4639 = vpop.f32.mrb[0].mxu0
        %v4640 = vadd.f32 0.0, %v4639
        %4641 = vmatprep.mubr.f32.mxu0 0.0
        %4642 = vmatmul.mubr.f32.gmra.mrb[0].mxu0 %v4076
        %v4643 = vpop.f32.mrb[0].mxu0
        %v4644 = vadd.f32 0.0, %v4643
        %v4645 = vpop.f32.mrb[0].mxu0
        %v4646 = vadd.f32 0.0, %v4645
        %4647 = vmatprep.mubr.f32.mxu0 0.0
        %4648 = vmatmul.mubr.f32.gmra.mrb[0].mxu0 %v4077
        %v4649 = vpop.f32.mrb[0].mxu0
        %v4650 = vadd.f32 0.0, %v4649
        %v4651 = vpop.f32.mrb[0].mxu0
        %v4652 = vadd.f32 0.0, %v4651
        %4653 = vmatprep.mubr.f32.mxu0 0.0
        %4654 = vmatmul.mubr.f32.gmra.mrb[0].mxu0 %v4078
        %v4655 = vpop.f32.mrb[0].mxu0
        %v4656 = vadd.f32 0.0, %v4655
        %v4657 = vpop.f32.mrb[0].mxu0
        %v4658 = vadd.f32 0.0, %v4657
        %4659 = vmatprep.mubr.f32.mxu0 0.0
        %4660 = vmatmul.mubr.f32.gmra.mrb[0].mxu0 %v4079
        %v4661 = vpop.f32.mrb[0].mxu0
        %v4662 = vadd.f32 0.0, %v4661
        %v4663 = vpop.f32.mrb[0].mxu0
        %v4664 = vadd.f32 0.0, %v4663
        %4665 = vdwg.mxu0
        %v4666 = vadd.f32 %v4501, %v4572
        %v4667 = vadd.f32 %v4502, %v4574
        %v4668 = vadd.f32 %v4501, %v4578
        %v4669 = vadd.f32 %v4502, %v4580
        %v4670 = vadd.f32 %v4501, %v4584
        %v4671 = vadd.f32 %v4502, %v4586
        %v4672 = vadd.f32 %v4501, %v4590
        %v4673 = vadd.f32 %v4502, %v4592
        %v4674 = vadd.f32 %v4501, %v4596
        %v4675 = vadd.f32 %v4502, %v4598
        %v4676 = vadd.f32 %v4501, %v4602
        %v4677 = vadd.f32 %v4502, %v4604
        %v4678 = vadd.f32 %v4501, %v4608
        %v4679 = vadd.f32 %v4502, %v4610
        %v4680 = vadd.f32 %v4501, %v4614
        %v4681 = vadd.f32 %v4502, %v4616
        %v4682 = vadd.f32 %v4503, %v4620
        %v4683 = vadd.f32 %v4504, %v4622
        %v4684 = vadd.f32 %v4503, %v4626
        %v4685 = vadd.f32 %v4504, %v4628
        %v4686 = vadd.f32 %v4503, %v4632
        %v4687 = vadd.f32 %v4504, %v4634
        %v4688 = vadd.f32 %v4503, %v4638
        %v4689 = vadd.f32 %v4504, %v4640
        %v4690 = vadd.f32 %v4503, %v4644
        %v4691 = vadd.f32 %v4504, %v4646
        %v4692 = vadd.f32 %v4503, %v4650
        %v4693 = vadd.f32 %v4504, %v4652
        %v4694 = vadd.f32 %v4503, %v4656
        %v4695 = vadd.f32 %v4504, %v4658
        %v4696 = vadd.f32 %v4503, %v4662
        %v4697 = vadd.f32 %v4504, %v4664
        %v4698 = vadd.f32 %v4273, %v4389
        %v4699 = vadd.f32 %v4274, %v4390
        %v4700 = vadd.f32 %v4275, %v4389
        %v4701 = vadd.f32 %v4276, %v4390
        %v4702 = vadd.f32 %v4277, %v4389
        %v4703 = vadd.f32 %v4278, %v4390
        %v4704 = vadd.f32 %v4279, %v4389
        %v4705 = vadd.f32 %v4280, %v4390
        %v4706 = vadd.f32 %v4281, %v4389
        %v4707 = vadd.f32 %v4282, %v4390
        %v4708 = vadd.f32 %v4283, %v4389
        %v4709 = vadd.f32 %v4284, %v4390
        %v4710 = vadd.f32 %v4285, %v4389
        %v4711 = vadd.f32 %v4286, %v4390
        %v4712 = vadd.f32 %v4287, %v4389
        %v4713 = vadd.f32 %v4288, %v4390
        %v4714 = vadd.f32 %v4289, %v4391
        %v4715 = vadd.f32 %v4290, %v4392
        %v4716 = vadd.f32 %v4291, %v4391
        %v4717 = vadd.f32 %v4292, %v4392
        %v4718 = vadd.f32 %v4293, %v4391
        %v4719 = vadd.f32 %v4294, %v4392
        %v4720 = vadd.f32 %v4295, %v4391
        %v4721 = vadd.f32 %v4296, %v4392
        %v4722 = vadd.f32 %v4297, %v4391
        %v4723 = vadd.f32 %v4298, %v4392
        %v4724 = vadd.f32 %v4299, %v4391
        %v4725 = vadd.f32 %v4300, %v4392
        %v4726 = vadd.f32 %v4301, %v4391
        %v4727 = vadd.f32 %v4302, %v4392
        %v4728 = vadd.f32 %v4303, %v4391
        %v4729 = vadd.f32 %v4304, %v4392
        %v4730 = vmul.f32 %v4698, 1.442695
        %v4731 = vpow.pop %v4730
        %v4732 = vmul.f32 %v4699, 1.442695
        %v4733 = vpow.pop %v4732
        %v4734 = vmul.f32 %v4700, 1.442695
        %v4735 = vpow.pop %v4734
        %v4736 = vmul.f32 %v4701, 1.442695
        %v4737 = vpow.pop %v4736
        %v4738 = vmul.f32 %v4702, 1.442695
        %v4739 = vpow.pop %v4738
        %v4740 = vmul.f32 %v4703, 1.442695
        %v4741 = vpow.pop %v4740
        %v4742 = vmul.f32 %v4704, 1.442695
        %v4743 = vpow.pop %v4742
        %v4744 = vmul.f32 %v4705, 1.442695
        %v4745 = vpow.pop %v4744
        %v4746 = vmul.f32 %v4706, 1.442695
        %v4747 = vpow.pop %v4746
        %v4748 = vmul.f32 %v4707, 1.442695
        %v4749 = vpow.pop %v4748
        %v4750 = vmul.f32 %v4708, 1.442695
        %v4751 = vpow.pop %v4750
        %v4752 = vmul.f32 %v4709, 1.442695
        %v4753 = vpow.pop %v4752
        %v4754 = vmul.f32 %v4710, 1.442695
        %v4755 = vpow.pop %v4754
        %v4756 = vmul.f32 %v4711, 1.442695
        %v4757 = vpow.pop %v4756
        %v4758 = vmul.f32 %v4712, 1.442695
        %v4759 = vpow.pop %v4758
        %v4760 = vmul.f32 %v4713, 1.442695
        %v4761 = vpow.pop %v4760
        %v4762 = vmul.f32 %v4714, 1.442695
        %v4763 = vpow.pop %v4762
        %v4764 = vmul.f32 %v4715, 1.442695
        %v4765 = vpow.pop %v4764
        %v4766 = vmul.f32 %v4716, 1.442695
        %v4767 = vpow.pop %v4766
        %v4768 = vmul.f32 %v4717, 1.442695
        %v4769 = vpow.pop %v4768
        %v4770 = vmul.f32 %v4718, 1.442695
        %v4771 = vpow.pop %v4770
        %v4772 = vmul.f32 %v4719, 1.442695
        %v4773 = vpow.pop %v4772
        %v4774 = vmul.f32 %v4720, 1.442695
        %v4775 = vpow.pop %v4774
        %v4776 = vmul.f32 %v4721, 1.442695
        %v4777 = vpow.pop %v4776
        %v4778 = vmul.f32 %v4722, 1.442695
        %v4779 = vpow.pop %v4778
        %v4780 = vmul.f32 %v4723, 1.442695
        %v4781 = vpow.pop %v4780
        %v4782 = vmul.f32 %v4724, 1.442695
        %v4783 = vpow.pop %v4782
        %v4784 = vmul.f32 %v4725, 1.442695
        %v4785 = vpow.pop %v4784
        %v4786 = vmul.f32 %v4726, 1.442695
        %v4787 = vpow.pop %v4786
        %v4788 = vmul.f32 %v4727, 1.442695
        %v4789 = vpow.pop %v4788
        %v4790 = vmul.f32 %v4728, 1.442695
        %v4791 = vpow.pop %v4790
        %v4792 = vmul.f32 %v4729, 1.442695
        %v4793 = vpow.pop %v4792
        %v4794 = vmul.f32 %v4731, %v4666
        %v4795 = vmul.f32 %v4733, %v4667
        %v4796 = vmul.f32 %v4735, %v4668
        %v4797 = vmul.f32 %v4737, %v4669
        %v4798 = vmul.f32 %v4739, %v4670
        %v4799 = vmul.f32 %v4741, %v4671
        %v4800 = vmul.f32 %v4743, %v4672
        %v4801 = vmul.f32 %v4745, %v4673
        %v4802 = vmul.f32 %v4747, %v4674
        %v4803 = vmul.f32 %v4749, %v4675
        %v4804 = vmul.f32 %v4751, %v4676
        %v4805 = vmul.f32 %v4753, %v4677
        %v4806 = vmul.f32 %v4755, %v4678
        %v4807 = vmul.f32 %v4757, %v4679
        %v4808 = vmul.f32 %v4759, %v4680
        %v4809 = vmul.f32 %v4761, %v4681
        %v4810 = vmul.f32 %v4763, %v4682
        %v4811 = vmul.f32 %v4765, %v4683
        %v4812 = vmul.f32 %v4767, %v4684
        %v4813 = vmul.f32 %v4769, %v4685
        %v4814 = vmul.f32 %v4771, %v4686
        %v4815 = vmul.f32 %v4773, %v4687
        %v4816 = vmul.f32 %v4775, %v4688
        %v4817 = vmul.f32 %v4777, %v4689
        %v4818 = vmul.f32 %v4779, %v4690
        %v4819 = vmul.f32 %v4781, %v4691
        %v4820 = vmul.f32 %v4783, %v4692
        %v4821 = vmul.f32 %v4785, %v4693
        %v4822 = vmul.f32 %v4787, %v4694
        %v4823 = vmul.f32 %v4789, %v4695
        %v4824 = vmul.f32 %v4791, %v4696
        %v4825 = vmul.f32 %v4793, %v4697
        %v4826 = vpack.c.bf16 %v4796, %v4794
        %v4827 = vpack.c.bf16 %v4797, %v4795
        %v4828 = vpack.c.bf16 %v4800, %v4798
        %v4829 = vpack.c.bf16 %v4801, %v4799
        %v4830 = vpack.c.bf16 %v4804, %v4802
        %v4831 = vpack.c.bf16 %v4805, %v4803
        %v4832 = vpack.c.bf16 %v4808, %v4806
        %v4833 = vpack.c.bf16 %v4809, %v4807
        %v4834 = vpack.c.bf16 %v4812, %v4810
        %v4835 = vpack.c.bf16 %v4813, %v4811
        %v4836 = vpack.c.bf16 %v4816, %v4814
        %v4837 = vpack.c.bf16 %v4817, %v4815
        %v4838 = vpack.c.bf16 %v4820, %v4818
        %v4839 = vpack.c.bf16 %v4821, %v4819
        %v4840 = vpack.c.bf16 %v4824, %v4822
        %v4841 = vpack.c.bf16 %v4825, %v4823
        %v4874 = vunpack.c.l.b16 %v4080
        %v4875 = vunpack.c.l.b16 %v4081
        %v4876 = vunpack.c.l.b16 %v4082
        %v4877 = vunpack.c.l.b16 %v4083
        %v4878 = vunpack.c.l.b16 %v4084
        %v4879 = vunpack.c.l.b16 %v4085
        %v4880 = vunpack.c.l.b16 %v4086
        %v4881 = vunpack.c.l.b16 %v4087
        %v4882 = vunpack.c.l.b16 %v4088
        %v4883 = vunpack.c.l.b16 %v4089
        %v4884 = vunpack.c.l.b16 %v4090
        %v4885 = vunpack.c.l.b16 %v4091
        %v4886 = vunpack.c.l.b16 %v4092
        %v4887 = vunpack.c.l.b16 %v4093
        %v4888 = vunpack.c.l.b16 %v4094
        %v4889 = vunpack.c.l.b16 %v4095
        %v4890 = vunpack.c.l.b16 %v4096
        %v4891 = vunpack.c.l.b16 %v4097
        %v4892 = vunpack.c.l.b16 %v4098
        %v4893 = vunpack.c.l.b16 %v4099
        %v4894 = vunpack.c.l.b16 %v4100
        %v4895 = vunpack.c.l.b16 %v4101
        %v4896 = vunpack.c.l.b16 %v4102
        %v4897 = vunpack.c.l.b16 %v4103
        %v4898 = vunpack.c.l.b16 %v4104
        %v4899 = vunpack.c.l.b16 %v4105
        %v4900 = vunpack.c.l.b16 %v4106
        %v4901 = vunpack.c.l.b16 %v4107
        %v4902 = vunpack.c.l.b16 %v4108
        %v4903 = vunpack.c.l.b16 %v4109
        %v4904 = vunpack.c.l.b16 %v4110
        %v4905 = vunpack.c.l.b16 %v4111
        %v4906 = vpack.c.b16 %v4875, %v4874
        %v4907 = vpack.c.b16 %v4877, %v4876
        %v4908 = vpack.c.b16 %v4879, %v4878
        %v4909 = vpack.c.b16 %v4881, %v4880
        %v4910 = vpack.c.b16 %v4883, %v4882
        %v4911 = vpack.c.b16 %v4885, %v4884
        %v4912 = vpack.c.b16 %v4887, %v4886
        %v4913 = vpack.c.b16 %v4889, %v4888
        %v4914 = vpack.c.b16 %v4891, %v4890
        %v4915 = vpack.c.b16 %v4893, %v4892
        %v4916 = vpack.c.b16 %v4895, %v4894
        %v4917 = vpack.c.b16 %v4897, %v4896
        %v4918 = vpack.c.b16 %v4899, %v4898
        %v4919 = vpack.c.b16 %v4901, %v4900
        %v4920 = vpack.c.b16 %v4903, %v4902
        %v4921 = vpack.c.b16 %v4905, %v4904
        %4938 = vmatprep.subr.bf16.mxu0 0
        %4939 = vmatpush1.bf16.msra.mxu0 %v4906
        %4940 = vmatprep.subr.bf16.mxu0 0
        %4941 = vmatpush1.bf16.msra.mxu0 %v4907
        %4942 = vmatprep.subr.bf16.mxu0 0
        %4943 = vmatpush1.bf16.msra.mxu0 %v4908
        %4944 = vmatprep.subr.bf16.mxu0 0
        %4945 = vmatpush1.bf16.msra.mxu0 %v4909
        %4946 = vmatprep.subr.bf16.mxu0 0
        %4947 = vmatpush1.bf16.msra.mxu0 %v4910
        %4948 = vmatprep.subr.bf16.mxu0 0
        %4949 = vmatpush1.bf16.msra.mxu0 %v4911
        %4950 = vmatprep.subr.bf16.mxu0 0
        %4951 = vmatpush1.bf16.msra.mxu0 %v4912
        %4952 = vmatprep.subr.bf16.mxu0 0
        %4953 = vmatpush1.bf16.msra.mxu0 %v4913
        %4954 = vmatprep.subr.bf16.mxu0 0
        %4955 = vmatpush1.bf16.msra.mxu0 %v4914
        %4956 = vmatprep.subr.bf16.mxu0 0
        %4957 = vmatpush1.bf16.msra.mxu0 %v4915
        %4958 = vmatprep.subr.bf16.mxu0 0
        %4959 = vmatpush1.bf16.msra.mxu0 %v4916
        %4960 = vmatprep.subr.bf16.mxu0 0
        %4961 = vmatpush1.bf16.msra.mxu0 %v4917
        %4962 = vmatprep.subr.bf16.mxu0 0
        %4963 = vmatpush1.bf16.msra.mxu0 %v4918
        %4964 = vmatprep.subr.bf16.mxu0 0
        %4965 = vmatpush1.bf16.msra.mxu0 %v4919
        %4966 = vmatprep.subr.bf16.mxu0 0
        %4967 = vmatpush1.bf16.msra.mxu0 %v4920
        %4968 = vmatprep.subr.bf16.mxu0 0
        %4969 = vmatpush1.bf16.msra.mxu0 %v4921
        %4970 = vmatprep.mubr.bf16.mxu0 %v4827
        %4971 = vmatmul.mubr.bf16.gmra.mrb[0].mxu0 %v4826
        %v4972 = vpop.f32.mrb[0].mxu0
        %v4973 = vadd.f32 0.0, %v4972
        %v4974 = vpop.f32.mrb[0].mxu0
        %v4975 = vpop.f32.mrb[0].mxu0
        %v4976 = vadd.f32 0.0, %v4975
        %v4977 = vpop.f32.mrb[0].mxu0
        %4978 = vmatprep.mubr.bf16.mxu0 %v4829
        %4979 = vmatmul.mubr.bf16.gmra.mrb[0].mxu0 %v4828
        %v4980 = vpop.f32.mrb[0].mxu0
        %v4981 = vadd.f32 0.0, %v4980
        %v4982 = vpop.f32.mrb[0].mxu0
        %v4983 = vpop.f32.mrb[0].mxu0
        %v4984 = vadd.f32 0.0, %v4983
        %v4985 = vpop.f32.mrb[0].mxu0
        %4986 = vmatprep.mubr.bf16.mxu0 %v4831
        %4987 = vmatmul.mubr.bf16.gmra.mrb[0].mxu0 %v4830
        %v4988 = vpop.f32.mrb[0].mxu0
        %v4989 = vadd.f32 0.0, %v4988
        %v4990 = vpop.f32.mrb[0].mxu0
        %v4991 = vpop.f32.mrb[0].mxu0
        %v4992 = vadd.f32 0.0, %v4991
        %v4993 = vpop.f32.mrb[0].mxu0
        %4994 = vmatprep.mubr.bf16.mxu0 %v4833
        %4995 = vmatmul.mubr.bf16.gmra.mrb[0].mxu0 %v4832
        %v4996 = vpop.f32.mrb[0].mxu0
        %v4997 = vadd.f32 0.0, %v4996
        %v4998 = vpop.f32.mrb[0].mxu0
        %v4999 = vpop.f32.mrb[0].mxu0
        %v5000 = vadd.f32 0.0, %v4999
        %v5001 = vpop.f32.mrb[0].mxu0
        %5002 = vmatprep.mubr.bf16.mxu0 %v4835
        %5003 = vmatmul.mubr.bf16.gmra.mrb[0].mxu0 %v4834
        %v5004 = vpop.f32.mrb[0].mxu0
        %v5005 = vadd.f32 0.0, %v5004
        %v5006 = vpop.f32.mrb[0].mxu0
        %v5007 = vpop.f32.mrb[0].mxu0
        %v5008 = vadd.f32 0.0, %v5007
        %v5009 = vpop.f32.mrb[0].mxu0
        %5010 = vmatprep.mubr.bf16.mxu0 %v4837
        %5011 = vmatmul.mubr.bf16.gmra.mrb[0].mxu0 %v4836
        %v5012 = vpop.f32.mrb[0].mxu0
        %v5013 = vadd.f32 0.0, %v5012
        %v5014 = vpop.f32.mrb[0].mxu0
        %v5015 = vpop.f32.mrb[0].mxu0
        %v5016 = vadd.f32 0.0, %v5015
        %v5017 = vpop.f32.mrb[0].mxu0
        %5018 = vmatprep.mubr.bf16.mxu0 %v4839
        %5019 = vmatmul.mubr.bf16.gmra.mrb[0].mxu0 %v4838
        %v5020 = vpop.f32.mrb[0].mxu0
        %v5021 = vadd.f32 0.0, %v5020
        %v5022 = vpop.f32.mrb[0].mxu0
        %v5023 = vpop.f32.mrb[0].mxu0
        %v5024 = vadd.f32 0.0, %v5023
        %v5025 = vpop.f32.mrb[0].mxu0
        %5026 = vmatprep.mubr.bf16.mxu0 %v4841
        %5027 = vmatmul.mubr.bf16.gmra.mrb[0].mxu0 %v4840
        %v5028 = vpop.f32.mrb[0].mxu0
        %v5029 = vadd.f32 0.0, %v5028
        %v5030 = vpop.f32.mrb[0].mxu0
        %v5031 = vpop.f32.mrb[0].mxu0
        %v5032 = vadd.f32 0.0, %v5031
        %v5033 = vpop.f32.mrb[0].mxu0
        %5034 = vdwg.mxu0
        %v5035 = vadd.f32 %v4973, %v372
        %v5036 = vadd.f32 %v4976, %v373
        %v5037 = vadd.f32 %v4981, %v374
        %v5038 = vadd.f32 %v4984, %v375
        %v5039 = vadd.f32 %v4989, %v376
        %v5040 = vadd.f32 %v4992, %v377
        %v5041 = vadd.f32 %v4997, %v378
        %v5042 = vadd.f32 %v5000, %v379
        %v5043 = vadd.f32 %v5005, %v388
        %v5044 = vadd.f32 %v5008, %v389
        %v5045 = vadd.f32 %v5013, %v390
        %v5046 = vadd.f32 %v5016, %v391
        %v5047 = vadd.f32 %v5021, %v392
        %v5048 = vadd.f32 %v5024, %v393
        %v5049 = vadd.f32 %v5029, %v394
        %v5050 = vadd.f32 %v5032, %v395
        %5051 = vst [vmem:[%s368] sm:$0xff] %v5035
        %5052 = vst [vmem:[%s368 + $0x8] sm:$0xff] %v5036
        %5053 = vst [vmem:[%s368 + $0x10] sm:$0xff] %v5037
        %5054 = vst [vmem:[%s368 + $0x18] sm:$0xff] %v5038
        %5055 = vst [vmem:[%s368 + $0x20] sm:$0xff] %v5039
        %5056 = vst [vmem:[%s368 + $0x28] sm:$0xff] %v5040
        %5057 = vst [vmem:[%s368 + $0x30] sm:$0xff] %v5041
        %5058 = vst [vmem:[%s368 + $0x38] sm:$0xff] %v5042
        %5059 = vst [vmem:[%s368 + $0x80] sm:$0xff] %v5043
        %5060 = vst [vmem:[%s368 + $0x88] sm:$0xff] %v5044
        %5061 = vst [vmem:[%s368 + $0x90] sm:$0xff] %v5045
        %5062 = vst [vmem:[%s368 + $0x98] sm:$0xff] %v5046
        %5063 = vst [vmem:[%s368 + $0xa0] sm:$0xff] %v5047
        %5064 = vst [vmem:[%s368 + $0xa8] sm:$0xff] %v5048
        %5065 = vst [vmem:[%s368 + $0xb0] sm:$0xff] %v5049
        %5066 = vst [vmem:[%s368 + $0xb8] sm:$0xff] %v5050
        %5067 = vmatprep.subr.mxu0 %v2801
        %5068 = vmatpush1.msra.mxu0 %v2800
        %5069 = vmatprep.subr.mxu0 %v2803
        %5070 = vmatpush1.msra.mxu0 %v2802
        %5071 = vmatprep.subr.mxu0 %v2805
        %5072 = vmatpush1.msra.mxu0 %v2804
        %5073 = vmatprep.subr.mxu0 %v2807
        %5074 = vmatpush1.msra.mxu0 %v2806
        %5075 = vmatprep.subr.mxu0 %v2809
        %5076 = vmatpush1.msra.mxu0 %v2808
        %5077 = vmatprep.subr.mxu0 %v2811
        %5078 = vmatpush1.msra.mxu0 %v2810
        %5079 = vmatprep.subr.mxu0 %v2813
        %5080 = vmatpush1.msra.mxu0 %v2812
        %5081 = vmatprep.subr.mxu0 %v2815
        %5082 = vmatpush1.msra.mxu0 %v2814
        %5083 = vmatprep.subr.mxu0 %v2833
        %5084 = vmatpush1.msra.mxu0 %v2832
        %5085 = vmatprep.subr.mxu0 %v2835
        %5086 = vmatpush1.msra.mxu0 %v2834
        %5087 = vmatprep.subr.mxu0 %v2837
        %5088 = vmatpush1.msra.mxu0 %v2836
        %5089 = vmatprep.subr.mxu0 %v2839
        %5090 = vmatpush1.msra.mxu0 %v2838
        %5091 = vmatprep.subr.mxu0 %v2841
        %5092 = vmatpush1.msra.mxu0 %v2840
        %5093 = vmatprep.subr.mxu0 %v2843
        %5094 = vmatpush1.msra.mxu0 %v2842
        %5095 = vmatprep.subr.mxu0 %v2845
        %5096 = vmatpush1.msra.mxu0 %v2844
        %5097 = vmatprep.subr.mxu0 %v2847
        %5098 = vmatpush1.msra.mxu0 %v2846
        %5099 = vmatprep.subr.mxu0 0.0
        %5100 = vmatpush1.msra.mxu0 0.0
        %5101 = vmatprep.subr.mxu0 0.0
        %5102 = vmatpush1.msra.mxu0 0.0
        %5103 = vmatprep.subr.mxu0 0.0
        %5104 = vmatpush1.msra.mxu0 0.0
        %5105 = vmatprep.subr.mxu0 0.0
        %5106 = vmatpush1.msra.mxu0 0.0
        %5107 = vmatprep.subr.mxu0 0.0
        %5108 = vmatpush1.msra.mxu0 0.0
        %5109 = vmatprep.subr.mxu0 0.0
        %5110 = vmatpush1.msra.mxu0 0.0
        %5111 = vmatprep.subr.mxu0 0.0
        %5112 = vmatpush1.msra.mxu0 0.0
        %5113 = vmatprep.subr.mxu0 0.0
        %5114 = vmatpush1.msra.mxu0 0.0
        %5115 = vmatprep.subr.mxu0 0.0
        %5116 = vmatpush1.msra.mxu0 0.0
        %5117 = vmatprep.subr.mxu0 0.0
        %5118 = vmatpush1.msra.mxu0 0.0
        %5119 = vmatprep.subr.mxu0 0.0
        %5120 = vmatpush1.msra.mxu0 0.0
        %5121 = vmatprep.subr.mxu0 0.0
        %5122 = vmatpush1.msra.mxu0 0.0
        %5123 = vmatprep.subr.mxu0 0.0
        %5124 = vmatpush1.msra.mxu0 0.0
        %5125 = vmatprep.subr.mxu0 0.0
        %5126 = vmatpush1.msra.mxu0 0.0
        %5127 = vmatprep.subr.mxu0 0.0
        %5128 = vmatpush1.msra.mxu0 0.0
        %5129 = vmatprep.subr.mxu0 0.0
        %5130 = vmatpush1.msra.mxu0 0.0
        %5131 = vmatprep.mubr.f32.mxu0 0.0
        %5132 = vmatmul.mubr.f32.gmra.mrb[0].mxu0 %v4064
        %v5133 = vpop.f32.mrb[0].mxu0
        %v5134 = vadd.f32 0.0, %v5133
        %v5135 = vpop.f32.mrb[0].mxu0
        %v5136 = vadd.f32 0.0, %v5135
        %5137 = vmatprep.mubr.f32.mxu0 0.0
        %5138 = vmatmul.mubr.f32.gmra.mrb[0].mxu0 %v4065
        %v5139 = vpop.f32.mrb[0].mxu0
        %v5140 = vadd.f32 0.0, %v5139
        %v5141 = vpop.f32.mrb[0].mxu0
        %v5142 = vadd.f32 0.0, %v5141
        %5143 = vmatprep.mubr.f32.mxu0 0.0
        %5144 = vmatmul.mubr.f32.gmra.mrb[0].mxu0 %v4066
        %v5145 = vpop.f32.mrb[0].mxu0
        %v5146 = vadd.f32 0.0, %v5145
        %v5147 = vpop.f32.mrb[0].mxu0
        %v5148 = vadd.f32 0.0, %v5147
        %5149 = vmatprep.mubr.f32.mxu0 0.0
        %5150 = vmatmul.mubr.f32.gmra.mrb[0].mxu0 %v4067
        %v5151 = vpop.f32.mrb[0].mxu0
        %v5152 = vadd.f32 0.0, %v5151
        %v5153 = vpop.f32.mrb[0].mxu0
        %v5154 = vadd.f32 0.0, %v5153
        %5155 = vmatprep.mubr.f32.mxu0 0.0
        %5156 = vmatmul.mubr.f32.gmra.mrb[0].mxu0 %v4068
        %v5157 = vpop.f32.mrb[0].mxu0
        %v5158 = vadd.f32 0.0, %v5157
        %v5159 = vpop.f32.mrb[0].mxu0
        %v5160 = vadd.f32 0.0, %v5159
        %5161 = vmatprep.mubr.f32.mxu0 0.0
        %5162 = vmatmul.mubr.f32.gmra.mrb[0].mxu0 %v4069
        %v5163 = vpop.f32.mrb[0].mxu0
        %v5164 = vadd.f32 0.0, %v5163
        %v5165 = vpop.f32.mrb[0].mxu0
        %v5166 = vadd.f32 0.0, %v5165
        %5167 = vmatprep.mubr.f32.mxu0 0.0
        %5168 = vmatmul.mubr.f32.gmra.mrb[0].mxu0 %v4070
        %v5169 = vpop.f32.mrb[0].mxu0
        %v5170 = vadd.f32 0.0, %v5169
        %v5171 = vpop.f32.mrb[0].mxu0
        %v5172 = vadd.f32 0.0, %v5171
        %5173 = vmatprep.mubr.f32.mxu0 0.0
        %5174 = vmatmul.mubr.f32.gmra.mrb[0].mxu0 %v4071
        %v5175 = vpop.f32.mrb[0].mxu0
        %v5176 = vadd.f32 0.0, %v5175
        %v5177 = vpop.f32.mrb[0].mxu0
        %v5178 = vadd.f32 0.0, %v5177
        %5179 = vmatprep.mubr.f32.mxu0 0.0
        %5180 = vmatmul.mubr.f32.gmra.mrb[0].mxu0 %v4072
        %v5181 = vpop.f32.mrb[0].mxu0
        %v5182 = vadd.f32 0.0, %v5181
        %v5183 = vpop.f32.mrb[0].mxu0
        %v5184 = vadd.f32 0.0, %v5183
        %5185 = vmatprep.mubr.f32.mxu0 0.0
        %5186 = vmatmul.mubr.f32.gmra.mrb[0].mxu0 %v4073
        %v5187 = vpop.f32.mrb[0].mxu0
        %v5188 = vadd.f32 0.0, %v5187
        %v5189 = vpop.f32.mrb[0].mxu0
        %v5190 = vadd.f32 0.0, %v5189
        %5191 = vmatprep.mubr.f32.mxu0 0.0
        %5192 = vmatmul.mubr.f32.gmra.mrb[0].mxu0 %v4074
        %v5193 = vpop.f32.mrb[0].mxu0
        %v5194 = vadd.f32 0.0, %v5193
        %v5195 = vpop.f32.mrb[0].mxu0
        %v5196 = vadd.f32 0.0, %v5195
        %5197 = vmatprep.mubr.f32.mxu0 0.0
        %5198 = vmatmul.mubr.f32.gmra.mrb[0].mxu0 %v4075
        %v5199 = vpop.f32.mrb[0].mxu0
        %v5200 = vadd.f32 0.0, %v5199
        %v5201 = vpop.f32.mrb[0].mxu0
        %v5202 = vadd.f32 0.0, %v5201
        %5203 = vmatprep.mubr.f32.mxu0 0.0
        %5204 = vmatmul.mubr.f32.gmra.mrb[0].mxu0 %v4076
        %v5205 = vpop.f32.mrb[0].mxu0
        %v5206 = vadd.f32 0.0, %v5205
        %v5207 = vpop.f32.mrb[0].mxu0
        %v5208 = vadd.f32 0.0, %v5207
        %5209 = vmatprep.mubr.f32.mxu0 0.0
        %5210 = vmatmul.mubr.f32.gmra.mrb[0].mxu0 %v4077
        %v5211 = vpop.f32.mrb[0].mxu0
        %v5212 = vadd.f32 0.0, %v5211
        %v5213 = vpop.f32.mrb[0].mxu0
        %v5214 = vadd.f32 0.0, %v5213
        %5215 = vmatprep.mubr.f32.mxu0 0.0
        %5216 = vmatmul.mubr.f32.gmra.mrb[0].mxu0 %v4078
        %v5217 = vpop.f32.mrb[0].mxu0
        %v5218 = vadd.f32 0.0, %v5217
        %v5219 = vpop.f32.mrb[0].mxu0
        %v5220 = vadd.f32 0.0, %v5219
        %5221 = vmatprep.mubr.f32.mxu0 0.0
        %5222 = vmatmul.mubr.f32.gmra.mrb[0].mxu0 %v4079
        %v5223 = vpop.f32.mrb[0].mxu0
        %v5224 = vadd.f32 0.0, %v5223
        %v5225 = vpop.f32.mrb[0].mxu0
        %v5226 = vadd.f32 0.0, %v5225
        %5227 = vdwg.mxu0
        %v5228 = vlaneseq
        %v5229 = vshrl.u32 %v5228, 7
        %v5230 = vsub.s32 7, %v5229
        %v5231 = vrot.slane %v4287, %v5230
        %v5232 = vlaneseq
        %v5233 = vshrl.u32 %v5232, 7
        %v5234 = vsub.s32 7, %v5233
        %v5235 = vrot.slane %v4288, %v5234
        %v5236 = vlaneseq
        %v5237 = vshrl.u32 %v5236, 7
        %v5238 = vsub.s32 7, %v5237
        %v5239 = vrot.slane %v4303, %v5238
        %v5240 = vlaneseq
        %v5241 = vshrl.u32 %v5240, 7
        %v5242 = vsub.s32 7, %v5241
        %v5243 = vrot.slane %v4304, %v5242
        %v5244 = vadd.f32 %v5134, %v5231
        %v5245 = vadd.f32 %v5136, %v5235
        %v5246 = vadd.f32 %v5140, %v5231
        %v5247 = vadd.f32 %v5142, %v5235
        %v5248 = vadd.f32 %v5146, %v5231
        %v5249 = vadd.f32 %v5148, %v5235
        %v5250 = vadd.f32 %v5152, %v5231
        %v5251 = vadd.f32 %v5154, %v5235
        %v5252 = vadd.f32 %v5158, %v5231
        %v5253 = vadd.f32 %v5160, %v5235
        %v5254 = vadd.f32 %v5164, %v5231
        %v5255 = vadd.f32 %v5166, %v5235
        %v5256 = vadd.f32 %v5170, %v5231
        %v5257 = vadd.f32 %v5172, %v5235
        %v5258 = vadd.f32 %v5176, %v5231
        %v5259 = vadd.f32 %v5178, %v5235
        %v5260 = vadd.f32 %v5182, %v5239
        %v5261 = vadd.f32 %v5184, %v5243
        %v5262 = vadd.f32 %v5188, %v5239
        %v5263 = vadd.f32 %v5190, %v5243
        %v5264 = vadd.f32 %v5194, %v5239
        %v5265 = vadd.f32 %v5196, %v5243
        %v5266 = vadd.f32 %v5200, %v5239
        %v5267 = vadd.f32 %v5202, %v5243
        %v5268 = vadd.f32 %v5206, %v5239
        %v5269 = vadd.f32 %v5208, %v5243
        %v5270 = vadd.f32 %v5212, %v5239
        %v5271 = vadd.f32 %v5214, %v5243
        %v5272 = vadd.f32 %v5218, %v5239
        %v5273 = vadd.f32 %v5220, %v5243
        %v5274 = vadd.f32 %v5224, %v5239
        %v5275 = vadd.f32 %v5226, %v5243
        %v5276 = vsub.f32 %v4016, %v5244
        %v5277 = vsub.f32 %v4017, %v5245
        %v5278 = vsub.f32 %v4018, %v5246
        %v5279 = vsub.f32 %v4019, %v5247
        %v5280 = vsub.f32 %v4020, %v5248
        %v5281 = vsub.f32 %v4021, %v5249
        %v5282 = vsub.f32 %v4022, %v5250
        %v5283 = vsub.f32 %v4023, %v5251
        %v5284 = vsub.f32 %v4024, %v5252
        %v5285 = vsub.f32 %v4025, %v5253
        %v5286 = vsub.f32 %v4026, %v5254
        %v5287 = vsub.f32 %v4027, %v5255
        %v5288 = vsub.f32 %v4028, %v5256
        %v5289 = vsub.f32 %v4029, %v5257
        %v5290 = vsub.f32 %v4030, %v5258
        %v5291 = vsub.f32 %v4031, %v5259
        %v5292 = vsub.f32 %v4048, %v5260
        %v5293 = vsub.f32 %v4049, %v5261
        %v5294 = vsub.f32 %v4050, %v5262
        %v5295 = vsub.f32 %v4051, %v5263
        %v5296 = vsub.f32 %v4052, %v5264
        %v5297 = vsub.f32 %v4053, %v5265
        %v5298 = vsub.f32 %v4054, %v5266
        %v5299 = vsub.f32 %v4055, %v5267
        %v5300 = vsub.f32 %v4056, %v5268
        %v5301 = vsub.f32 %v4057, %v5269
        %v5302 = vsub.f32 %v4058, %v5270
        %v5303 = vsub.f32 %v4059, %v5271
        %v5304 = vsub.f32 %v4060, %v5272
        %v5305 = vsub.f32 %v4061, %v5273
        %v5306 = vsub.f32 %v4062, %v5274
        %v5307 = vsub.f32 %v4063, %v5275
        %v5308 = vmax.f32 %v5276, %v5278
        %v5309 = vmax.f32 %v5308, %v5280
        %v5310 = vmax.f32 %v5309, %v5282
        %v5311 = vmax.f32 %v5310, %v5284
        %v5312 = vmax.f32 %v5311, %v5286
        %v5313 = vmax.f32 %v5312, %v5288
        %v5314 = vmax.f32 %v5313, %v5290
        %v5315 = vrot.slane %v5314, 4
        %v5316 = vmax.f32 %v5314, %v5315
        %v5317 = vrot.slane %v5316, 2
        %v5318 = vmax.f32 %v5316, %v5317
        %v5319 = vrot.slane %v5318, 1
        %v5320 = vmax.f32 %v5318, %v5319
        %v5321 = vmax.f32 %v5277, %v5279
        %v5322 = vmax.f32 %v5321, %v5281
        %v5323 = vmax.f32 %v5322, %v5283
        %v5324 = vmax.f32 %v5323, %v5285
        %v5325 = vmax.f32 %v5324, %v5287
        %v5326 = vmax.f32 %v5325, %v5289
        %v5327 = vmax.f32 %v5326, %v5291
        %v5328 = vrot.slane %v5327, 4
        %v5329 = vmax.f32 %v5327, %v5328
        %v5330 = vrot.slane %v5329, 2
        %v5331 = vmax.f32 %v5329, %v5330
        %v5332 = vrot.slane %v5331, 1
        %v5333 = vmax.f32 %v5331, %v5332
        %v5334 = vmax.f32 %v5292, %v5294
        %v5335 = vmax.f32 %v5334, %v5296
        %v5336 = vmax.f32 %v5335, %v5298
        %v5337 = vmax.f32 %v5336, %v5300
        %v5338 = vmax.f32 %v5337, %v5302
        %v5339 = vmax.f32 %v5338, %v5304
        %v5340 = vmax.f32 %v5339, %v5306
        %v5341 = vrot.slane %v5340, 4
        %v5342 = vmax.f32 %v5340, %v5341
        %v5343 = vrot.slane %v5342, 2
        %v5344 = vmax.f32 %v5342, %v5343
        %v5345 = vrot.slane %v5344, 1
        %v5346 = vmax.f32 %v5344, %v5345
        %v5347 = vmax.f32 %v5293, %v5295
        %v5348 = vmax.f32 %v5347, %v5297
        %v5349 = vmax.f32 %v5348, %v5299
        %v5350 = vmax.f32 %v5349, %v5301
        %v5351 = vmax.f32 %v5350, %v5303
        %v5352 = vmax.f32 %v5351, %v5305
        %v5353 = vmax.f32 %v5352, %v5307
        %v5354 = vrot.slane %v5353, 4
        %v5355 = vmax.f32 %v5353, %v5354
        %v5356 = vrot.slane %v5355, 2
        %v5357 = vmax.f32 %v5355, %v5356
        %v5358 = vrot.slane %v5357, 1
        %v5359 = vmax.f32 %v5357, %v5358
        %v5360 = vmax.f32 %v4389, %v5320
        %v5361 = vmax.f32 %v4390, %v5333
        %v5362 = vmax.f32 %v4391, %v5346
        %v5363 = vmax.f32 %v4392, %v5359
        %v5364 = vsub.f32 %v5276, %v5360
        %v5365 = vsub.f32 %v5277, %v5361
        %v5366 = vsub.f32 %v5278, %v5360
        %v5367 = vsub.f32 %v5279, %v5361
        %v5368 = vsub.f32 %v5280, %v5360
        %v5369 = vsub.f32 %v5281, %v5361
        %v5370 = vsub.f32 %v5282, %v5360
        %v5371 = vsub.f32 %v5283, %v5361
        %v5372 = vsub.f32 %v5284, %v5360
        %v5373 = vsub.f32 %v5285, %v5361
        %v5374 = vsub.f32 %v5286, %v5360
        %v5375 = vsub.f32 %v5287, %v5361
        %v5376 = vsub.f32 %v5288, %v5360
        %v5377 = vsub.f32 %v5289, %v5361
        %v5378 = vsub.f32 %v5290, %v5360
        %v5379 = vsub.f32 %v5291, %v5361
        %v5380 = vsub.f32 %v5292, %v5362
        %v5381 = vsub.f32 %v5293, %v5363
        %v5382 = vsub.f32 %v5294, %v5362
        %v5383 = vsub.f32 %v5295, %v5363
        %v5384 = vsub.f32 %v5296, %v5362
        %v5385 = vsub.f32 %v5297, %v5363
        %v5386 = vsub.f32 %v5298, %v5362
        %v5387 = vsub.f32 %v5299, %v5363
        %v5388 = vsub.f32 %v5300, %v5362
        %v5389 = vsub.f32 %v5301, %v5363
        %v5390 = vsub.f32 %v5302, %v5362
        %v5391 = vsub.f32 %v5303, %v5363
        %v5392 = vsub.f32 %v5304, %v5362
        %v5393 = vsub.f32 %v5305, %v5363
        %v5394 = vsub.f32 %v5306, %v5362
        %v5395 = vsub.f32 %v5307, %v5363
        %v5396 = vmul.f32 %v5364, 1.442695
        %v5397 = vpow.pop %v5396
        %v5398 = vmul.f32 %v5365, 1.442695
        %v5399 = vpow.pop %v5398
        %v5400 = vmul.f32 %v5366, 1.442695
        %v5401 = vpow.pop %v5400
        %v5402 = vmul.f32 %v5367, 1.442695
        %v5403 = vpow.pop %v5402
        %v5404 = vmul.f32 %v5368, 1.442695
        %v5405 = vpow.pop %v5404
        %v5406 = vmul.f32 %v5369, 1.442695
        %v5407 = vpow.pop %v5406
        %v5408 = vmul.f32 %v5370, 1.442695
        %v5409 = vpow.pop %v5408
        %v5410 = vmul.f32 %v5371, 1.442695
        %v5411 = vpow.pop %v5410
        %v5412 = vmul.f32 %v5372, 1.442695
        %v5413 = vpow.pop %v5412
        %v5414 = vmul.f32 %v5373, 1.442695
        %v5415 = vpow.pop %v5414
        %v5416 = vmul.f32 %v5374, 1.442695
        %v5417 = vpow.pop %v5416
        %v5418 = vmul.f32 %v5375, 1.442695
        %v5419 = vpow.pop %v5418
        %v5420 = vmul.f32 %v5376, 1.442695
        %v5421 = vpow.pop %v5420
        %v5422 = vmul.f32 %v5377, 1.442695
        %v5423 = vpow.pop %v5422
        %v5424 = vmul.f32 %v5378, 1.442695
        %v5425 = vpow.pop %v5424
        %v5426 = vmul.f32 %v5379, 1.442695
        %v5427 = vpow.pop %v5426
        %v5428 = vmul.f32 %v5380, 1.442695
        %v5429 = vpow.pop %v5428
        %v5430 = vmul.f32 %v5381, 1.442695
        %v5431 = vpow.pop %v5430
        %v5432 = vmul.f32 %v5382, 1.442695
        %v5433 = vpow.pop %v5432
        %v5434 = vmul.f32 %v5383, 1.442695
        %v5435 = vpow.pop %v5434
        %v5436 = vmul.f32 %v5384, 1.442695
        %v5437 = vpow.pop %v5436
        %v5438 = vmul.f32 %v5385, 1.442695
        %v5439 = vpow.pop %v5438
        %v5440 = vmul.f32 %v5386, 1.442695
        %v5441 = vpow.pop %v5440
        %v5442 = vmul.f32 %v5387, 1.442695
        %v5443 = vpow.pop %v5442
        %v5444 = vmul.f32 %v5388, 1.442695
        %v5445 = vpow.pop %v5444
        %v5446 = vmul.f32 %v5389, 1.442695
        %v5447 = vpow.pop %v5446
        %v5448 = vmul.f32 %v5390, 1.442695
        %v5449 = vpow.pop %v5448
        %v5450 = vmul.f32 %v5391, 1.442695
        %v5451 = vpow.pop %v5450
        %v5452 = vmul.f32 %v5392, 1.442695
        %v5453 = vpow.pop %v5452
        %v5454 = vmul.f32 %v5393, 1.442695
        %v5455 = vpow.pop %v5454
        %v5456 = vmul.f32 %v5394, 1.442695
        %v5457 = vpow.pop %v5456
        %v5458 = vmul.f32 %v5395, 1.442695
        %v5459 = vpow.pop %v5458
        %v5460 = vsub.f32 %v4389, %v5360
        %v5461 = vsub.f32 %v4390, %v5361
        %v5462 = vsub.f32 %v4391, %v5362
        %v5463 = vsub.f32 %v4392, %v5363
        %v5464 = vmul.f32 %v5460, 1.442695
        %v5465 = vpow.pop %v5464
        %v5466 = vmul.f32 %v5461, 1.442695
        %v5467 = vpow.pop %v5466
        %v5468 = vmul.f32 %v5462, 1.442695
        %v5469 = vpow.pop %v5468
        %v5470 = vmul.f32 %v5463, 1.442695
        %v5471 = vpow.pop %v5470
        %v5472 = vmul.f32 %v4680, %v5465
        %v5473 = vmul.f32 %v4681, %v5467
        %v5474 = vmul.f32 %v4696, %v5469
        %v5475 = vmul.f32 %v4697, %v5471
        %5476 = vmatprep.subr.mxu0 %v5399
        %5477 = vmatpush1.msra.mxu0 %v5397
        %5478 = vmatprep.subr.mxu0 %v5403
        %5479 = vmatpush1.msra.mxu0 %v5401
        %5480 = vmatprep.subr.mxu0 %v5407
        %5481 = vmatpush1.msra.mxu0 %v5405
        %5482 = vmatprep.subr.mxu0 %v5411
        %5483 = vmatpush1.msra.mxu0 %v5409
        %5484 = vmatprep.subr.mxu0 %v5415
        %5485 = vmatpush1.msra.mxu0 %v5413
        %5486 = vmatprep.subr.mxu0 %v5419
        %5487 = vmatpush1.msra.mxu0 %v5417
        %5488 = vmatprep.subr.mxu0 %v5423
        %5489 = vmatpush1.msra.mxu0 %v5421
        %5490 = vmatprep.subr.mxu0 %v5427
        %5491 = vmatpush1.msra.mxu0 %v5425
        %5492 = vmatprep.subr.mxu0 %v5431
        %5493 = vmatpush1.msra.mxu0 %v5429
        %5494 = vmatprep.subr.mxu0 %v5435
        %5495 = vmatpush1.msra.mxu0 %v5433
        %5496 = vmatprep.subr.mxu0 %v5439
        %5497 = vmatpush1.msra.mxu0 %v5437
        %5498 = vmatprep.subr.mxu0 %v5443
        %5499 = vmatpush1.msra.mxu0 %v5441
        %5500 = vmatprep.subr.mxu0 %v5447
        %5501 = vmatpush1.msra.mxu0 %v5445
        %5502 = vmatprep.subr.mxu0 %v5451
        %5503 = vmatpush1.msra.mxu0 %v5449
        %5504 = vmatprep.subr.mxu0 %v5455
        %5505 = vmatpush1.msra.mxu0 %v5453
        %5506 = vmatprep.subr.mxu0 %v5459
        %5507 = vmatpush1.msra.mxu0 %v5457
        %5508 = vmatprep.subr.mxu0 0.0
        %5509 = vmatpush1.msra.mxu0 0.0
        %5510 = vmatprep.subr.mxu0 0.0
        %5511 = vmatpush1.msra.mxu0 0.0
        %5512 = vmatprep.subr.mxu0 0.0
        %5513 = vmatpush1.msra.mxu0 0.0
        %5514 = vmatprep.subr.mxu0 0.0
        %5515 = vmatpush1.msra.mxu0 0.0
        %5516 = vmatprep.subr.mxu0 0.0
        %5517 = vmatpush1.msra.mxu0 0.0
        %5518 = vmatprep.subr.mxu0 0.0
        %5519 = vmatpush1.msra.mxu0 0.0
        %5520 = vmatprep.subr.mxu0 0.0
        %5521 = vmatpush1.msra.mxu0 0.0
        %5522 = vmatprep.subr.mxu0 0.0
        %5523 = vmatpush1.msra.mxu0 0.0
        %5524 = vmatprep.subr.mxu0 0.0
        %5525 = vmatpush1.msra.mxu0 0.0
        %5526 = vmatprep.subr.mxu0 0.0
        %5527 = vmatpush1.msra.mxu0 0.0
        %5528 = vmatprep.subr.mxu0 0.0
        %5529 = vmatpush1.msra.mxu0 0.0
        %5530 = vmatprep.subr.mxu0 0.0
        %5531 = vmatpush1.msra.mxu0 0.0
        %5532 = vmatprep.subr.mxu0 0.0
        %5533 = vmatpush1.msra.mxu0 0.0
        %5534 = vmatprep.subr.mxu0 0.0
        %5535 = vmatpush1.msra.mxu0 0.0
        %5536 = vmatprep.subr.mxu0 0.0
        %5537 = vmatpush1.msra.mxu0 0.0
        %5538 = vmatprep.subr.mxu0 0.0
        %5539 = vmatpush1.msra.mxu0 0.0
        %5540 = vmatprep.mubr.f32.mxu0 0.0
        %5541 = vmatmul.mubr.f32.gmra.mrb[0].mxu0 %v4064
        %v5542 = vpop.f32.mrb[0].mxu0
        %v5543 = vadd.f32 0.0, %v5542
        %v5544 = vpop.f32.mrb[0].mxu0
        %v5545 = vadd.f32 0.0, %v5544
        %5546 = vmatprep.mubr.f32.mxu0 0.0
        %5547 = vmatmul.mubr.f32.gmra.mrb[0].mxu0 %v4065
        %v5548 = vpop.f32.mrb[0].mxu0
        %v5549 = vadd.f32 0.0, %v5548
        %v5550 = vpop.f32.mrb[0].mxu0
        %v5551 = vadd.f32 0.0, %v5550
        %5552 = vmatprep.mubr.f32.mxu0 0.0
        %5553 = vmatmul.mubr.f32.gmra.mrb[0].mxu0 %v4066
        %v5554 = vpop.f32.mrb[0].mxu0
        %v5555 = vadd.f32 0.0, %v5554
        %v5556 = vpop.f32.mrb[0].mxu0
        %v5557 = vadd.f32 0.0, %v5556
        %5558 = vmatprep.mubr.f32.mxu0 0.0
        %5559 = vmatmul.mubr.f32.gmra.mrb[0].mxu0 %v4067
        %v5560 = vpop.f32.mrb[0].mxu0
        %v5561 = vadd.f32 0.0, %v5560
        %v5562 = vpop.f32.mrb[0].mxu0
        %v5563 = vadd.f32 0.0, %v5562
        %5564 = vmatprep.mubr.f32.mxu0 0.0
        %5565 = vmatmul.mubr.f32.gmra.mrb[0].mxu0 %v4068
        %v5566 = vpop.f32.mrb[0].mxu0
        %v5567 = vadd.f32 0.0, %v5566
        %v5568 = vpop.f32.mrb[0].mxu0
        %v5569 = vadd.f32 0.0, %v5568
        %5570 = vmatprep.mubr.f32.mxu0 0.0
        %5571 = vmatmul.mubr.f32.gmra.mrb[0].mxu0 %v4069
        %v5572 = vpop.f32.mrb[0].mxu0
        %v5573 = vadd.f32 0.0, %v5572
        %v5574 = vpop.f32.mrb[0].mxu0
        %v5575 = vadd.f32 0.0, %v5574
        %5576 = vmatprep.mubr.f32.mxu0 0.0
        %5577 = vmatmul.mubr.f32.gmra.mrb[0].mxu0 %v4070
        %v5578 = vpop.f32.mrb[0].mxu0
        %v5579 = vadd.f32 0.0, %v5578
        %v5580 = vpop.f32.mrb[0].mxu0
        %v5581 = vadd.f32 0.0, %v5580
        %5582 = vmatprep.mubr.f32.mxu0 0.0
        %5583 = vmatmul.mubr.f32.gmra.mrb[0].mxu0 %v4071
        %v5584 = vpop.f32.mrb[0].mxu0
        %v5585 = vadd.f32 0.0, %v5584
        %v5586 = vpop.f32.mrb[0].mxu0
        %v5587 = vadd.f32 0.0, %v5586
        %5588 = vmatprep.mubr.f32.mxu0 0.0
        %5589 = vmatmul.mubr.f32.gmra.mrb[0].mxu0 %v4072
        %v5590 = vpop.f32.mrb[0].mxu0
        %v5591 = vadd.f32 0.0, %v5590
        %v5592 = vpop.f32.mrb[0].mxu0
        %v5593 = vadd.f32 0.0, %v5592
        %5594 = vmatprep.mubr.f32.mxu0 0.0
        %5595 = vmatmul.mubr.f32.gmra.mrb[0].mxu0 %v4073
        %v5596 = vpop.f32.mrb[0].mxu0
        %v5597 = vadd.f32 0.0, %v5596
        %v5598 = vpop.f32.mrb[0].mxu0
        %v5599 = vadd.f32 0.0, %v5598
        %5600 = vmatprep.mubr.f32.mxu0 0.0
        %5601 = vmatmul.mubr.f32.gmra.mrb[0].mxu0 %v4074
        %v5602 = vpop.f32.mrb[0].mxu0
        %v5603 = vadd.f32 0.0, %v5602
        %v5604 = vpop.f32.mrb[0].mxu0
        %v5605 = vadd.f32 0.0, %v5604
        %5606 = vmatprep.mubr.f32.mxu0 0.0
        %5607 = vmatmul.mubr.f32.gmra.mrb[0].mxu0 %v4075
        %v5608 = vpop.f32.mrb[0].mxu0
        %v5609 = vadd.f32 0.0, %v5608
        %v5610 = vpop.f32.mrb[0].mxu0
        %v5611 = vadd.f32 0.0, %v5610
        %5612 = vmatprep.mubr.f32.mxu0 0.0
        %5613 = vmatmul.mubr.f32.gmra.mrb[0].mxu0 %v4076
        %v5614 = vpop.f32.mrb[0].mxu0
        %v5615 = vadd.f32 0.0, %v5614
        %v5616 = vpop.f32.mrb[0].mxu0
        %v5617 = vadd.f32 0.0, %v5616
        %5618 = vmatprep.mubr.f32.mxu0 0.0
        %5619 = vmatmul.mubr.f32.gmra.mrb[0].mxu0 %v4077
        %v5620 = vpop.f32.mrb[0].mxu0
        %v5621 = vadd.f32 0.0, %v5620
        %v5622 = vpop.f32.mrb[0].mxu0
        %v5623 = vadd.f32 0.0, %v5622
        %5624 = vmatprep.mubr.f32.mxu0 0.0
        %5625 = vmatmul.mubr.f32.gmra.mrb[0].mxu0 %v4078
        %v5626 = vpop.f32.mrb[0].mxu0
        %v5627 = vadd.f32 0.0, %v5626
        %v5628 = vpop.f32.mrb[0].mxu0
        %v5629 = vadd.f32 0.0, %v5628
        %5630 = vmatprep.mubr.f32.mxu0 0.0
        %5631 = vmatmul.mubr.f32.gmra.mrb[0].mxu0 %v4079
        %v5632 = vpop.f32.mrb[0].mxu0
        %v5633 = vadd.f32 0.0, %v5632
        %v5634 = vpop.f32.mrb[0].mxu0
        %v5635 = vadd.f32 0.0, %v5634
        %5636 = vdwg.mxu0
        %v5637 = vlaneseq
        %v5638 = vshrl.u32 %v5637, 7
        %v5639 = vsub.s32 7, %v5638
        %v5640 = vrot.slane %v5472, %v5639
        %v5641 = vlaneseq
        %v5642 = vshrl.u32 %v5641, 7
        %v5643 = vsub.s32 7, %v5642
        %v5644 = vrot.slane %v5473, %v5643
        %v5645 = vlaneseq
        %v5646 = vshrl.u32 %v5645, 7
        %v5647 = vsub.s32 7, %v5646
        %v5648 = vrot.slane %v5474, %v5647
        %v5649 = vlaneseq
        %v5650 = vshrl.u32 %v5649, 7
        %v5651 = vsub.s32 7, %v5650
        %v5652 = vrot.slane %v5475, %v5651
        %v5653 = vadd.f32 %v5640, %v5543
        %v5654 = vadd.f32 %v5644, %v5545
        %v5655 = vadd.f32 %v5640, %v5549
        %v5656 = vadd.f32 %v5644, %v5551
        %v5657 = vadd.f32 %v5640, %v5555
        %v5658 = vadd.f32 %v5644, %v5557
        %v5659 = vadd.f32 %v5640, %v5561
        %v5660 = vadd.f32 %v5644, %v5563
        %v5661 = vadd.f32 %v5640, %v5567
        %v5662 = vadd.f32 %v5644, %v5569
        %v5663 = vadd.f32 %v5640, %v5573
        %v5664 = vadd.f32 %v5644, %v5575
        %v5665 = vadd.f32 %v5640, %v5579
        %v5666 = vadd.f32 %v5644, %v5581
        %v5667 = vadd.f32 %v5640, %v5585
        %v5668 = vadd.f32 %v5644, %v5587
        %v5669 = vadd.f32 %v5648, %v5591
        %v5670 = vadd.f32 %v5652, %v5593
        %v5671 = vadd.f32 %v5648, %v5597
        %v5672 = vadd.f32 %v5652, %v5599
        %v5673 = vadd.f32 %v5648, %v5603
        %v5674 = vadd.f32 %v5652, %v5605
        %v5675 = vadd.f32 %v5648, %v5609
        %v5676 = vadd.f32 %v5652, %v5611
        %v5677 = vadd.f32 %v5648, %v5615
        %v5678 = vadd.f32 %v5652, %v5617
        %v5679 = vadd.f32 %v5648, %v5621
        %v5680 = vadd.f32 %v5652, %v5623
        %v5681 = vadd.f32 %v5648, %v5627
        %v5682 = vadd.f32 %v5652, %v5629
        %v5683 = vadd.f32 %v5648, %v5633
        %v5684 = vadd.f32 %v5652, %v5635
        %v5685 = vadd.f32 %v5244, %v5360
        %v5686 = vadd.f32 %v5245, %v5361
        %v5687 = vadd.f32 %v5246, %v5360
        %v5688 = vadd.f32 %v5247, %v5361
        %v5689 = vadd.f32 %v5248, %v5360
        %v5690 = vadd.f32 %v5249, %v5361
        %v5691 = vadd.f32 %v5250, %v5360
        %v5692 = vadd.f32 %v5251, %v5361
        %v5693 = vadd.f32 %v5252, %v5360
        %v5694 = vadd.f32 %v5253, %v5361
        %v5695 = vadd.f32 %v5254, %v5360
        %v5696 = vadd.f32 %v5255, %v5361
        %v5697 = vadd.f32 %v5256, %v5360
        %v5698 = vadd.f32 %v5257, %v5361
        %v5699 = vadd.f32 %v5258, %v5360
        %v5700 = vadd.f32 %v5259, %v5361
        %v5701 = vadd.f32 %v5260, %v5362
        %v5702 = vadd.f32 %v5261, %v5363
        %v5703 = vadd.f32 %v5262, %v5362
        %v5704 = vadd.f32 %v5263, %v5363
        %v5705 = vadd.f32 %v5264, %v5362
        %v5706 = vadd.f32 %v5265, %v5363
        %v5707 = vadd.f32 %v5266, %v5362
        %v5708 = vadd.f32 %v5267, %v5363
        %v5709 = vadd.f32 %v5268, %v5362
        %v5710 = vadd.f32 %v5269, %v5363
        %v5711 = vadd.f32 %v5270, %v5362
        %v5712 = vadd.f32 %v5271, %v5363
        %v5713 = vadd.f32 %v5272, %v5362
        %v5714 = vadd.f32 %v5273, %v5363
        %v5715 = vadd.f32 %v5274, %v5362
        %v5716 = vadd.f32 %v5275, %v5363
        %v5717 = vmul.f32 %v5685, 1.442695
        %v5718 = vpow.pop %v5717
        %v5719 = vmul.f32 %v5686, 1.442695
        %v5720 = vpow.pop %v5719
        %v5721 = vmul.f32 %v5687, 1.442695
        %v5722 = vpow.pop %v5721
        %v5723 = vmul.f32 %v5688, 1.442695
        %v5724 = vpow.pop %v5723
        %v5725 = vmul.f32 %v5689, 1.442695
        %v5726 = vpow.pop %v5725
        %v5727 = vmul.f32 %v5690, 1.442695
        %v5728 = vpow.pop %v5727
        %v5729 = vmul.f32 %v5691, 1.442695
        %v5730 = vpow.pop %v5729
        %v5731 = vmul.f32 %v5692, 1.442695
        %v5732 = vpow.pop %v5731
        %v5733 = vmul.f32 %v5693, 1.442695
        %v5734 = vpow.pop %v5733
        %v5735 = vmul.f32 %v5694, 1.442695
        %v5736 = vpow.pop %v5735
        %v5737 = vmul.f32 %v5695, 1.442695
        %v5738 = vpow.pop %v5737
        %v5739 = vmul.f32 %v5696, 1.442695
        %v5740 = vpow.pop %v5739
        %v5741 = vmul.f32 %v5697, 1.442695
        %v5742 = vpow.pop %v5741
        %v5743 = vmul.f32 %v5698, 1.442695
        %v5744 = vpow.pop %v5743
        %v5745 = vmul.f32 %v5699, 1.442695
        %v5746 = vpow.pop %v5745
        %v5747 = vmul.f32 %v5700, 1.442695
        %v5748 = vpow.pop %v5747
        %v5749 = vmul.f32 %v5701, 1.442695
        %v5750 = vpow.pop %v5749
        %v5751 = vmul.f32 %v5702, 1.442695
        %v5752 = vpow.pop %v5751
        %v5753 = vmul.f32 %v5703, 1.442695
        %v5754 = vpow.pop %v5753
        %v5755 = vmul.f32 %v5704, 1.442695
        %v5756 = vpow.pop %v5755
        %v5757 = vmul.f32 %v5705, 1.442695
        %v5758 = vpow.pop %v5757
        %v5759 = vmul.f32 %v5706, 1.442695
        %v5760 = vpow.pop %v5759
        %v5761 = vmul.f32 %v5707, 1.442695
        %v5762 = vpow.pop %v5761
        %v5763 = vmul.f32 %v5708, 1.442695
        %v5764 = vpow.pop %v5763
        %v5765 = vmul.f32 %v5709, 1.442695
        %v5766 = vpow.pop %v5765
        %v5767 = vmul.f32 %v5710, 1.442695
        %v5768 = vpow.pop %v5767
        %v5769 = vmul.f32 %v5711, 1.442695
        %v5770 = vpow.pop %v5769
        %v5771 = vmul.f32 %v5712, 1.442695
        %v5772 = vpow.pop %v5771
        %v5773 = vmul.f32 %v5713, 1.442695
        %v5774 = vpow.pop %v5773
        %v5775 = vmul.f32 %v5714, 1.442695
        %v5776 = vpow.pop %v5775
        %v5777 = vmul.f32 %v5715, 1.442695
        %v5778 = vpow.pop %v5777
        %v5779 = vmul.f32 %v5716, 1.442695
        %v5780 = vpow.pop %v5779
        %v5781 = vmul.f32 %v5718, %v5653
        %v5782 = vmul.f32 %v5720, %v5654
        %v5783 = vmul.f32 %v5722, %v5655
        %v5784 = vmul.f32 %v5724, %v5656
        %v5785 = vmul.f32 %v5726, %v5657
        %v5786 = vmul.f32 %v5728, %v5658
        %v5787 = vmul.f32 %v5730, %v5659
        %v5788 = vmul.f32 %v5732, %v5660
        %v5789 = vmul.f32 %v5734, %v5661
        %v5790 = vmul.f32 %v5736, %v5662
        %v5791 = vmul.f32 %v5738, %v5663
        %v5792 = vmul.f32 %v5740, %v5664
        %v5793 = vmul.f32 %v5742, %v5665
        %v5794 = vmul.f32 %v5744, %v5666
        %v5795 = vmul.f32 %v5746, %v5667
        %v5796 = vmul.f32 %v5748, %v5668
        %v5797 = vmul.f32 %v5750, %v5669
        %v5798 = vmul.f32 %v5752, %v5670
        %v5799 = vmul.f32 %v5754, %v5671
        %v5800 = vmul.f32 %v5756, %v5672
        %v5801 = vmul.f32 %v5758, %v5673
        %v5802 = vmul.f32 %v5760, %v5674
        %v5803 = vmul.f32 %v5762, %v5675
        %v5804 = vmul.f32 %v5764, %v5676
        %v5805 = vmul.f32 %v5766, %v5677
        %v5806 = vmul.f32 %v5768, %v5678
        %v5807 = vmul.f32 %v5770, %v5679
        %v5808 = vmul.f32 %v5772, %v5680
        %v5809 = vmul.f32 %v5774, %v5681
        %v5810 = vmul.f32 %v5776, %v5682
        %v5811 = vmul.f32 %v5778, %v5683
        %v5812 = vmul.f32 %v5780, %v5684
        %v5813 = vpack.c.bf16 %v5783, %v5781
        %v5814 = vpack.c.bf16 %v5784, %v5782
        %v5815 = vpack.c.bf16 %v5787, %v5785
        %v5816 = vpack.c.bf16 %v5788, %v5786
        %v5817 = vpack.c.bf16 %v5791, %v5789
        %v5818 = vpack.c.bf16 %v5792, %v5790
        %v5819 = vpack.c.bf16 %v5795, %v5793
        %v5820 = vpack.c.bf16 %v5796, %v5794
        %v5821 = vpack.c.bf16 %v5799, %v5797
        %v5822 = vpack.c.bf16 %v5800, %v5798
        %v5823 = vpack.c.bf16 %v5803, %v5801
        %v5824 = vpack.c.bf16 %v5804, %v5802
        %v5825 = vpack.c.bf16 %v5807, %v5805
        %v5826 = vpack.c.bf16 %v5808, %v5806
        %v5827 = vpack.c.bf16 %v5811, %v5809
        %v5828 = vpack.c.bf16 %v5812, %v5810
        %5829 = vmatprep.subr.bf16.mxu0 0
        %5830 = vmatpush1.bf16.msra.mxu0 %v4906
        %5831 = vmatprep.subr.bf16.mxu0 0
        %5832 = vmatpush1.bf16.msra.mxu0 %v4907
        %5833 = vmatprep.subr.bf16.mxu0 0
        %5834 = vmatpush1.bf16.msra.mxu0 %v4908
        %5835 = vmatprep.subr.bf16.mxu0 0
        %5836 = vmatpush1.bf16.msra.mxu0 %v4909
        %5837 = vmatprep.subr.bf16.mxu0 0
        %5838 = vmatpush1.bf16.msra.mxu0 %v4910
        %5839 = vmatprep.subr.bf16.mxu0 0
        %5840 = vmatpush1.bf16.msra.mxu0 %v4911
        %5841 = vmatprep.subr.bf16.mxu0 0
        %5842 = vmatpush1.bf16.msra.mxu0 %v4912
        %5843 = vmatprep.subr.bf16.mxu0 0
        %5844 = vmatpush1.bf16.msra.mxu0 %v4913
        %5845 = vmatprep.subr.bf16.mxu0 0
        %5846 = vmatpush1.bf16.msra.mxu0 %v4914
        %5847 = vmatprep.subr.bf16.mxu0 0
        %5848 = vmatpush1.bf16.msra.mxu0 %v4915
        %5849 = vmatprep.subr.bf16.mxu0 0
        %5850 = vmatpush1.bf16.msra.mxu0 %v4916
        %5851 = vmatprep.subr.bf16.mxu0 0
        %5852 = vmatpush1.bf16.msra.mxu0 %v4917
        %5853 = vmatprep.subr.bf16.mxu0 0
        %5854 = vmatpush1.bf16.msra.mxu0 %v4918
        %5855 = vmatprep.subr.bf16.mxu0 0
        %5856 = vmatpush1.bf16.msra.mxu0 %v4919
        %5857 = vmatprep.subr.bf16.mxu0 0
        %5858 = vmatpush1.bf16.msra.mxu0 %v4920
        %5859 = vmatprep.subr.bf16.mxu0 0
        %5860 = vmatpush1.bf16.msra.mxu0 %v4921
        %5861 = vmatprep.mubr.bf16.mxu0 %v5814
        %5862 = vmatmul.mubr.bf16.gmra.mrb[0].mxu0 %v5813
        %v5863 = vpop.f32.mrb[0].mxu0
        %v5864 = vadd.f32 0.0, %v5863
        %v5865 = vpop.f32.mrb[0].mxu0
        %v5866 = vpop.f32.mrb[0].mxu0
        %v5867 = vadd.f32 0.0, %v5866
        %v5868 = vpop.f32.mrb[0].mxu0
        %5869 = vmatprep.mubr.bf16.mxu0 %v5816
        %5870 = vmatmul.mubr.bf16.gmra.mrb[0].mxu0 %v5815
        %v5871 = vpop.f32.mrb[0].mxu0
        %v5872 = vadd.f32 0.0, %v5871
        %v5873 = vpop.f32.mrb[0].mxu0
        %v5874 = vpop.f32.mrb[0].mxu0
        %v5875 = vadd.f32 0.0, %v5874
        %v5876 = vpop.f32.mrb[0].mxu0
        %5877 = vmatprep.mubr.bf16.mxu0 %v5818
        %5878 = vmatmul.mubr.bf16.gmra.mrb[0].mxu0 %v5817
        %v5879 = vpop.f32.mrb[0].mxu0
        %v5880 = vadd.f32 0.0, %v5879
        %v5881 = vpop.f32.mrb[0].mxu0
        %v5882 = vpop.f32.mrb[0].mxu0
        %v5883 = vadd.f32 0.0, %v5882
        %v5884 = vpop.f32.mrb[0].mxu0
        %5885 = vmatprep.mubr.bf16.mxu0 %v5820
        %5886 = vmatmul.mubr.bf16.gmra.mrb[0].mxu0 %v5819
        %v5887 = vpop.f32.mrb[0].mxu0
        %v5888 = vadd.f32 0.0, %v5887
        %v5889 = vpop.f32.mrb[0].mxu0
        %v5890 = vpop.f32.mrb[0].mxu0
        %v5891 = vadd.f32 0.0, %v5890
        %v5892 = vpop.f32.mrb[0].mxu0
        %5893 = vmatprep.mubr.bf16.mxu0 %v5822
        %5894 = vmatmul.mubr.bf16.gmra.mrb[0].mxu0 %v5821
        %v5895 = vpop.f32.mrb[0].mxu0
        %v5896 = vadd.f32 0.0, %v5895
        %v5897 = vpop.f32.mrb[0].mxu0
        %v5898 = vpop.f32.mrb[0].mxu0
        %v5899 = vadd.f32 0.0, %v5898
        %v5900 = vpop.f32.mrb[0].mxu0
        %5901 = vmatprep.mubr.bf16.mxu0 %v5824
        %5902 = vmatmul.mubr.bf16.gmra.mrb[0].mxu0 %v5823
        %v5903 = vpop.f32.mrb[0].mxu0
        %v5904 = vadd.f32 0.0, %v5903
        %v5905 = vpop.f32.mrb[0].mxu0
        %v5906 = vpop.f32.mrb[0].mxu0
        %v5907 = vadd.f32 0.0, %v5906
        %v5908 = vpop.f32.mrb[0].mxu0
        %5909 = vmatprep.mubr.bf16.mxu0 %v5826
        %5910 = vmatmul.mubr.bf16.gmra.mrb[0].mxu0 %v5825
        %v5911 = vpop.f32.mrb[0].mxu0
        %v5912 = vadd.f32 0.0, %v5911
        %v5913 = vpop.f32.mrb[0].mxu0
        %v5914 = vpop.f32.mrb[0].mxu0
        %v5915 = vadd.f32 0.0, %v5914
        %v5916 = vpop.f32.mrb[0].mxu0
        %5917 = vmatprep.mubr.bf16.mxu0 %v5828
        %5918 = vmatmul.mubr.bf16.gmra.mrb[0].mxu0 %v5827
        %v5919 = vpop.f32.mrb[0].mxu0
        %v5920 = vadd.f32 0.0, %v5919
        %v5921 = vpop.f32.mrb[0].mxu0
        %v5922 = vpop.f32.mrb[0].mxu0
        %v5923 = vadd.f32 0.0, %v5922
        %v5924 = vpop.f32.mrb[0].mxu0
        %5925 = vdwg.mxu0
        %v5926 = vadd.f32 %v5864, %v380
        %v5927 = vadd.f32 %v5867, %v381
        %v5928 = vadd.f32 %v5872, %v382
        %v5929 = vadd.f32 %v5875, %v383
        %v5930 = vadd.f32 %v5880, %v384
        %v5931 = vadd.f32 %v5883, %v385
        %v5932 = vadd.f32 %v5888, %v386
        %v5933 = vadd.f32 %v5891, %v387
        %v5934 = vadd.f32 %v5896, %v396
        %v5935 = vadd.f32 %v5899, %v397
        %v5936 = vadd.f32 %v5904, %v398
        %v5937 = vadd.f32 %v5907, %v399
        %v5938 = vadd.f32 %v5912, %v400
        %v5939 = vadd.f32 %v5915, %v401
        %v5940 = vadd.f32 %v5920, %v402
        %v5941 = vadd.f32 %v5923, %v403
        %5942 = vst [vmem:[%s368 + $0x40] sm:$0xff] %v5926
        %5943 = vst [vmem:[%s368 + $0x48] sm:$0xff] %v5927
        %5944 = vst [vmem:[%s368 + $0x50] sm:$0xff] %v5928
        %5945 = vst [vmem:[%s368 + $0x58] sm:$0xff] %v5929
        %5946 = vst [vmem:[%s368 + $0x60] sm:$0xff] %v5930
        %5947 = vst [vmem:[%s368 + $0x68] sm:$0xff] %v5931
        %5948 = vst [vmem:[%s368 + $0x70] sm:$0xff] %v5932
        %5949 = vst [vmem:[%s368 + $0x78] sm:$0xff] %v5933
        %5950 = vst [vmem:[%s368 + $0xc0] sm:$0xff] %v5934
        %5951 = vst [vmem:[%s368 + $0xc8] sm:$0xff] %v5935
        %5952 = vst [vmem:[%s368 + $0xd0] sm:$0xff] %v5936
        %5953 = vst [vmem:[%s368 + $0xd8] sm:$0xff] %v5937
        %5954 = vst [vmem:[%s368 + $0xe0] sm:$0xff] %v5938
        %5955 = vst [vmem:[%s368 + $0xe8] sm:$0xff] %v5939
        %5956 = vst [vmem:[%s368 + $0xf0] sm:$0xff] %v5940
        %5957 = vst [vmem:[%s368 + $0xf8] sm:$0xff] %v5941
        %s5958 = sand.u32 %s208, 1
        %s5959 = scalar_lea.sflag [#allocation4], %s5958
        %s5960 = sand.u32 %s208, 1
        %s5961 = smul.addr %s5960, 256
        %s5962 = scalar_lea.vmem [#allocation10], %s5961
        // Predicated region
        $region69: #{tpu_custom_call.1} parent=51 // pred_check
          %p5963 = pneg %p218
        $region70: #{tpu_custom_call.1} parent=51 // pred_check_branch
          %5965 = sbr.rel (%p5963) target = $region72
        $region71: #{tpu_custom_call.1} parent=51 // pred_region
          %s5966 = smul.u32 2, %s27
          %s5968 = ssub.s32 4096, 4096
          %5969 = vsyncadd %s5959, %s5968
          %s5970 = smul.addr %s5966, 16
          %s5971 = smul.addr %s5970, 128
          %s5972 = scalar_lea.hbm %s8, %s5971
          %s5973 = sshll.u32 %s5962, 4
          %s5974 = int_to_ptr.vmem [resolvable:$true] %s5973
          %5979 = dma.vmem_to_hbm [thread:$0]  %s5974, 4096, %s5972, %s5959, 128, 128, 8
        $region72: #{tpu_custom_call.1} parent=51 // pred_fallthru
          _
      $region52: #{tpu_custom_call.1} parent=5 // pred_fallthru
        _
      %p5980 = scmp.le.s32.totalorder 2, %s22
      // Predicated region
      $region73: #{tpu_custom_call.1} parent=5 // pred_check
        %p5981 = pneg %p5980
      $region74: #{tpu_custom_call.1} parent=5 // pred_check_branch
        %5983 = sbr.rel (%p5981) target = $region76
      $region75: #{tpu_custom_call.1} parent=5 // pred_region
        %s5984 = ssub.s32 %s22, 2
        // Predicated region
        $region77: #{tpu_custom_call.1} parent=75 // pred_check
          %p5985 = pneg %p224
        $region78: #{tpu_custom_call.1} parent=75 // pred_check_branch
          %5987 = sbr.rel (%p5985) target = $region80
        $region79: #{tpu_custom_call.1} parent=75 // pred_region
          %s5988 = sand.u32 %s209, 1
          %s5989 = scalar_lea.sflag [#allocation4], %s5988
          %s5990 = sand.u32 %s209, 1
          %s5991 = smul.addr %s5990, 256
          %s5992 = scalar_lea.vmem [#allocation10], %s5991
          %5993 = dma.done %s5989, 4096
        $region80: #{tpu_custom_call.1} parent=75 // pred_fallthru
          _
      $region76: #{tpu_custom_call.1} parent=5 // pred_fallthru
        _
    $region6: #{tpu_custom_call.1} parent=1 // loop_footer
      %s26 = sadd.s32 1, %s22
    $region7: #{tpu_custom_call.1} parent=1 // loop_footer_branch
      %21 = sbr.rel target = $region3
    $region8: #{tpu_custom_call.1} parent=1 // loop_exit
      _
    %5994 = vsyncpa [#allocation3], 1
    %s5995 = scalar_lea.sflag [#allocation3], 1
    %5996 = vsyncpa %s5995, 1
    %5997 = vsyncpa [#allocation6], 1
    %5998 = vsyncpa [#allocation9], 1
    %5999 = vsyncpa [#allocation4], 1
    %s6000 = scalar_lea.sflag [#allocation4], 1
    %6001 = vsyncpa %s6000, 1

</llo_original>
